<compile_context>
chip_gen: v7x
topology: tpu7x:2x2x1
jax: 0.10.0
libtpu: 0.0.40
codegen_flags: <defaults>
</compile_context>

<pallas_src>
import functools

import numpy as np
import jax
import jax.numpy as jnp
from jax.experimental import pallas as pl
from jax.experimental.pallas import tpu as pltpu


# ----------------------------- helpers ------------------------------------


def _lane_shift(x, s):
    """Circular shift along the last (lane) axis: out[..., i] = x[..., (i + s) % L].

    `s` is a static Python int; implemented as two static lane slices + concat
    (guaranteed Mosaic lowering, lands on lane rotates)."""
    L = x.shape[-1]
    s = s % L
    if s == 0:
        return x
    return jnp.concatenate([x[..., s:], x[..., :s]], axis=-1)


# ----------------------------- fused Pallas kernel ------------------------------


def _down_kernel(x_ref, wa_ref, zb_ref, mask_ref,
                 w1_ref, s1_ref, b1_ref,
                 w2_ref, s2_ref, b2_ref,
                 o_ref, patch_ref,
                 *, C_out, N, T, V, maxpool):
    """Whole `down` forward for the full batch, fully resident in VMEM.

    x_ref    : (C_in*V, N*T)        pre-permuted input (row ci*V+v, col n*T+t)
    wa_ref   : (C_out*V, C_in*V)    precombined GCN operator (W (x) A)
    zb_ref   : (C_out*V, 1)         precombined GCN bias
    mask_ref : (25, N*T_out*V)      per-tap validity mask (0/1) for the 5x5 conv
    w*_ref   : (C_out, 25*C_out)    im2col conv weight (tap-major, channel minor)
    s*_ref   : (C_out, 1)           folded BN scale
    b*_ref   : (C_out, 1)           folded BN/conv bias
    o_ref    : (C_out, N*T_out*V)   lane-dense output slab
    patch_ref: (25*C_out, N*T_out*V) VMEM scratch for the im2col patch matrix
    """
    T_out = T // 2 if maxpool else T
    M = N * T_out
    NTV = M * V

    # ---- GCN: ONE MXU matmul against the precombined (W (x) A) operator ----
    zz = jnp.dot(wa_ref[...], x_ref[...], preferred_element_type=jnp.float32)
    zz = zz + zb_ref[...]                                          # (C_out*V, N*T)

    # ---- single whole-tensor permutation to the lane-dense conv layout ----
    # (C_out, V, N*T) -> (C_out, N*T, V): batched swap of the two minor dims.
    z3 = jnp.transpose(zz.reshape(C_out, V, N * T), (0, 2, 1))     # (C_out, N*T, V)

    # ---- optional MaxPool1d(2) over time: max over adjacent t pairs ----
    if maxpool:
        z3 = jnp.max(z3.reshape(C_out, M, 2, V), axis=2)           # (C_out, M, V)

    z = z3.reshape(C_out, NTV)                                     # lane-dense slab

    # ---- 2 x (5x5 conv + folded BN + ReLU), each ONE im2col matmul ----
    def conv_bn_relu(cur, w_ref, s_ref, b_ref):
        # Build the im2col patch with 25 full-lane-width circular shifts + masks,
        # writing each tap's C_out rows straight into the VMEM scratch.
        for dt in range(5):
            for dv in range(5):
                tap = dt * 5 + dv
                s = (dt - 2) * V + (dv - 2)                        # flat (t,v) shift
                shifted = _lane_shift(cur, s)                      # (C_out, NTV)
                patch_ref[tap * C_out:(tap + 1) * C_out, :] = (
                    shifted * mask_ref[tap:tap + 1, :])
        out = jnp.dot(w_ref[...], patch_ref[...],
                      preferred_element_type=jnp.float32)          # (C_out, NTV)
        out = out * s_ref[...] + b_ref[...]
        return jnp.maximum(out, 0.0)

    h1 = conv_bn_relu(z, w1_ref, s1_ref, b1_ref)
    h2 = conv_bn_relu(h1, w2_ref, s2_ref, b2_ref)
    o_ref[...] = h2.astype(o_ref.dtype)


# ------------------------------ wrapper ------------------------------------


@functools.partial(jax.jit, static_argnums=2)
def down_forward(x, A, MaxPool, params):
    N, C_in, T, V = x.shape
    K = A.shape[0]
    C_out = params["gcn_w"].shape[0] // K
    T_out = T // 2 if MaxPool else T
    NTV = N * T_out * V

    # Precombine the GCN 1x1-conv weight/bias with the adjacency (weight prep):
    #   wa[c*V + w, ci*V + v] = sum_k W[k*C_out + c, ci] * A[k, v, w]
    #   zb[c*V + w]           = sum_{k,v} b[k*C_out + c] * A[k, v, w]
    Wk = params["gcn_w"].reshape(K, C_out, C_in)
    wa = jnp.einsum("kci,kvw->cwiv", Wk, A,
                    precision=jax.lax.Precision.HIGHEST).reshape(C_out * V, C_in * V)
    zb = jnp.einsum("kc,kvw->cw", params["gcn_b"].reshape(K, C_out), A,
                    precision=jax.lax.Precision.HIGHEST).reshape(C_out * V, 1)

    # Hoist the input-side permutation out of the kernel (layout plumbing):
    #   x_perm[ci*V + v, n*T + t] = x[n, ci, t, v]
    x_perm = jnp.transpose(x, (1, 3, 0, 2)).reshape(C_in * V, N * T)

    # Static per-tap validity masks for the 5x5 'same' conv on the lane-dense
    # flattened (n, t, v) axis, computed with numpy at trace time.
    lane = np.arange(NTV)
    lt = (lane // V) % T_out
    lw = lane % V
    masks = np.empty((25, NTV), np.float32)
    for dt in range(5):
        for dv in range(5):
            tt = lt + (dt - 2)
            ww = lw + (dv - 2)
            masks[dt * 5 + dv] = ((tt >= 0) & (tt < T_out) & (ww >= 0) & (ww < V))
    masks = jnp.asarray(masks)

    kernel = functools.partial(_down_kernel, C_out=C_out, N=N, T=T, V=V, maxpool=MaxPool)
    out = pl.pallas_call(
        kernel,
        out_shape=jax.ShapeDtypeStruct((C_out, NTV), jnp.float32),
        grid=(1,),
        in_specs=[
            pl.BlockSpec((C_in * V, N * T), lambda b: (0, 0)),
            pl.BlockSpec((C_out * V, C_in * V), lambda b: (0, 0)),
            pl.BlockSpec((C_out * V, 1), lambda b: (0, 0)),
            pl.BlockSpec((25, NTV), lambda b: (0, 0)),
            pl.BlockSpec((C_out, 25 * C_out), lambda b: (0, 0)),
            pl.BlockSpec((C_out, 1), lambda b: (0, 0)),
            pl.BlockSpec((C_out, 1), lambda b: (0, 0)),
            pl.BlockSpec((C_out, 25 * C_out), lambda b: (0, 0)),
            pl.BlockSpec((C_out, 1), lambda b: (0, 0)),
            pl.BlockSpec((C_out, 1), lambda b: (0, 0)),
        ],
        out_specs=pl.BlockSpec((C_out, NTV), lambda b: (0, 0)),
        scratch_shapes=[pltpu.VMEM((25 * C_out, NTV), jnp.float32)],
        compiler_params=pltpu.CompilerParams(dimension_semantics=("arbitrary",)),
    )(x_perm, wa, zb, masks,
      params["w1m"], params["s1"].reshape(C_out, 1), params["b1"].reshape(C_out, 1),
      params["w2m"], params["s2"].reshape(C_out, 1), params["b2"].reshape(C_out, 1))

    # Layout plumbing back to PyTorch-like (N, C, T, V).
    return jnp.transpose(out.reshape(C_out, N, T_out, V), (1, 0, 2, 3))


# ------------------------- deterministic params ------------------------------


def init_params(key, C_in, C_out, K):
    ks = jax.random.split(key, 4)
    eps = 1e-5

    gcn_w = 0.1 * jax.random.normal(ks[0], (K * C_out, C_in), jnp.float32)
    gcn_b = 0.1 * jax.random.normal(ks[1], (K * C_out,), jnp.float32)

    def conv_bn(k):
        kw, kb, kg, kbe, km, kv = jax.random.split(k, 6)
        w = 0.05 * jax.random.normal(kw, (C_out, C_out, 5, 5), jnp.float32)   # OIHW
        cb = 0.05 * jax.random.normal(kb, (C_out,), jnp.float32)
        gamma = 1.0 + 0.1 * jax.random.normal(kg, (C_out,), jnp.float32)
        beta = 0.1 * jax.random.normal(kbe, (C_out,), jnp.float32)
        mean = 0.1 * jax.random.normal(km, (C_out,), jnp.float32)
        var = 1.0 + 0.2 * jax.random.uniform(kv, (C_out,), jnp.float32)
        scale = gamma / jnp.sqrt(var + eps)
        bias = (cb - mean) * scale + beta
        # im2col weight: column index = (dt*5 + dv)*C_in_conv + ci  (tap-major)
        w_mat = jnp.transpose(w, (0, 2, 3, 1)).reshape(C_out, 25 * C_out)
        return w, w_mat, scale, bias

    w1, w1m, s1, b1 = conv_bn(ks[2])
    w2, w2m, s2, b2 = conv_bn(ks[3])

    return dict(gcn_w=gcn_w, gcn_b=gcn_b,
                w1=w1, w1m=w1m, s1=s1, b1=b1,
                w2=w2, w2m=w2m, s2=s2, b2=b2)


# ----------------------------- plain-JAX reference ---------------------------


def ref_forward(x, A, MaxPool, params):
    N, C_in, T, V = x.shape
    K = A.shape[0]
    C_out = params["gcn_w"].shape[0] // K
    y = jnp.einsum("oc,nctv->notv", params["gcn_w"], x) + params["gcn_b"][None, :, None, None]
    y = y.reshape(N, K, C_out, T, V)
    z = jnp.einsum("nkctv,kvw->nctw", y, A)
    if MaxPool:
        T2 = T // 2
        z = jnp.max(z[:, :, : 2 * T2, :].reshape(N, C_out, T2, 2, V), axis=3)

    def block(z, w, s, b):
        out = jax.lax.conv_general_dilated(
            z, w, window_strides=(1, 1), padding=[(2, 2), (2, 2)],
            dimension_numbers=("NCHW", "OIHW", "NCHW"))
        out = out * s[None, :, None, None] + b[None, :, None, None]
        return jnp.maximum(out, 0.0)

    z = block(z, params["w1"], params["s1"], params["b1"])
    z = block(z, params["w2"], params["s2"], params["b2"])
    return z


# ----------------------------------- main ------------------------------------

if __name__ == "__main__":
    N, C_in, C_out, T, V, K = 2, 4, 8, 16, 8, 3   # kernel_size = (5, K)

    key = jax.random.PRNGKey(0)
    kx, ka, kp = jax.random.split(key, 3)
    x = jax.random.normal(kx, (N, C_in, T, V), jnp.float32)
    A = jax.random.normal(ka, (K, V, V), jnp.float32)
    params = init_params(kp, C_in, C_out, K)

    for maxpool in (True, False):
        out = down_forward(x, A, maxpool, params)
        jax.block_until_ready(out)
        ref = ref_forward(x, A, maxpool, params)
        t_out = T // 2 if maxpool else T
        assert out.shape == ref.shape == (N, C_out, t_out, V), (out.shape, ref.shape)
        # Expected drift: the XLA reference conv/einsums run at default (bf16-pass)
        # matmul precision while the kernel uses f32 MXU accumulation, plus the
        # W(x)A / im2col factorizations change accumulation order -> allow ~1e-2.
        if not bool(jnp.allclose(out, ref, rtol=2e-2, atol=2e-2)):
            raise AssertionError(
                f"MaxPool={maxpool}: max abs err = {float(jnp.max(jnp.abs(out - ref)))}")

    print("KERNEL_OK")
</pallas_src>

<mosaic_0001>
module attributes {stable_mosaic.version = 11 : i64} {
  func.func @_down_kernel(%arg0: i32, %arg1: memref<32x32xf32, #tpu.memory_space<vmem>>, %arg2: memref<64x32xf32, #tpu.memory_space<vmem>>, %arg3: memref<64x1xf32, #tpu.memory_space<vmem>>, %arg4: memref<25x128xf32, #tpu.memory_space<vmem>>, %arg5: memref<8x200xf32, #tpu.memory_space<vmem>>, %arg6: memref<8x1xf32, #tpu.memory_space<vmem>>, %arg7: memref<8x1xf32, #tpu.memory_space<vmem>>, %arg8: memref<8x200xf32, #tpu.memory_space<vmem>>, %arg9: memref<8x1xf32, #tpu.memory_space<vmem>>, %arg10: memref<8x1xf32, #tpu.memory_space<vmem>>, %arg11: memref<8x128xf32, #tpu.memory_space<vmem>>, %arg12: memref<200x128xf32, #tpu.memory_space<vmem>>) attributes {dimension_semantics = [#tpu.dimension_semantics<arbitrary>], iteration_bounds = array<i64: 1>, scalar_prefetch = 0 : i64, scratch_operands = 1 : i64, tpu.core_type = #tpu.core_type<tc>, window_params = [{pipeline_mode = #tpu.pipeline_mode<synchronous>, transform_indices = @transform_0, window_bounds = array<i64: 32, 32>}, {pipeline_mode = #tpu.pipeline_mode<synchronous>, transform_indices = @transform_1, window_bounds = array<i64: 64, 32>}, {pipeline_mode = #tpu.pipeline_mode<synchronous>, transform_indices = @transform_2, window_bounds = array<i64: 64, 1>}, {pipeline_mode = #tpu.pipeline_mode<synchronous>, transform_indices = @transform_3, window_bounds = array<i64: 25, 128>}, {pipeline_mode = #tpu.pipeline_mode<synchronous>, transform_indices = @transform_4, window_bounds = array<i64: 8, 200>}, {pipeline_mode = #tpu.pipeline_mode<synchronous>, transform_indices = @transform_5, window_bounds = array<i64: 8, 1>}, {pipeline_mode = #tpu.pipeline_mode<synchronous>, transform_indices = @transform_6, window_bounds = array<i64: 8, 1>}, {pipeline_mode = #tpu.pipeline_mode<synchronous>, transform_indices = @transform_7, window_bounds = array<i64: 8, 200>}, {pipeline_mode = #tpu.pipeline_mode<synchronous>, transform_indices = @transform_8, window_bounds = array<i64: 8, 1>}, {pipeline_mode = #tpu.pipeline_mode<synchronous>, transform_indices = @transform_9, window_bounds = array<i64: 8, 1>}, {pipeline_mode = #tpu.pipeline_mode<synchronous>, transform_indices = @transform_10, window_bounds = array<i64: 8, 128>}]} {
    %c0 = arith.constant 0 : index
    %c0_0 = arith.constant 0 : index
    %0 = vector.load %arg2[%c0, %c0_0] : memref<64x32xf32, #tpu.memory_space<vmem>>, vector<64x32xf32>
    %c0_1 = arith.constant 0 : index
    %c0_2 = arith.constant 0 : index
    %1 = vector.load %arg1[%c0_1, %c0_2] : memref<32x32xf32, #tpu.memory_space<vmem>>, vector<32x32xf32>
    %cst = arith.constant dense<0.000000e+00> : vector<64x32xf32>
    %2 = tpu.matmul %0, %1, %cst {dimension_numbers = #tpu.dot_dimension_numbers<[1], [0], [0], [1], [0, 0, 1, 1], [], []>} : vector<64x32xf32>, vector<32x32xf32>, vector<64x32xf32> -> vector<64x32xf32>
    %c0_3 = arith.constant 0 : index
    %c0_4 = arith.constant 0 : index
    %3 = vector.load %arg3[%c0_3, %c0_4] : memref<64x1xf32, #tpu.memory_space<vmem>>, vector<64x1xf32>
    %4 = vector.broadcast %3 : vector<64x1xf32> to vector<64x32xf32>
    %5 = arith.addf %2, %4 : vector<64x32xf32>
    %6 = vector.shape_cast %5 : vector<64x32xf32> to vector<8x8x32xf32>
    %7 = tpu.transpose %6, [0, 2, 1] : vector<8x8x32xf32> -> vector<8x32x8xf32>
    %8 = vector.shape_cast %7 : vector<8x32x8xf32> to vector<8x16x2x8xf32>
    %cst_5 = arith.constant dense<0xFF800000> : vector<8x16x8xf32>
    %9 = vector.multi_reduction <maximumf>, %8, %cst_5 [2] : vector<8x16x2x8xf32> to vector<8x16x8xf32>
    %10 = vector.shape_cast %9 : vector<8x16x8xf32> to vector<8x128xf32>
    %11 = vector.extract_strided_slice %10 {offsets = [0, 110], sizes = [8, 18], strides = [1, 1]} : vector<8x128xf32> to vector<8x18xf32>
    %12 = vector.extract_strided_slice %10 {offsets = [0, 0], sizes = [8, 110], strides = [1, 1]} : vector<8x128xf32> to vector<8x110xf32>
    %13 = tpu.concatenate %11, %12 in 1 : vector<8x18xf32>, vector<8x110xf32> -> vector<8x128xf32>
    %c0_6 = arith.constant 0 : index
    %c0_7 = arith.constant 0 : index
    %14 = vector.load %arg4[%c0_6, %c0_7] : memref<25x128xf32, #tpu.memory_space<vmem>>, vector<1x128xf32>
    %15 = vector.broadcast %14 : vector<1x128xf32> to vector<8x128xf32>
    %16 = arith.mulf %13, %15 : vector<8x128xf32>
    %c0_8 = arith.constant 0 : index
    %c0_9 = arith.constant 0 : index
    %17 = vector.load %arg12[%c0_8, %c0_9] : memref<200x128xf32, #tpu.memory_space<vmem>>, vector<8x128xf32>
    tpu.vector_store %arg12[%c0_8, %c0_9], %16 {strides = array<i32>} : memref<200x128xf32, #tpu.memory_space<vmem>>, vector<8x128xf32>,
    %18 = vector.extract_strided_slice %10 {offsets = [0, 111], sizes = [8, 17], strides = [1, 1]} : vector<8x128xf32> to vector<8x17xf32>
    %19 = vector.extract_strided_slice %10 {offsets = [0, 0], sizes = [8, 111], strides = [1, 1]} : vector<8x128xf32> to vector<8x111xf32>
    %20 = tpu.concatenate %18, %19 in 1 : vector<8x17xf32>, vector<8x111xf32> -> vector<8x128xf32>
    %c1 = arith.constant 1 : index
    %c0_10 = arith.constant 0 : index
    %21 = vector.load %arg4[%c1, %c0_10] : memref<25x128xf32, #tpu.memory_space<vmem>>, vector<1x128xf32>
    %22 = vector.broadcast %21 : vector<1x128xf32> to vector<8x128xf32>
    %23 = arith.mulf %20, %22 : vector<8x128xf32>
    %c8 = arith.constant 8 : index
    %c0_11 = arith.constant 0 : index
    %24 = vector.load %arg12[%c8, %c0_11] : memref<200x128xf32, #tpu.memory_space<vmem>>, vector<8x128xf32>
    tpu.vector_store %arg12[%c8, %c0_11], %23 {strides = array<i32>} : memref<200x128xf32, #tpu.memory_space<vmem>>, vector<8x128xf32>,
    %25 = vector.extract_strided_slice %10 {offsets = [0, 112], sizes = [8, 16], strides = [1, 1]} : vector<8x128xf32> to vector<8x16xf32>
    %26 = vector.extract_strided_slice %10 {offsets = [0, 0], sizes = [8, 112], strides = [1, 1]} : vector<8x128xf32> to vector<8x112xf32>
    %27 = tpu.concatenate %25, %26 in 1 : vector<8x16xf32>, vector<8x112xf32> -> vector<8x128xf32>
    %c2 = arith.constant 2 : index
    %c0_12 = arith.constant 0 : index
    %28 = vector.load %arg4[%c2, %c0_12] : memref<25x128xf32, #tpu.memory_space<vmem>>, vector<1x128xf32>
    %29 = vector.broadcast %28 : vector<1x128xf32> to vector<8x128xf32>
    %30 = arith.mulf %27, %29 : vector<8x128xf32>
    %c16 = arith.constant 16 : index
    %c0_13 = arith.constant 0 : index
    %31 = vector.load %arg12[%c16, %c0_13] : memref<200x128xf32, #tpu.memory_space<vmem>>, vector<8x128xf32>
    tpu.vector_store %arg12[%c16, %c0_13], %30 {strides = array<i32>} : memref<200x128xf32, #tpu.memory_space<vmem>>, vector<8x128xf32>,
    %32 = vector.extract_strided_slice %10 {offsets = [0, 113], sizes = [8, 15], strides = [1, 1]} : vector<8x128xf32> to vector<8x15xf32>
    %33 = vector.extract_strided_slice %10 {offsets = [0, 0], sizes = [8, 113], strides = [1, 1]} : vector<8x128xf32> to vector<8x113xf32>
    %34 = tpu.concatenate %32, %33 in 1 : vector<8x15xf32>, vector<8x113xf32> -> vector<8x128xf32>
    %c3 = arith.constant 3 : index
    %c0_14 = arith.constant 0 : index
    %35 = vector.load %arg4[%c3, %c0_14] : memref<25x128xf32, #tpu.memory_space<vmem>>, vector<1x128xf32>
    %36 = vector.broadcast %35 : vector<1x128xf32> to vector<8x128xf32>
    %37 = arith.mulf %34, %36 : vector<8x128xf32>
    %c24 = arith.constant 24 : index
    %c0_15 = arith.constant 0 : index
    %38 = vector.load %arg12[%c24, %c0_15] : memref<200x128xf32, #tpu.memory_space<vmem>>, vector<8x128xf32>
    tpu.vector_store %arg12[%c24, %c0_15], %37 {strides = array<i32>} : memref<200x128xf32, #tpu.memory_space<vmem>>, vector<8x128xf32>,
    %39 = vector.extract_strided_slice %10 {offsets = [0, 114], sizes = [8, 14], strides = [1, 1]} : vector<8x128xf32> to vector<8x14xf32>
    %40 = vector.extract_strided_slice %10 {offsets = [0, 0], sizes = [8, 114], strides = [1, 1]} : vector<8x128xf32> to vector<8x114xf32>
    %41 = tpu.concatenate %39, %40 in 1 : vector<8x14xf32>, vector<8x114xf32> -> vector<8x128xf32>
    %c4 = arith.constant 4 : index
    %c0_16 = arith.constant 0 : index
    %42 = vector.load %arg4[%c4, %c0_16] : memref<25x128xf32, #tpu.memory_space<vmem>>, vector<1x128xf32>
    %43 = vector.broadcast %42 : vector<1x128xf32> to vector<8x128xf32>
    %44 = arith.mulf %41, %43 : vector<8x128xf32>
    %c32 = arith.constant 32 : index
    %c0_17 = arith.constant 0 : index
    %45 = vector.load %arg12[%c32, %c0_17] : memref<200x128xf32, #tpu.memory_space<vmem>>, vector<8x128xf32>
    tpu.vector_store %arg12[%c32, %c0_17], %44 {strides = array<i32>} : memref<200x128xf32, #tpu.memory_space<vmem>>, vector<8x128xf32>,
    %46 = vector.extract_strided_slice %10 {offsets = [0, 118], sizes = [8, 10], strides = [1, 1]} : vector<8x128xf32> to vector<8x10xf32>
    %47 = vector.extract_strided_slice %10 {offsets = [0, 0], sizes = [8, 118], strides = [1, 1]} : vector<8x128xf32> to vector<8x118xf32>
    %48 = tpu.concatenate %46, %47 in 1 : vector<8x10xf32>, vector<8x118xf32> -> vector<8x128xf32>
    %c5 = arith.constant 5 : index
    %c0_18 = arith.constant 0 : index
    %49 = vector.load %arg4[%c5, %c0_18] : memref<25x128xf32, #tpu.memory_space<vmem>>, vector<1x128xf32>
    %50 = vector.broadcast %49 : vector<1x128xf32> to vector<8x128xf32>
    %51 = arith.mulf %48, %50 : vector<8x128xf32>
    %c40 = arith.constant 40 : index
    %c0_19 = arith.constant 0 : index
    %52 = vector.load %arg12[%c40, %c0_19] : memref<200x128xf32, #tpu.memory_space<vmem>>, vector<8x128xf32>
    tpu.vector_store %arg12[%c40, %c0_19], %51 {strides = array<i32>} : memref<200x128xf32, #tpu.memory_space<vmem>>, vector<8x128xf32>,
    %53 = vector.extract_strided_slice %10 {offsets = [0, 119], sizes = [8, 9], strides = [1, 1]} : vector<8x128xf32> to vector<8x9xf32>
    %54 = vector.extract_strided_slice %10 {offsets = [0, 0], sizes = [8, 119], strides = [1, 1]} : vector<8x128xf32> to vector<8x119xf32>
    %55 = tpu.concatenate %53, %54 in 1 : vector<8x9xf32>, vector<8x119xf32> -> vector<8x128xf32>
    %c6 = arith.constant 6 : index
    %c0_20 = arith.constant 0 : index
    %56 = vector.load %arg4[%c6, %c0_20] : memref<25x128xf32, #tpu.memory_space<vmem>>, vector<1x128xf32>
    %57 = vector.broadcast %56 : vector<1x128xf32> to vector<8x128xf32>
    %58 = arith.mulf %55, %57 : vector<8x128xf32>
    %c48 = arith.constant 48 : index
    %c0_21 = arith.constant 0 : index
    %59 = vector.load %arg12[%c48, %c0_21] : memref<200x128xf32, #tpu.memory_space<vmem>>, vector<8x128xf32>
    tpu.vector_store %arg12[%c48, %c0_21], %58 {strides = array<i32>} : memref<200x128xf32, #tpu.memory_space<vmem>>, vector<8x128xf32>,
    %60 = vector.extract_strided_slice %10 {offsets = [0, 120], sizes = [8, 8], strides = [1, 1]} : vector<8x128xf32> to vector<8x8xf32>
    %61 = vector.extract_strided_slice %10 {offsets = [0, 0], sizes = [8, 120], strides = [1, 1]} : vector<8x128xf32> to vector<8x120xf32>
    %62 = tpu.concatenate %60, %61 in 1 : vector<8x8xf32>, vector<8x120xf32> -> vector<8x128xf32>
    %c7 = arith.constant 7 : index
    %c0_22 = arith.constant 0 : index
    %63 = vector.load %arg4[%c7, %c0_22] : memref<25x128xf32, #tpu.memory_space<vmem>>, vector<1x128xf32>
    %64 = vector.broadcast %63 : vector<1x128xf32> to vector<8x128xf32>
    %65 = arith.mulf %62, %64 : vector<8x128xf32>
    %c56 = arith.constant 56 : index
    %c0_23 = arith.constant 0 : index
    %66 = vector.load %arg12[%c56, %c0_23] : memref<200x128xf32, #tpu.memory_space<vmem>>, vector<8x128xf32>
    tpu.vector_store %arg12[%c56, %c0_23], %65 {strides = array<i32>} : memref<200x128xf32, #tpu.memory_space<vmem>>, vector<8x128xf32>,
    %67 = vector.extract_strided_slice %10 {offsets = [0, 121], sizes = [8, 7], strides = [1, 1]} : vector<8x128xf32> to vector<8x7xf32>
    %68 = vector.extract_strided_slice %10 {offsets = [0, 0], sizes = [8, 121], strides = [1, 1]} : vector<8x128xf32> to vector<8x121xf32>
    %69 = tpu.concatenate %67, %68 in 1 : vector<8x7xf32>, vector<8x121xf32> -> vector<8x128xf32>
    %c8_24 = arith.constant 8 : index
    %c0_25 = arith.constant 0 : index
    %70 = vector.load %arg4[%c8_24, %c0_25] : memref<25x128xf32, #tpu.memory_space<vmem>>, vector<1x128xf32>
    %71 = vector.broadcast %70 : vector<1x128xf32> to vector<8x128xf32>
    %72 = arith.mulf %69, %71 : vector<8x128xf32>
    %c64 = arith.constant 64 : index
    %c0_26 = arith.constant 0 : index
    %73 = vector.load %arg12[%c64, %c0_26] : memref<200x128xf32, #tpu.memory_space<vmem>>, vector<8x128xf32>
    tpu.vector_store %arg12[%c64, %c0_26], %72 {strides = array<i32>} : memref<200x128xf32, #tpu.memory_space<vmem>>, vector<8x128xf32>,
    %74 = vector.extract_strided_slice %10 {offsets = [0, 122], sizes = [8, 6], strides = [1, 1]} : vector<8x128xf32> to vector<8x6xf32>
    %75 = vector.extract_strided_slice %10 {offsets = [0, 0], sizes = [8, 122], strides = [1, 1]} : vector<8x128xf32> to vector<8x122xf32>
    %76 = tpu.concatenate %74, %75 in 1 : vector<8x6xf32>, vector<8x122xf32> -> vector<8x128xf32>
    %c9 = arith.constant 9 : index
    %c0_27 = arith.constant 0 : index
    %77 = vector.load %arg4[%c9, %c0_27] : memref<25x128xf32, #tpu.memory_space<vmem>>, vector<1x128xf32>
    %78 = vector.broadcast %77 : vector<1x128xf32> to vector<8x128xf32>
    %79 = arith.mulf %76, %78 : vector<8x128xf32>
    %c72 = arith.constant 72 : index
    %c0_28 = arith.constant 0 : index
    %80 = vector.load %arg12[%c72, %c0_28] : memref<200x128xf32, #tpu.memory_space<vmem>>, vector<8x128xf32>
    tpu.vector_store %arg12[%c72, %c0_28], %79 {strides = array<i32>} : memref<200x128xf32, #tpu.memory_space<vmem>>, vector<8x128xf32>,
    %81 = vector.extract_strided_slice %10 {offsets = [0, 126], sizes = [8, 2], strides = [1, 1]} : vector<8x128xf32> to vector<8x2xf32>
    %82 = vector.extract_strided_slice %10 {offsets = [0, 0], sizes = [8, 126], strides = [1, 1]} : vector<8x128xf32> to vector<8x126xf32>
    %83 = tpu.concatenate %81, %82 in 1 : vector<8x2xf32>, vector<8x126xf32> -> vector<8x128xf32>
    %c10 = arith.constant 10 : index
    %c0_29 = arith.constant 0 : index
    %84 = vector.load %arg4[%c10, %c0_29] : memref<25x128xf32, #tpu.memory_space<vmem>>, vector<1x128xf32>
    %85 = vector.broadcast %84 : vector<1x128xf32> to vector<8x128xf32>
    %86 = arith.mulf %83, %85 : vector<8x128xf32>
    %c80 = arith.constant 80 : index
    %c0_30 = arith.constant 0 : index
    %87 = vector.load %arg12[%c80, %c0_30] : memref<200x128xf32, #tpu.memory_space<vmem>>, vector<8x128xf32>
    tpu.vector_store %arg12[%c80, %c0_30], %86 {strides = array<i32>} : memref<200x128xf32, #tpu.memory_space<vmem>>, vector<8x128xf32>,
    %88 = vector.extract_strided_slice %10 {offsets = [0, 127], sizes = [8, 1], strides = [1, 1]} : vector<8x128xf32> to vector<8x1xf32>
    %89 = vector.extract_strided_slice %10 {offsets = [0, 0], sizes = [8, 127], strides = [1, 1]} : vector<8x128xf32> to vector<8x127xf32>
    %90 = tpu.concatenate %88, %89 in 1 : vector<8x1xf32>, vector<8x127xf32> -> vector<8x128xf32>
    %c11 = arith.constant 11 : index
    %c0_31 = arith.constant 0 : index
    %91 = vector.load %arg4[%c11, %c0_31] : memref<25x128xf32, #tpu.memory_space<vmem>>, vector<1x128xf32>
    %92 = vector.broadcast %91 : vector<1x128xf32> to vector<8x128xf32>
    %93 = arith.mulf %90, %92 : vector<8x128xf32>
    %c88 = arith.constant 88 : index
    %c0_32 = arith.constant 0 : index
    %94 = vector.load %arg12[%c88, %c0_32] : memref<200x128xf32, #tpu.memory_space<vmem>>, vector<8x128xf32>
    tpu.vector_store %arg12[%c88, %c0_32], %93 {strides = array<i32>} : memref<200x128xf32, #tpu.memory_space<vmem>>, vector<8x128xf32>,
    %c12 = arith.constant 12 : index
    %c0_33 = arith.constant 0 : index
    %95 = vector.load %arg4[%c12, %c0_33] : memref<25x128xf32, #tpu.memory_space<vmem>>, vector<1x128xf32>
    %96 = vector.broadcast %95 : vector<1x128xf32> to vector<8x128xf32>
    %97 = arith.mulf %10, %96 : vector<8x128xf32>
    %c96 = arith.constant 96 : index
    %c0_34 = arith.constant 0 : index
    %98 = vector.load %arg12[%c96, %c0_34] : memref<200x128xf32, #tpu.memory_space<vmem>>, vector<8x128xf32>
    tpu.vector_store %arg12[%c96, %c0_34], %97 {strides = array<i32>} : memref<200x128xf32, #tpu.memory_space<vmem>>, vector<8x128xf32>,
    %99 = vector.extract_strided_slice %10 {offsets = [0, 1], sizes = [8, 127], strides = [1, 1]} : vector<8x128xf32> to vector<8x127xf32>
    %100 = vector.extract_strided_slice %10 {offsets = [0, 0], sizes = [8, 1], strides = [1, 1]} : vector<8x128xf32> to vector<8x1xf32>
    %101 = tpu.concatenate %99, %100 in 1 : vector<8x127xf32>, vector<8x1xf32> -> vector<8x128xf32>
    %c13 = arith.constant 13 : index
    %c0_35 = arith.constant 0 : index
    %102 = vector.load %arg4[%c13, %c0_35] : memref<25x128xf32, #tpu.memory_space<vmem>>, vector<1x128xf32>
    %103 = vector.broadcast %102 : vector<1x128xf32> to vector<8x128xf32>
    %104 = arith.mulf %101, %103 : vector<8x128xf32>
    %c104 = arith.constant 104 : index
    %c0_36 = arith.constant 0 : index
    %105 = vector.load %arg12[%c104, %c0_36] : memref<200x128xf32, #tpu.memory_space<vmem>>, vector<8x128xf32>
    tpu.vector_store %arg12[%c104, %c0_36], %104 {strides = array<i32>} : memref<200x128xf32, #tpu.memory_space<vmem>>, vector<8x128xf32>,
    %106 = vector.extract_strided_slice %10 {offsets = [0, 2], sizes = [8, 126], strides = [1, 1]} : vector<8x128xf32> to vector<8x126xf32>
    %107 = vector.extract_strided_slice %10 {offsets = [0, 0], sizes = [8, 2], strides = [1, 1]} : vector<8x128xf32> to vector<8x2xf32>
    %108 = tpu.concatenate %106, %107 in 1 : vector<8x126xf32>, vector<8x2xf32> -> vector<8x128xf32>
    %c14 = arith.constant 14 : index
    %c0_37 = arith.constant 0 : index
    %109 = vector.load %arg4[%c14, %c0_37] : memref<25x128xf32, #tpu.memory_space<vmem>>, vector<1x128xf32>
    %110 = vector.broadcast %109 : vector<1x128xf32> to vector<8x128xf32>
    %111 = arith.mulf %108, %110 : vector<8x128xf32>
    %c112 = arith.constant 112 : index
    %c0_38 = arith.constant 0 : index
    %112 = vector.load %arg12[%c112, %c0_38] : memref<200x128xf32, #tpu.memory_space<vmem>>, vector<8x128xf32>
    tpu.vector_store %arg12[%c112, %c0_38], %111 {strides = array<i32>} : memref<200x128xf32, #tpu.memory_space<vmem>>, vector<8x128xf32>,
    %113 = vector.extract_strided_slice %10 {offsets = [0, 6], sizes = [8, 122], strides = [1, 1]} : vector<8x128xf32> to vector<8x122xf32>
    %114 = vector.extract_strided_slice %10 {offsets = [0, 0], sizes = [8, 6], strides = [1, 1]} : vector<8x128xf32> to vector<8x6xf32>
    %115 = tpu.concatenate %113, %114 in 1 : vector<8x122xf32>, vector<8x6xf32> -> vector<8x128xf32>
    %c15 = arith.constant 15 : index
    %c0_39 = arith.constant 0 : index
    %116 = vector.load %arg4[%c15, %c0_39] : memref<25x128xf32, #tpu.memory_space<vmem>>, vector<1x128xf32>
    %117 = vector.broadcast %116 : vector<1x128xf32> to vector<8x128xf32>
    %118 = arith.mulf %115, %117 : vector<8x128xf32>
    %c120 = arith.constant 120 : index
    %c0_40 = arith.constant 0 : index
    %119 = vector.load %arg12[%c120, %c0_40] : memref<200x128xf32, #tpu.memory_space<vmem>>, vector<8x128xf32>
    tpu.vector_store %arg12[%c120, %c0_40], %118 {strides = array<i32>} : memref<200x128xf32, #tpu.memory_space<vmem>>, vector<8x128xf32>,
    %120 = vector.extract_strided_slice %10 {offsets = [0, 7], sizes = [8, 121], strides = [1, 1]} : vector<8x128xf32> to vector<8x121xf32>
    %121 = vector.extract_strided_slice %10 {offsets = [0, 0], sizes = [8, 7], strides = [1, 1]} : vector<8x128xf32> to vector<8x7xf32>
    %122 = tpu.concatenate %120, %121 in 1 : vector<8x121xf32>, vector<8x7xf32> -> vector<8x128xf32>
    %c16_41 = arith.constant 16 : index
    %c0_42 = arith.constant 0 : index
    %123 = vector.load %arg4[%c16_41, %c0_42] : memref<25x128xf32, #tpu.memory_space<vmem>>, vector<1x128xf32>
    %124 = vector.broadcast %123 : vector<1x128xf32> to vector<8x128xf32>
    %125 = arith.mulf %122, %124 : vector<8x128xf32>
    %c128 = arith.constant 128 : index
    %c0_43 = arith.constant 0 : index
    %126 = vector.load %arg12[%c128, %c0_43] : memref<200x128xf32, #tpu.memory_space<vmem>>, vector<8x128xf32>
    tpu.vector_store %arg12[%c128, %c0_43], %125 {strides = array<i32>} : memref<200x128xf32, #tpu.memory_space<vmem>>, vector<8x128xf32>,
    %127 = vector.extract_strided_slice %10 {offsets = [0, 8], sizes = [8, 120], strides = [1, 1]} : vector<8x128xf32> to vector<8x120xf32>
    %128 = vector.extract_strided_slice %10 {offsets = [0, 0], sizes = [8, 8], strides = [1, 1]} : vector<8x128xf32> to vector<8x8xf32>
    %129 = tpu.concatenate %127, %128 in 1 : vector<8x120xf32>, vector<8x8xf32> -> vector<8x128xf32>
    %c17 = arith.constant 17 : index
    %c0_44 = arith.constant 0 : index
    %130 = vector.load %arg4[%c17, %c0_44] : memref<25x128xf32, #tpu.memory_space<vmem>>, vector<1x128xf32>
    %131 = vector.broadcast %130 : vector<1x128xf32> to vector<8x128xf32>
    %132 = arith.mulf %129, %131 : vector<8x128xf32>
    %c136 = arith.constant 136 : index
    %c0_45 = arith.constant 0 : index
    %133 = vector.load %arg12[%c136, %c0_45] : memref<200x128xf32, #tpu.memory_space<vmem>>, vector<8x128xf32>
    tpu.vector_store %arg12[%c136, %c0_45], %132 {strides = array<i32>} : memref<200x128xf32, #tpu.memory_space<vmem>>, vector<8x128xf32>,
    %134 = vector.extract_strided_slice %10 {offsets = [0, 9], sizes = [8, 119], strides = [1, 1]} : vector<8x128xf32> to vector<8x119xf32>
    %135 = vector.extract_strided_slice %10 {offsets = [0, 0], sizes = [8, 9], strides = [1, 1]} : vector<8x128xf32> to vector<8x9xf32>
    %136 = tpu.concatenate %134, %135 in 1 : vector<8x119xf32>, vector<8x9xf32> -> vector<8x128xf32>
    %c18 = arith.constant 18 : index
    %c0_46 = arith.constant 0 : index
    %137 = vector.load %arg4[%c18, %c0_46] : memref<25x128xf32, #tpu.memory_space<vmem>>, vector<1x128xf32>
    %138 = vector.broadcast %137 : vector<1x128xf32> to vector<8x128xf32>
    %139 = arith.mulf %136, %138 : vector<8x128xf32>
    %c144 = arith.constant 144 : index
    %c0_47 = arith.constant 0 : index
    %140 = vector.load %arg12[%c144, %c0_47] : memref<200x128xf32, #tpu.memory_space<vmem>>, vector<8x128xf32>
    tpu.vector_store %arg12[%c144, %c0_47], %139 {strides = array<i32>} : memref<200x128xf32, #tpu.memory_space<vmem>>, vector<8x128xf32>,
    %141 = vector.extract_strided_slice %10 {offsets = [0, 10], sizes = [8, 118], strides = [1, 1]} : vector<8x128xf32> to vector<8x118xf32>
    %142 = vector.extract_strided_slice %10 {offsets = [0, 0], sizes = [8, 10], strides = [1, 1]} : vector<8x128xf32> to vector<8x10xf32>
    %143 = tpu.concatenate %141, %142 in 1 : vector<8x118xf32>, vector<8x10xf32> -> vector<8x128xf32>
    %c19 = arith.constant 19 : index
    %c0_48 = arith.constant 0 : index
    %144 = vector.load %arg4[%c19, %c0_48] : memref<25x128xf32, #tpu.memory_space<vmem>>, vector<1x128xf32>
    %145 = vector.broadcast %144 : vector<1x128xf32> to vector<8x128xf32>
    %146 = arith.mulf %143, %145 : vector<8x128xf32>
    %c152 = arith.constant 152 : index
    %c0_49 = arith.constant 0 : index
    %147 = vector.load %arg12[%c152, %c0_49] : memref<200x128xf32, #tpu.memory_space<vmem>>, vector<8x128xf32>
    tpu.vector_store %arg12[%c152, %c0_49], %146 {strides = array<i32>} : memref<200x128xf32, #tpu.memory_space<vmem>>, vector<8x128xf32>,
    %148 = vector.extract_strided_slice %10 {offsets = [0, 14], sizes = [8, 114], strides = [1, 1]} : vector<8x128xf32> to vector<8x114xf32>
    %149 = vector.extract_strided_slice %10 {offsets = [0, 0], sizes = [8, 14], strides = [1, 1]} : vector<8x128xf32> to vector<8x14xf32>
    %150 = tpu.concatenate %148, %149 in 1 : vector<8x114xf32>, vector<8x14xf32> -> vector<8x128xf32>
    %c20 = arith.constant 20 : index
    %c0_50 = arith.constant 0 : index
    %151 = vector.load %arg4[%c20, %c0_50] : memref<25x128xf32, #tpu.memory_space<vmem>>, vector<1x128xf32>
    %152 = vector.broadcast %151 : vector<1x128xf32> to vector<8x128xf32>
    %153 = arith.mulf %150, %152 : vector<8x128xf32>
    %c160 = arith.constant 160 : index
    %c0_51 = arith.constant 0 : index
    %154 = vector.load %arg12[%c160, %c0_51] : memref<200x128xf32, #tpu.memory_space<vmem>>, vector<8x128xf32>
    tpu.vector_store %arg12[%c160, %c0_51], %153 {strides = array<i32>} : memref<200x128xf32, #tpu.memory_space<vmem>>, vector<8x128xf32>,
    %155 = vector.extract_strided_slice %10 {offsets = [0, 15], sizes = [8, 113], strides = [1, 1]} : vector<8x128xf32> to vector<8x113xf32>
    %156 = vector.extract_strided_slice %10 {offsets = [0, 0], sizes = [8, 15], strides = [1, 1]} : vector<8x128xf32> to vector<8x15xf32>
    %157 = tpu.concatenate %155, %156 in 1 : vector<8x113xf32>, vector<8x15xf32> -> vector<8x128xf32>
    %c21 = arith.constant 21 : index
    %c0_52 = arith.constant 0 : index
    %158 = vector.load %arg4[%c21, %c0_52] : memref<25x128xf32, #tpu.memory_space<vmem>>, vector<1x128xf32>
    %159 = vector.broadcast %158 : vector<1x128xf32> to vector<8x128xf32>
    %160 = arith.mulf %157, %159 : vector<8x128xf32>
    %c168 = arith.constant 168 : index
    %c0_53 = arith.constant 0 : index
    %161 = vector.load %arg12[%c168, %c0_53] : memref<200x128xf32, #tpu.memory_space<vmem>>, vector<8x128xf32>
    tpu.vector_store %arg12[%c168, %c0_53], %160 {strides = array<i32>} : memref<200x128xf32, #tpu.memory_space<vmem>>, vector<8x128xf32>,
    %162 = vector.extract_strided_slice %10 {offsets = [0, 16], sizes = [8, 112], strides = [1, 1]} : vector<8x128xf32> to vector<8x112xf32>
    %163 = vector.extract_strided_slice %10 {offsets = [0, 0], sizes = [8, 16], strides = [1, 1]} : vector<8x128xf32> to vector<8x16xf32>
    %164 = tpu.concatenate %162, %163 in 1 : vector<8x112xf32>, vector<8x16xf32> -> vector<8x128xf32>
    %c22 = arith.constant 22 : index
    %c0_54 = arith.constant 0 : index
    %165 = vector.load %arg4[%c22, %c0_54] : memref<25x128xf32, #tpu.memory_space<vmem>>, vector<1x128xf32>
    %166 = vector.broadcast %165 : vector<1x128xf32> to vector<8x128xf32>
    %167 = arith.mulf %164, %166 : vector<8x128xf32>
    %c176 = arith.constant 176 : index
    %c0_55 = arith.constant 0 : index
    %168 = vector.load %arg12[%c176, %c0_55] : memref<200x128xf32, #tpu.memory_space<vmem>>, vector<8x128xf32>
    tpu.vector_store %arg12[%c176, %c0_55], %167 {strides = array<i32>} : memref<200x128xf32, #tpu.memory_space<vmem>>, vector<8x128xf32>,
    %169 = vector.extract_strided_slice %10 {offsets = [0, 17], sizes = [8, 111], strides = [1, 1]} : vector<8x128xf32> to vector<8x111xf32>
    %170 = vector.extract_strided_slice %10 {offsets = [0, 0], sizes = [8, 17], strides = [1, 1]} : vector<8x128xf32> to vector<8x17xf32>
    %171 = tpu.concatenate %169, %170 in 1 : vector<8x111xf32>, vector<8x17xf32> -> vector<8x128xf32>
    %c23 = arith.constant 23 : index
    %c0_56 = arith.constant 0 : index
    %172 = vector.load %arg4[%c23, %c0_56] : memref<25x128xf32, #tpu.memory_space<vmem>>, vector<1x128xf32>
    %173 = vector.broadcast %172 : vector<1x128xf32> to vector<8x128xf32>
    %174 = arith.mulf %171, %173 : vector<8x128xf32>
    %c184 = arith.constant 184 : index
    %c0_57 = arith.constant 0 : index
    %175 = vector.load %arg12[%c184, %c0_57] : memref<200x128xf32, #tpu.memory_space<vmem>>, vector<8x128xf32>
    tpu.vector_store %arg12[%c184, %c0_57], %174 {strides = array<i32>} : memref<200x128xf32, #tpu.memory_space<vmem>>, vector<8x128xf32>,
    %176 = vector.extract_strided_slice %10 {offsets = [0, 18], sizes = [8, 110], strides = [1, 1]} : vector<8x128xf32> to vector<8x110xf32>
    %177 = vector.extract_strided_slice %10 {offsets = [0, 0], sizes = [8, 18], strides = [1, 1]} : vector<8x128xf32> to vector<8x18xf32>
    %178 = tpu.concatenate %176, %177 in 1 : vector<8x110xf32>, vector<8x18xf32> -> vector<8x128xf32>
    %c24_58 = arith.constant 24 : index
    %c0_59 = arith.constant 0 : index
    %179 = vector.load %arg4[%c24_58, %c0_59] : memref<25x128xf32, #tpu.memory_space<vmem>>, vector<1x128xf32>
    %180 = vector.broadcast %179 : vector<1x128xf32> to vector<8x128xf32>
    %181 = arith.mulf %178, %180 : vector<8x128xf32>
    %c192 = arith.constant 192 : index
    %c0_60 = arith.constant 0 : index
    %182 = vector.load %arg12[%c192, %c0_60] : memref<200x128xf32, #tpu.memory_space<vmem>>, vector<8x128xf32>
    tpu.vector_store %arg12[%c192, %c0_60], %181 {strides = array<i32>} : memref<200x128xf32, #tpu.memory_space<vmem>>, vector<8x128xf32>,
    %c0_61 = arith.constant 0 : index
    %c0_62 = arith.constant 0 : index
    %183 = vector.load %arg5[%c0_61, %c0_62] : memref<8x200xf32, #tpu.memory_space<vmem>>, vector<8x200xf32>
    %c0_63 = arith.constant 0 : index
    %c0_64 = arith.constant 0 : index
    %184 = vector.load %arg12[%c0_63, %c0_64] : memref<200x128xf32, #tpu.memory_space<vmem>>, vector<200x128xf32>
    %cst_65 = arith.constant dense<0.000000e+00> : vector<8x128xf32>
    %185 = tpu.matmul %183, %184, %cst_65 {dimension_numbers = #tpu.dot_dimension_numbers<[1], [0], [0], [1], [0, 0, 1, 1], [], []>} : vector<8x200xf32>, vector<200x128xf32>, vector<8x128xf32> -> vector<8x128xf32>
    %c0_66 = arith.constant 0 : index
    %c0_67 = arith.constant 0 : index
    %186 = vector.load %arg6[%c0_66, %c0_67] : memref<8x1xf32, #tpu.memory_space<vmem>>, vector<8x1xf32>
    %187 = vector.broadcast %186 : vector<8x1xf32> to vector<8x128xf32>
    %188 = arith.mulf %185, %187 : vector<8x128xf32>
    %c0_68 = arith.constant 0 : index
    %c0_69 = arith.constant 0 : index
    %189 = vector.load %arg7[%c0_68, %c0_69] : memref<8x1xf32, #tpu.memory_space<vmem>>, vector<8x1xf32>
    %190 = vector.broadcast %189 : vector<8x1xf32> to vector<8x128xf32>
    %191 = arith.addf %188, %190 : vector<8x128xf32>
    %cst_70 = arith.constant 0.000000e+00 : f32
    %192 = vector.broadcast %cst_70 : f32 to vector<8x128xf32>
    %193 = arith.maximumf %191, %192 : vector<8x128xf32>
    %194 = vector.extract_strided_slice %193 {offsets = [0, 110], sizes = [8, 18], strides = [1, 1]} : vector<8x128xf32> to vector<8x18xf32>
    %195 = vector.extract_strided_slice %193 {offsets = [0, 0], sizes = [8, 110], strides = [1, 1]} : vector<8x128xf32> to vector<8x110xf32>
    %196 = tpu.concatenate %194, %195 in 1 : vector<8x18xf32>, vector<8x110xf32> -> vector<8x128xf32>
    %c0_71 = arith.constant 0 : index
    %c0_72 = arith.constant 0 : index
    %197 = vector.load %arg4[%c0_71, %c0_72] : memref<25x128xf32, #tpu.memory_space<vmem>>, vector<1x128xf32>
    %198 = vector.broadcast %197 : vector<1x128xf32> to vector<8x128xf32>
    %199 = arith.mulf %196, %198 : vector<8x128xf32>
    %c0_73 = arith.constant 0 : index
    %c0_74 = arith.constant 0 : index
    %200 = vector.load %arg12[%c0_73, %c0_74] : memref<200x128xf32, #tpu.memory_space<vmem>>, vector<8x128xf32>
    tpu.vector_store %arg12[%c0_73, %c0_74], %199 {strides = array<i32>} : memref<200x128xf32, #tpu.memory_space<vmem>>, vector<8x128xf32>,
    %201 = vector.extract_strided_slice %193 {offsets = [0, 111], sizes = [8, 17], strides = [1, 1]} : vector<8x128xf32> to vector<8x17xf32>
    %202 = vector.extract_strided_slice %193 {offsets = [0, 0], sizes = [8, 111], strides = [1, 1]} : vector<8x128xf32> to vector<8x111xf32>
    %203 = tpu.concatenate %201, %202 in 1 : vector<8x17xf32>, vector<8x111xf32> -> vector<8x128xf32>
    %c1_75 = arith.constant 1 : index
    %c0_76 = arith.constant 0 : index
    %204 = vector.load %arg4[%c1_75, %c0_76] : memref<25x128xf32, #tpu.memory_space<vmem>>, vector<1x128xf32>
    %205 = vector.broadcast %204 : vector<1x128xf32> to vector<8x128xf32>
    %206 = arith.mulf %203, %205 : vector<8x128xf32>
    %c8_77 = arith.constant 8 : index
    %c0_78 = arith.constant 0 : index
    %207 = vector.load %arg12[%c8_77, %c0_78] : memref<200x128xf32, #tpu.memory_space<vmem>>, vector<8x128xf32>
    tpu.vector_store %arg12[%c8_77, %c0_78], %206 {strides = array<i32>} : memref<200x128xf32, #tpu.memory_space<vmem>>, vector<8x128xf32>,
    %208 = vector.extract_strided_slice %193 {offsets = [0, 112], sizes = [8, 16], strides = [1, 1]} : vector<8x128xf32> to vector<8x16xf32>
    %209 = vector.extract_strided_slice %193 {offsets = [0, 0], sizes = [8, 112], strides = [1, 1]} : vector<8x128xf32> to vector<8x112xf32>
    %210 = tpu.concatenate %208, %209 in 1 : vector<8x16xf32>, vector<8x112xf32> -> vector<8x128xf32>
    %c2_79 = arith.constant 2 : index
    %c0_80 = arith.constant 0 : index
    %211 = vector.load %arg4[%c2_79, %c0_80] : memref<25x128xf32, #tpu.memory_space<vmem>>, vector<1x128xf32>
    %212 = vector.broadcast %211 : vector<1x128xf32> to vector<8x128xf32>
    %213 = arith.mulf %210, %212 : vector<8x128xf32>
    %c16_81 = arith.constant 16 : index
    %c0_82 = arith.constant 0 : index
    %214 = vector.load %arg12[%c16_81, %c0_82] : memref<200x128xf32, #tpu.memory_space<vmem>>, vector<8x128xf32>
    tpu.vector_store %arg12[%c16_81, %c0_82], %213 {strides = array<i32>} : memref<200x128xf32, #tpu.memory_space<vmem>>, vector<8x128xf32>,
    %215 = vector.extract_strided_slice %193 {offsets = [0, 113], sizes = [8, 15], strides = [1, 1]} : vector<8x128xf32> to vector<8x15xf32>
    %216 = vector.extract_strided_slice %193 {offsets = [0, 0], sizes = [8, 113], strides = [1, 1]} : vector<8x128xf32> to vector<8x113xf32>
    %217 = tpu.concatenate %215, %216 in 1 : vector<8x15xf32>, vector<8x113xf32> -> vector<8x128xf32>
    %c3_83 = arith.constant 3 : index
    %c0_84 = arith.constant 0 : index
    %218 = vector.load %arg4[%c3_83, %c0_84] : memref<25x128xf32, #tpu.memory_space<vmem>>, vector<1x128xf32>
    %219 = vector.broadcast %218 : vector<1x128xf32> to vector<8x128xf32>
    %220 = arith.mulf %217, %219 : vector<8x128xf32>
    %c24_85 = arith.constant 24 : index
    %c0_86 = arith.constant 0 : index
    %221 = vector.load %arg12[%c24_85, %c0_86] : memref<200x128xf32, #tpu.memory_space<vmem>>, vector<8x128xf32>
    tpu.vector_store %arg12[%c24_85, %c0_86], %220 {strides = array<i32>} : memref<200x128xf32, #tpu.memory_space<vmem>>, vector<8x128xf32>,
    %222 = vector.extract_strided_slice %193 {offsets = [0, 114], sizes = [8, 14], strides = [1, 1]} : vector<8x128xf32> to vector<8x14xf32>
    %223 = vector.extract_strided_slice %193 {offsets = [0, 0], sizes = [8, 114], strides = [1, 1]} : vector<8x128xf32> to vector<8x114xf32>
    %224 = tpu.concatenate %222, %223 in 1 : vector<8x14xf32>, vector<8x114xf32> -> vector<8x128xf32>
    %c4_87 = arith.constant 4 : index
    %c0_88 = arith.constant 0 : index
    %225 = vector.load %arg4[%c4_87, %c0_88] : memref<25x128xf32, #tpu.memory_space<vmem>>, vector<1x128xf32>
    %226 = vector.broadcast %225 : vector<1x128xf32> to vector<8x128xf32>
    %227 = arith.mulf %224, %226 : vector<8x128xf32>
    %c32_89 = arith.constant 32 : index
    %c0_90 = arith.constant 0 : index
    %228 = vector.load %arg12[%c32_89, %c0_90] : memref<200x128xf32, #tpu.memory_space<vmem>>, vector<8x128xf32>
    tpu.vector_store %arg12[%c32_89, %c0_90], %227 {strides = array<i32>} : memref<200x128xf32, #tpu.memory_space<vmem>>, vector<8x128xf32>,
    %229 = vector.extract_strided_slice %193 {offsets = [0, 118], sizes = [8, 10], strides = [1, 1]} : vector<8x128xf32> to vector<8x10xf32>
    %230 = vector.extract_strided_slice %193 {offsets = [0, 0], sizes = [8, 118], strides = [1, 1]} : vector<8x128xf32> to vector<8x118xf32>
    %231 = tpu.concatenate %229, %230 in 1 : vector<8x10xf32>, vector<8x118xf32> -> vector<8x128xf32>
    %c5_91 = arith.constant 5 : index
    %c0_92 = arith.constant 0 : index
    %232 = vector.load %arg4[%c5_91, %c0_92] : memref<25x128xf32, #tpu.memory_space<vmem>>, vector<1x128xf32>
    %233 = vector.broadcast %232 : vector<1x128xf32> to vector<8x128xf32>
    %234 = arith.mulf %231, %233 : vector<8x128xf32>
    %c40_93 = arith.constant 40 : index
    %c0_94 = arith.constant 0 : index
    %235 = vector.load %arg12[%c40_93, %c0_94] : memref<200x128xf32, #tpu.memory_space<vmem>>, vector<8x128xf32>
    tpu.vector_store %arg12[%c40_93, %c0_94], %234 {strides = array<i32>} : memref<200x128xf32, #tpu.memory_space<vmem>>, vector<8x128xf32>,
    %236 = vector.extract_strided_slice %193 {offsets = [0, 119], sizes = [8, 9], strides = [1, 1]} : vector<8x128xf32> to vector<8x9xf32>
    %237 = vector.extract_strided_slice %193 {offsets = [0, 0], sizes = [8, 119], strides = [1, 1]} : vector<8x128xf32> to vector<8x119xf32>
    %238 = tpu.concatenate %236, %237 in 1 : vector<8x9xf32>, vector<8x119xf32> -> vector<8x128xf32>
    %c6_95 = arith.constant 6 : index
    %c0_96 = arith.constant 0 : index
    %239 = vector.load %arg4[%c6_95, %c0_96] : memref<25x128xf32, #tpu.memory_space<vmem>>, vector<1x128xf32>
    %240 = vector.broadcast %239 : vector<1x128xf32> to vector<8x128xf32>
    %241 = arith.mulf %238, %240 : vector<8x128xf32>
    %c48_97 = arith.constant 48 : index
    %c0_98 = arith.constant 0 : index
    %242 = vector.load %arg12[%c48_97, %c0_98] : memref<200x128xf32, #tpu.memory_space<vmem>>, vector<8x128xf32>
    tpu.vector_store %arg12[%c48_97, %c0_98], %241 {strides = array<i32>} : memref<200x128xf32, #tpu.memory_space<vmem>>, vector<8x128xf32>,
    %243 = vector.extract_strided_slice %193 {offsets = [0, 120], sizes = [8, 8], strides = [1, 1]} : vector<8x128xf32> to vector<8x8xf32>
    %244 = vector.extract_strided_slice %193 {offsets = [0, 0], sizes = [8, 120], strides = [1, 1]} : vector<8x128xf32> to vector<8x120xf32>
    %245 = tpu.concatenate %243, %244 in 1 : vector<8x8xf32>, vector<8x120xf32> -> vector<8x128xf32>
    %c7_99 = arith.constant 7 : index
    %c0_100 = arith.constant 0 : index
    %246 = vector.load %arg4[%c7_99, %c0_100] : memref<25x128xf32, #tpu.memory_space<vmem>>, vector<1x128xf32>
    %247 = vector.broadcast %246 : vector<1x128xf32> to vector<8x128xf32>
    %248 = arith.mulf %245, %247 : vector<8x128xf32>
    %c56_101 = arith.constant 56 : index
    %c0_102 = arith.constant 0 : index
    %249 = vector.load %arg12[%c56_101, %c0_102] : memref<200x128xf32, #tpu.memory_space<vmem>>, vector<8x128xf32>
    tpu.vector_store %arg12[%c56_101, %c0_102], %248 {strides = array<i32>} : memref<200x128xf32, #tpu.memory_space<vmem>>, vector<8x128xf32>,
    %250 = vector.extract_strided_slice %193 {offsets = [0, 121], sizes = [8, 7], strides = [1, 1]} : vector<8x128xf32> to vector<8x7xf32>
    %251 = vector.extract_strided_slice %193 {offsets = [0, 0], sizes = [8, 121], strides = [1, 1]} : vector<8x128xf32> to vector<8x121xf32>
    %252 = tpu.concatenate %250, %251 in 1 : vector<8x7xf32>, vector<8x121xf32> -> vector<8x128xf32>
    %c8_103 = arith.constant 8 : index
    %c0_104 = arith.constant 0 : index
    %253 = vector.load %arg4[%c8_103, %c0_104] : memref<25x128xf32, #tpu.memory_space<vmem>>, vector<1x128xf32>
    %254 = vector.broadcast %253 : vector<1x128xf32> to vector<8x128xf32>
    %255 = arith.mulf %252, %254 : vector<8x128xf32>
    %c64_105 = arith.constant 64 : index
    %c0_106 = arith.constant 0 : index
    %256 = vector.load %arg12[%c64_105, %c0_106] : memref<200x128xf32, #tpu.memory_space<vmem>>, vector<8x128xf32>
    tpu.vector_store %arg12[%c64_105, %c0_106], %255 {strides = array<i32>} : memref<200x128xf32, #tpu.memory_space<vmem>>, vector<8x128xf32>,
    %257 = vector.extract_strided_slice %193 {offsets = [0, 122], sizes = [8, 6], strides = [1, 1]} : vector<8x128xf32> to vector<8x6xf32>
    %258 = vector.extract_strided_slice %193 {offsets = [0, 0], sizes = [8, 122], strides = [1, 1]} : vector<8x128xf32> to vector<8x122xf32>
    %259 = tpu.concatenate %257, %258 in 1 : vector<8x6xf32>, vector<8x122xf32> -> vector<8x128xf32>
    %c9_107 = arith.constant 9 : index
    %c0_108 = arith.constant 0 : index
    %260 = vector.load %arg4[%c9_107, %c0_108] : memref<25x128xf32, #tpu.memory_space<vmem>>, vector<1x128xf32>
    %261 = vector.broadcast %260 : vector<1x128xf32> to vector<8x128xf32>
    %262 = arith.mulf %259, %261 : vector<8x128xf32>
    %c72_109 = arith.constant 72 : index
    %c0_110 = arith.constant 0 : index
    %263 = vector.load %arg12[%c72_109, %c0_110] : memref<200x128xf32, #tpu.memory_space<vmem>>, vector<8x128xf32>
    tpu.vector_store %arg12[%c72_109, %c0_110], %262 {strides = array<i32>} : memref<200x128xf32, #tpu.memory_space<vmem>>, vector<8x128xf32>,
    %264 = vector.extract_strided_slice %193 {offsets = [0, 126], sizes = [8, 2], strides = [1, 1]} : vector<8x128xf32> to vector<8x2xf32>
    %265 = vector.extract_strided_slice %193 {offsets = [0, 0], sizes = [8, 126], strides = [1, 1]} : vector<8x128xf32> to vector<8x126xf32>
    %266 = tpu.concatenate %264, %265 in 1 : vector<8x2xf32>, vector<8x126xf32> -> vector<8x128xf32>
    %c10_111 = arith.constant 10 : index
    %c0_112 = arith.constant 0 : index
    %267 = vector.load %arg4[%c10_111, %c0_112] : memref<25x128xf32, #tpu.memory_space<vmem>>, vector<1x128xf32>
    %268 = vector.broadcast %267 : vector<1x128xf32> to vector<8x128xf32>
    %269 = arith.mulf %266, %268 : vector<8x128xf32>
    %c80_113 = arith.constant 80 : index
    %c0_114 = arith.constant 0 : index
    %270 = vector.load %arg12[%c80_113, %c0_114] : memref<200x128xf32, #tpu.memory_space<vmem>>, vector<8x128xf32>
    tpu.vector_store %arg12[%c80_113, %c0_114], %269 {strides = array<i32>} : memref<200x128xf32, #tpu.memory_space<vmem>>, vector<8x128xf32>,
    %271 = vector.extract_strided_slice %193 {offsets = [0, 127], sizes = [8, 1], strides = [1, 1]} : vector<8x128xf32> to vector<8x1xf32>
    %272 = vector.extract_strided_slice %193 {offsets = [0, 0], sizes = [8, 127], strides = [1, 1]} : vector<8x128xf32> to vector<8x127xf32>
    %273 = tpu.concatenate %271, %272 in 1 : vector<8x1xf32>, vector<8x127xf32> -> vector<8x128xf32>
    %c11_115 = arith.constant 11 : index
    %c0_116 = arith.constant 0 : index
    %274 = vector.load %arg4[%c11_115, %c0_116] : memref<25x128xf32, #tpu.memory_space<vmem>>, vector<1x128xf32>
    %275 = vector.broadcast %274 : vector<1x128xf32> to vector<8x128xf32>
    %276 = arith.mulf %273, %275 : vector<8x128xf32>
    %c88_117 = arith.constant 88 : index
    %c0_118 = arith.constant 0 : index
    %277 = vector.load %arg12[%c88_117, %c0_118] : memref<200x128xf32, #tpu.memory_space<vmem>>, vector<8x128xf32>
    tpu.vector_store %arg12[%c88_117, %c0_118], %276 {strides = array<i32>} : memref<200x128xf32, #tpu.memory_space<vmem>>, vector<8x128xf32>,
    %c12_119 = arith.constant 12 : index
    %c0_120 = arith.constant 0 : index
    %278 = vector.load %arg4[%c12_119, %c0_120] : memref<25x128xf32, #tpu.memory_space<vmem>>, vector<1x128xf32>
    %279 = vector.broadcast %278 : vector<1x128xf32> to vector<8x128xf32>
    %280 = arith.mulf %193, %279 : vector<8x128xf32>
    %c96_121 = arith.constant 96 : index
    %c0_122 = arith.constant 0 : index
    %281 = vector.load %arg12[%c96_121, %c0_122] : memref<200x128xf32, #tpu.memory_space<vmem>>, vector<8x128xf32>
    tpu.vector_store %arg12[%c96_121, %c0_122], %280 {strides = array<i32>} : memref<200x128xf32, #tpu.memory_space<vmem>>, vector<8x128xf32>,
    %282 = vector.extract_strided_slice %193 {offsets = [0, 1], sizes = [8, 127], strides = [1, 1]} : vector<8x128xf32> to vector<8x127xf32>
    %283 = vector.extract_strided_slice %193 {offsets = [0, 0], sizes = [8, 1], strides = [1, 1]} : vector<8x128xf32> to vector<8x1xf32>
    %284 = tpu.concatenate %282, %283 in 1 : vector<8x127xf32>, vector<8x1xf32> -> vector<8x128xf32>
    %c13_123 = arith.constant 13 : index
    %c0_124 = arith.constant 0 : index
    %285 = vector.load %arg4[%c13_123, %c0_124] : memref<25x128xf32, #tpu.memory_space<vmem>>, vector<1x128xf32>
    %286 = vector.broadcast %285 : vector<1x128xf32> to vector<8x128xf32>
    %287 = arith.mulf %284, %286 : vector<8x128xf32>
    %c104_125 = arith.constant 104 : index
    %c0_126 = arith.constant 0 : index
    %288 = vector.load %arg12[%c104_125, %c0_126] : memref<200x128xf32, #tpu.memory_space<vmem>>, vector<8x128xf32>
    tpu.vector_store %arg12[%c104_125, %c0_126], %287 {strides = array<i32>} : memref<200x128xf32, #tpu.memory_space<vmem>>, vector<8x128xf32>,
    %289 = vector.extract_strided_slice %193 {offsets = [0, 2], sizes = [8, 126], strides = [1, 1]} : vector<8x128xf32> to vector<8x126xf32>
    %290 = vector.extract_strided_slice %193 {offsets = [0, 0], sizes = [8, 2], strides = [1, 1]} : vector<8x128xf32> to vector<8x2xf32>
    %291 = tpu.concatenate %289, %290 in 1 : vector<8x126xf32>, vector<8x2xf32> -> vector<8x128xf32>
    %c14_127 = arith.constant 14 : index
    %c0_128 = arith.constant 0 : index
    %292 = vector.load %arg4[%c14_127, %c0_128] : memref<25x128xf32, #tpu.memory_space<vmem>>, vector<1x128xf32>
    %293 = vector.broadcast %292 : vector<1x128xf32> to vector<8x128xf32>
    %294 = arith.mulf %291, %293 : vector<8x128xf32>
    %c112_129 = arith.constant 112 : index
    %c0_130 = arith.constant 0 : index
    %295 = vector.load %arg12[%c112_129, %c0_130] : memref<200x128xf32, #tpu.memory_space<vmem>>, vector<8x128xf32>
    tpu.vector_store %arg12[%c112_129, %c0_130], %294 {strides = array<i32>} : memref<200x128xf32, #tpu.memory_space<vmem>>, vector<8x128xf32>,
    %296 = vector.extract_strided_slice %193 {offsets = [0, 6], sizes = [8, 122], strides = [1, 1]} : vector<8x128xf32> to vector<8x122xf32>
    %297 = vector.extract_strided_slice %193 {offsets = [0, 0], sizes = [8, 6], strides = [1, 1]} : vector<8x128xf32> to vector<8x6xf32>
    %298 = tpu.concatenate %296, %297 in 1 : vector<8x122xf32>, vector<8x6xf32> -> vector<8x128xf32>
    %c15_131 = arith.constant 15 : index
    %c0_132 = arith.constant 0 : index
    %299 = vector.load %arg4[%c15_131, %c0_132] : memref<25x128xf32, #tpu.memory_space<vmem>>, vector<1x128xf32>
    %300 = vector.broadcast %299 : vector<1x128xf32> to vector<8x128xf32>
    %301 = arith.mulf %298, %300 : vector<8x128xf32>
    %c120_133 = arith.constant 120 : index
    %c0_134 = arith.constant 0 : index
    %302 = vector.load %arg12[%c120_133, %c0_134] : memref<200x128xf32, #tpu.memory_space<vmem>>, vector<8x128xf32>
    tpu.vector_store %arg12[%c120_133, %c0_134], %301 {strides = array<i32>} : memref<200x128xf32, #tpu.memory_space<vmem>>, vector<8x128xf32>,
    %303 = vector.extract_strided_slice %193 {offsets = [0, 7], sizes = [8, 121], strides = [1, 1]} : vector<8x128xf32> to vector<8x121xf32>
    %304 = vector.extract_strided_slice %193 {offsets = [0, 0], sizes = [8, 7], strides = [1, 1]} : vector<8x128xf32> to vector<8x7xf32>
    %305 = tpu.concatenate %303, %304 in 1 : vector<8x121xf32>, vector<8x7xf32> -> vector<8x128xf32>
    %c16_135 = arith.constant 16 : index
    %c0_136 = arith.constant 0 : index
    %306 = vector.load %arg4[%c16_135, %c0_136] : memref<25x128xf32, #tpu.memory_space<vmem>>, vector<1x128xf32>
    %307 = vector.broadcast %306 : vector<1x128xf32> to vector<8x128xf32>
    %308 = arith.mulf %305, %307 : vector<8x128xf32>
    %c128_137 = arith.constant 128 : index
    %c0_138 = arith.constant 0 : index
    %309 = vector.load %arg12[%c128_137, %c0_138] : memref<200x128xf32, #tpu.memory_space<vmem>>, vector<8x128xf32>
    tpu.vector_store %arg12[%c128_137, %c0_138], %308 {strides = array<i32>} : memref<200x128xf32, #tpu.memory_space<vmem>>, vector<8x128xf32>,
    %310 = vector.extract_strided_slice %193 {offsets = [0, 8], sizes = [8, 120], strides = [1, 1]} : vector<8x128xf32> to vector<8x120xf32>
    %311 = vector.extract_strided_slice %193 {offsets = [0, 0], sizes = [8, 8], strides = [1, 1]} : vector<8x128xf32> to vector<8x8xf32>
    %312 = tpu.concatenate %310, %311 in 1 : vector<8x120xf32>, vector<8x8xf32> -> vector<8x128xf32>
    %c17_139 = arith.constant 17 : index
    %c0_140 = arith.constant 0 : index
    %313 = vector.load %arg4[%c17_139, %c0_140] : memref<25x128xf32, #tpu.memory_space<vmem>>, vector<1x128xf32>
    %314 = vector.broadcast %313 : vector<1x128xf32> to vector<8x128xf32>
    %315 = arith.mulf %312, %314 : vector<8x128xf32>
    %c136_141 = arith.constant 136 : index
    %c0_142 = arith.constant 0 : index
    %316 = vector.load %arg12[%c136_141, %c0_142] : memref<200x128xf32, #tpu.memory_space<vmem>>, vector<8x128xf32>
    tpu.vector_store %arg12[%c136_141, %c0_142], %315 {strides = array<i32>} : memref<200x128xf32, #tpu.memory_space<vmem>>, vector<8x128xf32>,
    %317 = vector.extract_strided_slice %193 {offsets = [0, 9], sizes = [8, 119], strides = [1, 1]} : vector<8x128xf32> to vector<8x119xf32>
    %318 = vector.extract_strided_slice %193 {offsets = [0, 0], sizes = [8, 9], strides = [1, 1]} : vector<8x128xf32> to vector<8x9xf32>
    %319 = tpu.concatenate %317, %318 in 1 : vector<8x119xf32>, vector<8x9xf32> -> vector<8x128xf32>
    %c18_143 = arith.constant 18 : index
    %c0_144 = arith.constant 0 : index
    %320 = vector.load %arg4[%c18_143, %c0_144] : memref<25x128xf32, #tpu.memory_space<vmem>>, vector<1x128xf32>
    %321 = vector.broadcast %320 : vector<1x128xf32> to vector<8x128xf32>
    %322 = arith.mulf %319, %321 : vector<8x128xf32>
    %c144_145 = arith.constant 144 : index
    %c0_146 = arith.constant 0 : index
    %323 = vector.load %arg12[%c144_145, %c0_146] : memref<200x128xf32, #tpu.memory_space<vmem>>, vector<8x128xf32>
    tpu.vector_store %arg12[%c144_145, %c0_146], %322 {strides = array<i32>} : memref<200x128xf32, #tpu.memory_space<vmem>>, vector<8x128xf32>,
    %324 = vector.extract_strided_slice %193 {offsets = [0, 10], sizes = [8, 118], strides = [1, 1]} : vector<8x128xf32> to vector<8x118xf32>
    %325 = vector.extract_strided_slice %193 {offsets = [0, 0], sizes = [8, 10], strides = [1, 1]} : vector<8x128xf32> to vector<8x10xf32>
    %326 = tpu.concatenate %324, %325 in 1 : vector<8x118xf32>, vector<8x10xf32> -> vector<8x128xf32>
    %c19_147 = arith.constant 19 : index
    %c0_148 = arith.constant 0 : index
    %327 = vector.load %arg4[%c19_147, %c0_148] : memref<25x128xf32, #tpu.memory_space<vmem>>, vector<1x128xf32>
    %328 = vector.broadcast %327 : vector<1x128xf32> to vector<8x128xf32>
    %329 = arith.mulf %326, %328 : vector<8x128xf32>
    %c152_149 = arith.constant 152 : index
    %c0_150 = arith.constant 0 : index
    %330 = vector.load %arg12[%c152_149, %c0_150] : memref<200x128xf32, #tpu.memory_space<vmem>>, vector<8x128xf32>
    tpu.vector_store %arg12[%c152_149, %c0_150], %329 {strides = array<i32>} : memref<200x128xf32, #tpu.memory_space<vmem>>, vector<8x128xf32>,
    %331 = vector.extract_strided_slice %193 {offsets = [0, 14], sizes = [8, 114], strides = [1, 1]} : vector<8x128xf32> to vector<8x114xf32>
    %332 = vector.extract_strided_slice %193 {offsets = [0, 0], sizes = [8, 14], strides = [1, 1]} : vector<8x128xf32> to vector<8x14xf32>
    %333 = tpu.concatenate %331, %332 in 1 : vector<8x114xf32>, vector<8x14xf32> -> vector<8x128xf32>
    %c20_151 = arith.constant 20 : index
    %c0_152 = arith.constant 0 : index
    %334 = vector.load %arg4[%c20_151, %c0_152] : memref<25x128xf32, #tpu.memory_space<vmem>>, vector<1x128xf32>
    %335 = vector.broadcast %334 : vector<1x128xf32> to vector<8x128xf32>
    %336 = arith.mulf %333, %335 : vector<8x128xf32>
    %c160_153 = arith.constant 160 : index
    %c0_154 = arith.constant 0 : index
    %337 = vector.load %arg12[%c160_153, %c0_154] : memref<200x128xf32, #tpu.memory_space<vmem>>, vector<8x128xf32>
    tpu.vector_store %arg12[%c160_153, %c0_154], %336 {strides = array<i32>} : memref<200x128xf32, #tpu.memory_space<vmem>>, vector<8x128xf32>,
    %338 = vector.extract_strided_slice %193 {offsets = [0, 15], sizes = [8, 113], strides = [1, 1]} : vector<8x128xf32> to vector<8x113xf32>
    %339 = vector.extract_strided_slice %193 {offsets = [0, 0], sizes = [8, 15], strides = [1, 1]} : vector<8x128xf32> to vector<8x15xf32>
    %340 = tpu.concatenate %338, %339 in 1 : vector<8x113xf32>, vector<8x15xf32> -> vector<8x128xf32>
    %c21_155 = arith.constant 21 : index
    %c0_156 = arith.constant 0 : index
    %341 = vector.load %arg4[%c21_155, %c0_156] : memref<25x128xf32, #tpu.memory_space<vmem>>, vector<1x128xf32>
    %342 = vector.broadcast %341 : vector<1x128xf32> to vector<8x128xf32>
    %343 = arith.mulf %340, %342 : vector<8x128xf32>
    %c168_157 = arith.constant 168 : index
    %c0_158 = arith.constant 0 : index
    %344 = vector.load %arg12[%c168_157, %c0_158] : memref<200x128xf32, #tpu.memory_space<vmem>>, vector<8x128xf32>
    tpu.vector_store %arg12[%c168_157, %c0_158], %343 {strides = array<i32>} : memref<200x128xf32, #tpu.memory_space<vmem>>, vector<8x128xf32>,
    %345 = vector.extract_strided_slice %193 {offsets = [0, 16], sizes = [8, 112], strides = [1, 1]} : vector<8x128xf32> to vector<8x112xf32>
    %346 = vector.extract_strided_slice %193 {offsets = [0, 0], sizes = [8, 16], strides = [1, 1]} : vector<8x128xf32> to vector<8x16xf32>
    %347 = tpu.concatenate %345, %346 in 1 : vector<8x112xf32>, vector<8x16xf32> -> vector<8x128xf32>
    %c22_159 = arith.constant 22 : index
    %c0_160 = arith.constant 0 : index
    %348 = vector.load %arg4[%c22_159, %c0_160] : memref<25x128xf32, #tpu.memory_space<vmem>>, vector<1x128xf32>
    %349 = vector.broadcast %348 : vector<1x128xf32> to vector<8x128xf32>
    %350 = arith.mulf %347, %349 : vector<8x128xf32>
    %c176_161 = arith.constant 176 : index
    %c0_162 = arith.constant 0 : index
    %351 = vector.load %arg12[%c176_161, %c0_162] : memref<200x128xf32, #tpu.memory_space<vmem>>, vector<8x128xf32>
    tpu.vector_store %arg12[%c176_161, %c0_162], %350 {strides = array<i32>} : memref<200x128xf32, #tpu.memory_space<vmem>>, vector<8x128xf32>,
    %352 = vector.extract_strided_slice %193 {offsets = [0, 17], sizes = [8, 111], strides = [1, 1]} : vector<8x128xf32> to vector<8x111xf32>
    %353 = vector.extract_strided_slice %193 {offsets = [0, 0], sizes = [8, 17], strides = [1, 1]} : vector<8x128xf32> to vector<8x17xf32>
    %354 = tpu.concatenate %352, %353 in 1 : vector<8x111xf32>, vector<8x17xf32> -> vector<8x128xf32>
    %c23_163 = arith.constant 23 : index
    %c0_164 = arith.constant 0 : index
    %355 = vector.load %arg4[%c23_163, %c0_164] : memref<25x128xf32, #tpu.memory_space<vmem>>, vector<1x128xf32>
    %356 = vector.broadcast %355 : vector<1x128xf32> to vector<8x128xf32>
    %357 = arith.mulf %354, %356 : vector<8x128xf32>
    %c184_165 = arith.constant 184 : index
    %c0_166 = arith.constant 0 : index
    %358 = vector.load %arg12[%c184_165, %c0_166] : memref<200x128xf32, #tpu.memory_space<vmem>>, vector<8x128xf32>
    tpu.vector_store %arg12[%c184_165, %c0_166], %357 {strides = array<i32>} : memref<200x128xf32, #tpu.memory_space<vmem>>, vector<8x128xf32>,
    %359 = vector.extract_strided_slice %193 {offsets = [0, 18], sizes = [8, 110], strides = [1, 1]} : vector<8x128xf32> to vector<8x110xf32>
    %360 = vector.extract_strided_slice %193 {offsets = [0, 0], sizes = [8, 18], strides = [1, 1]} : vector<8x128xf32> to vector<8x18xf32>
    %361 = tpu.concatenate %359, %360 in 1 : vector<8x110xf32>, vector<8x18xf32> -> vector<8x128xf32>
    %c24_167 = arith.constant 24 : index
    %c0_168 = arith.constant 0 : index
    %362 = vector.load %arg4[%c24_167, %c0_168] : memref<25x128xf32, #tpu.memory_space<vmem>>, vector<1x128xf32>
    %363 = vector.broadcast %362 : vector<1x128xf32> to vector<8x128xf32>
    %364 = arith.mulf %361, %363 : vector<8x128xf32>
    %c192_169 = arith.constant 192 : index
    %c0_170 = arith.constant 0 : index
    %365 = vector.load %arg12[%c192_169, %c0_170] : memref<200x128xf32, #tpu.memory_space<vmem>>, vector<8x128xf32>
    tpu.vector_store %arg12[%c192_169, %c0_170], %364 {strides = array<i32>} : memref<200x128xf32, #tpu.memory_space<vmem>>, vector<8x128xf32>,
    %c0_171 = arith.constant 0 : index
    %c0_172 = arith.constant 0 : index
    %366 = vector.load %arg8[%c0_171, %c0_172] : memref<8x200xf32, #tpu.memory_space<vmem>>, vector<8x200xf32>
    %c0_173 = arith.constant 0 : index
    %c0_174 = arith.constant 0 : index
    %367 = vector.load %arg12[%c0_173, %c0_174] : memref<200x128xf32, #tpu.memory_space<vmem>>, vector<200x128xf32>
    %cst_175 = arith.constant dense<0.000000e+00> : vector<8x128xf32>
    %368 = tpu.matmul %366, %367, %cst_175 {dimension_numbers = #tpu.dot_dimension_numbers<[1], [0], [0], [1], [0, 0, 1, 1], [], []>} : vector<8x200xf32>, vector<200x128xf32>, vector<8x128xf32> -> vector<8x128xf32>
    %c0_176 = arith.constant 0 : index
    %c0_177 = arith.constant 0 : index
    %369 = vector.load %arg9[%c0_176, %c0_177] : memref<8x1xf32, #tpu.memory_space<vmem>>, vector<8x1xf32>
    %370 = vector.broadcast %369 : vector<8x1xf32> to vector<8x128xf32>
    %371 = arith.mulf %368, %370 : vector<8x128xf32>
    %c0_178 = arith.constant 0 : index
    %c0_179 = arith.constant 0 : index
    %372 = vector.load %arg10[%c0_178, %c0_179] : memref<8x1xf32, #tpu.memory_space<vmem>>, vector<8x1xf32>
    %373 = vector.broadcast %372 : vector<8x1xf32> to vector<8x128xf32>
    %374 = arith.addf %371, %373 : vector<8x128xf32>
    %cst_180 = arith.constant 0.000000e+00 : f32
    %375 = vector.broadcast %cst_180 : f32 to vector<8x128xf32>
    %376 = arith.maximumf %374, %375 : vector<8x128xf32>
    %c0_181 = arith.constant 0 : index
    %c0_182 = arith.constant 0 : index
    %377 = vector.load %arg11[%c0_181, %c0_182] : memref<8x128xf32, #tpu.memory_space<vmem>>, vector<8x128xf32>
    tpu.vector_store %arg11[%c0_181, %c0_182], %376 {strides = array<i32>} : memref<8x128xf32, #tpu.memory_space<vmem>>, vector<8x128xf32>,
    return
  }
  func.func @transform_0(%arg0: i32) -> (i32, i32) {
    %c0_i32 = arith.constant 0 : i32
    %c0_i32_0 = arith.constant 0 : i32
    %c0_i32_1 = arith.constant 0 : i32
    return %c0_i32, %c0_i32_0 : i32, i32
  }
  func.func @transform_1(%arg0: i32) -> (i32, i32) {
    %c0_i32 = arith.constant 0 : i32
    %c0_i32_0 = arith.constant 0 : i32
    %c0_i32_1 = arith.constant 0 : i32
    return %c0_i32, %c0_i32_0 : i32, i32
  }
  func.func @transform_2(%arg0: i32) -> (i32, i32) {
    %c0_i32 = arith.constant 0 : i32
    %c0_i32_0 = arith.constant 0 : i32
    %c0_i32_1 = arith.constant 0 : i32
    return %c0_i32, %c0_i32_0 : i32, i32
  }
  func.func @transform_3(%arg0: i32) -> (i32, i32) {
    %c0_i32 = arith.constant 0 : i32
    %c0_i32_0 = arith.constant 0 : i32
    %c0_i32_1 = arith.constant 0 : i32
    return %c0_i32, %c0_i32_0 : i32, i32
  }
  func.func @transform_4(%arg0: i32) -> (i32, i32) {
    %c0_i32 = arith.constant 0 : i32
    %c0_i32_0 = arith.constant 0 : i32
    %c0_i32_1 = arith.constant 0 : i32
    return %c0_i32, %c0_i32_0 : i32, i32
  }
  func.func @transform_5(%arg0: i32) -> (i32, i32) {
    %c0_i32 = arith.constant 0 : i32
    %c0_i32_0 = arith.constant 0 : i32
    %c0_i32_1 = arith.constant 0 : i32
    return %c0_i32, %c0_i32_0 : i32, i32
  }
  func.func @transform_6(%arg0: i32) -> (i32, i32) {
    %c0_i32 = arith.constant 0 : i32
    %c0_i32_0 = arith.constant 0 : i32
    %c0_i32_1 = arith.constant 0 : i32
    return %c0_i32, %c0_i32_0 : i32, i32
  }
  func.func @transform_7(%arg0: i32) -> (i32, i32) {
    %c0_i32 = arith.constant 0 : i32
    %c0_i32_0 = arith.constant 0 : i32
    %c0_i32_1 = arith.constant 0 : i32
    return %c0_i32, %c0_i32_0 : i32, i32
  }
  func.func @transform_8(%arg0: i32) -> (i32, i32) {
    %c0_i32 = arith.constant 0 : i32
    %c0_i32_0 = arith.constant 0 : i32
    %c0_i32_1 = arith.constant 0 : i32
    return %c0_i32, %c0_i32_0 : i32, i32
  }
  func.func @transform_9(%arg0: i32) -> (i32, i32) {
    %c0_i32 = arith.constant 0 : i32
    %c0_i32_0 = arith.constant 0 : i32
    %c0_i32_1 = arith.constant 0 : i32
    return %c0_i32, %c0_i32_0 : i32, i32
  }
  func.func @transform_10(%arg0: i32) -> (i32, i32) {
    %c0_i32 = arith.constant 0 : i32
    %c0_i32_0 = arith.constant 0 : i32
    %c0_i32_1 = arith.constant 0 : i32
    return %c0_i32, %c0_i32_0 : i32, i32
  }
}

</mosaic_0001>

<llo_original>
// kernel: down_forward.1
$region0: #{down_forward.1}
  #allocation0 [shape = 'u32[]', space=smem, size = 0x4, offset = 0x4, fixed_abs, tag = 'smem constant byte address 0x4 - core index']
  #allocation1 [shape = 'u32[144,128]{1,0:T(1,128)}', space=vmem, size = 0x12000, scoped, tag = 'internal scratch']
  #allocation2 [shape = 'f32[200,128]{1,0:T(8,128)}', space=vmem, size = 0x19000, scoped, tag = 'scratch operand']
  %s0 = inlined_call_operand.vmem [shape: f32[32,32], index: 0, kind: input, shape index: {}]
  %s1 = inlined_call_operand.vmem [shape: f32[64,32], index: 1, kind: input, shape index: {}]
  %s2 = inlined_call_operand.vmem [shape: f32[64,1], index: 2, kind: input, shape index: {}]
  %s3 = inlined_call_operand.vmem [shape: f32[25,128], index: 3, kind: input, shape index: {}]
  %s4 = inlined_call_operand.vmem [shape: f32[8,200], index: 4, kind: input, shape index: {}]
  %s5 = inlined_call_operand.vmem [shape: f32[8,1], index: 5, kind: input, shape index: {}]
  %s6 = inlined_call_operand.vmem [shape: f32[8,1], index: 6, kind: input, shape index: {}]
  %s7 = inlined_call_operand.vmem [shape: f32[8,200], index: 7, kind: input, shape index: {}]
  %s8 = inlined_call_operand.vmem [shape: f32[8,1], index: 8, kind: input, shape index: {}]
  %s9 = inlined_call_operand.vmem [shape: f32[8,1], index: 9, kind: input, shape index: {}]
  %s10 = inlined_call_operand.vmem [shape: f32[8,128], index: 10, kind: output, shape index: {}]
  %s11 = sld [smem:[#allocation0]]
  $region50: #{down_forward.1} parent=0
    _
  %s13 = ssub.s32 1, %s11
  %s14 = scalar_select 0, %s13, %s11
  // Predicated region
  $region2: #{down_forward.1} parent=0 // pred_check
    _
  $region3: #{down_forward.1} parent=0 // pred_check_branch
    %16 = sbr.rel (0) target = $region5
  $region4: #{down_forward.1} parent=0 // pred_region
    _
  $region5: #{down_forward.1} parent=0 // pred_fallthru
    _
  // Predicated region
  $region6: #{down_forward.1} parent=0 // pred_check
    _
  $region7: #{down_forward.1} parent=0 // pred_check_branch
    %18 = sbr.rel (0) target = $region9
  $region8: #{down_forward.1} parent=0 // pred_region
    _
  $region9: #{down_forward.1} parent=0 // pred_fallthru
    _
  // Predicated region
  $region10: #{down_forward.1} parent=0 // pred_check
    _
  $region11: #{down_forward.1} parent=0 // pred_check_branch
    %20 = sbr.rel (0) target = $region13
  $region12: #{down_forward.1} parent=0 // pred_region
    _
  $region13: #{down_forward.1} parent=0 // pred_fallthru
    _
  // Predicated region
  $region14: #{down_forward.1} parent=0 // pred_check
    _
  $region15: #{down_forward.1} parent=0 // pred_check_branch
    %22 = sbr.rel (0) target = $region17
  $region16: #{down_forward.1} parent=0 // pred_region
    _
  $region17: #{down_forward.1} parent=0 // pred_fallthru
    _
  // Predicated region
  $region18: #{down_forward.1} parent=0 // pred_check
    _
  $region19: #{down_forward.1} parent=0 // pred_check_branch
    %24 = sbr.rel (0) target = $region21
  $region20: #{down_forward.1} parent=0 // pred_region
    _
  $region21: #{down_forward.1} parent=0 // pred_fallthru
    _
  // Predicated region
  $region22: #{down_forward.1} parent=0 // pred_check
    _
  $region23: #{down_forward.1} parent=0 // pred_check_branch
    %26 = sbr.rel (0) target = $region25
  $region24: #{down_forward.1} parent=0 // pred_region
    _
  $region25: #{down_forward.1} parent=0 // pred_fallthru
    _
  // Predicated region
  $region26: #{down_forward.1} parent=0 // pred_check
    _
  $region27: #{down_forward.1} parent=0 // pred_check_branch
    %28 = sbr.rel (0) target = $region29
  $region28: #{down_forward.1} parent=0 // pred_region
    _
  $region29: #{down_forward.1} parent=0 // pred_fallthru
    _
  // Predicated region
  $region30: #{down_forward.1} parent=0 // pred_check
    _
  $region31: #{down_forward.1} parent=0 // pred_check_branch
    %30 = sbr.rel (0) target = $region33
  $region32: #{down_forward.1} parent=0 // pred_region
    _
  $region33: #{down_forward.1} parent=0 // pred_fallthru
    _
  // Predicated region
  $region34: #{down_forward.1} parent=0 // pred_check
    _
  $region35: #{down_forward.1} parent=0 // pred_check_branch
    %32 = sbr.rel (0) target = $region37
  $region36: #{down_forward.1} parent=0 // pred_region
    _
  $region37: #{down_forward.1} parent=0 // pred_fallthru
    _
  // Predicated region
  $region38: #{down_forward.1} parent=0 // pred_check
    _
  $region39: #{down_forward.1} parent=0 // pred_check_branch
    %34 = sbr.rel (0) target = $region41
  $region40: #{down_forward.1} parent=0 // pred_region
    _
  $region41: #{down_forward.1} parent=0 // pred_fallthru
    _
  %v35 = vld [vmem:[%s1] sm:$0xff]
  %v36 = vld [vmem:[%s1 + $0x8] sm:$0xff]
  %v37 = vld [vmem:[%s1 + $0x10] sm:$0xff]
  %v38 = vld [vmem:[%s1 + $0x18] sm:$0xff]
  %v39 = vld [vmem:[%s1 + $0x20] sm:$0xff]
  %v40 = vld [vmem:[%s1 + $0x28] sm:$0xff]
  %v41 = vld [vmem:[%s1 + $0x30] sm:$0xff]
  %v42 = vld [vmem:[%s1 + $0x38] sm:$0xff]
  %v43 = vld [vmem:[%s0] sm:$0xff]
  %v44 = vld [vmem:[%s0 + $0x8] sm:$0xff]
  %v45 = vld [vmem:[%s0 + $0x10] sm:$0xff]
  %v46 = vld [vmem:[%s0 + $0x18] sm:$0xff]
  %v47 = vld [vmem:[%s2] sm:$0xff]
  %v48 = vld [vmem:[%s2 + $0x8] sm:$0xff]
  %v49 = vld [vmem:[%s2 + $0x10] sm:$0xff]
  %v50 = vld [vmem:[%s2 + $0x18] sm:$0xff]
  %v51 = vld [vmem:[%s2 + $0x20] sm:$0xff]
  %v52 = vld [vmem:[%s2 + $0x28] sm:$0xff]
  %v53 = vld [vmem:[%s2 + $0x30] sm:$0xff]
  %v54 = vld [vmem:[%s2 + $0x38] sm:$0xff]
  %56 = vset.pattern.permute.xlu0 0
  %57 = vperm.xlu0 %56, %v47
  %v58 = vpop.permute.xlu0 %57
  %61 = vset.pattern.permute.xlu0 0
  %62 = vperm.xlu0 %61, %v48
  %v63 = vpop.permute.xlu0 %62
  %66 = vset.pattern.permute.xlu0 0
  %67 = vperm.xlu0 %66, %v49
  %v68 = vpop.permute.xlu0 %67
  %71 = vset.pattern.permute.xlu0 0
  %72 = vperm.xlu0 %71, %v50
  %v73 = vpop.permute.xlu0 %72
  %76 = vset.pattern.permute.xlu0 0
  %77 = vperm.xlu0 %76, %v51
  %v78 = vpop.permute.xlu0 %77
  %81 = vset.pattern.permute.xlu0 0
  %82 = vperm.xlu0 %81, %v52
  %v83 = vpop.permute.xlu0 %82
  %86 = vset.pattern.permute.xlu0 0
  %87 = vperm.xlu0 %86, %v53
  %v88 = vpop.permute.xlu0 %87
  %91 = vset.pattern.permute.xlu0 0
  %92 = vperm.xlu0 %91, %v54
  %v93 = vpop.permute.xlu0 %92
  %vm95 = vcmask 261120
  %v97 = vsel %vm95, %v35, 0
  %v100 = vsel %vm95, %v36, 0
  %v103 = vsel %vm95, %v37, 0
  %v106 = vsel %vm95, %v38, 0
  %v109 = vsel %vm95, %v39, 0
  %v112 = vsel %vm95, %v40, 0
  %v115 = vsel %vm95, %v41, 0
  %v118 = vsel %vm95, %v42, 0
  %120 = vmatprep.subr.mxu0 0.0
  %121 = vmatpush1.msra.mxu0 %v43
  %122 = vmatprep.subr.mxu0 0.0
  %123 = vmatpush1.msra.mxu0 %v44
  %124 = vmatprep.subr.mxu0 0.0
  %125 = vmatpush1.msra.mxu0 %v45
  %126 = vmatprep.subr.mxu0 0.0
  %127 = vmatpush1.msra.mxu0 %v46
  %128 = vmatprep.subr.mxu0 0.0
  %129 = vmatpush1.msra.mxu0 0.0
  %130 = vmatprep.subr.mxu0 0.0
  %131 = vmatpush1.msra.mxu0 0.0
  %132 = vmatprep.subr.mxu0 0.0
  %133 = vmatpush1.msra.mxu0 0.0
  %134 = vmatprep.subr.mxu0 0.0
  %135 = vmatpush1.msra.mxu0 0.0
  %136 = vmatprep.subr.mxu0 0.0
  %137 = vmatpush1.msra.mxu0 0.0
  %138 = vmatprep.subr.mxu0 0.0
  %139 = vmatpush1.msra.mxu0 0.0
  %140 = vmatprep.subr.mxu0 0.0
  %141 = vmatpush1.msra.mxu0 0.0
  %142 = vmatprep.subr.mxu0 0.0
  %143 = vmatpush1.msra.mxu0 0.0
  %144 = vmatprep.subr.mxu0 0.0
  %145 = vmatpush1.msra.mxu0 0.0
  %146 = vmatprep.subr.mxu0 0.0
  %147 = vmatpush1.msra.mxu0 0.0
  %148 = vmatprep.subr.mxu0 0.0
  %149 = vmatpush1.msra.mxu0 0.0
  %150 = vmatprep.subr.mxu0 0.0
  %151 = vmatpush1.msra.mxu0 0.0
  %152 = vmatprep.subr.mxu0 0.0
  %153 = vmatpush1.msra.mxu0 0.0
  %154 = vmatprep.subr.mxu0 0.0
  %155 = vmatpush1.msra.mxu0 0.0
  %156 = vmatprep.subr.mxu0 0.0
  %157 = vmatpush1.msra.mxu0 0.0
  %158 = vmatprep.subr.mxu0 0.0
  %159 = vmatpush1.msra.mxu0 0.0
  %160 = vmatprep.subr.mxu0 0.0
  %161 = vmatpush1.msra.mxu0 0.0
  %162 = vmatprep.subr.mxu0 0.0
  %163 = vmatpush1.msra.mxu0 0.0
  %164 = vmatprep.subr.mxu0 0.0
  %165 = vmatpush1.msra.mxu0 0.0
  %166 = vmatprep.subr.mxu0 0.0
  %167 = vmatpush1.msra.mxu0 0.0
  %168 = vmatprep.subr.mxu0 0.0
  %169 = vmatpush1.msra.mxu0 0.0
  %170 = vmatprep.subr.mxu0 0.0
  %171 = vmatpush1.msra.mxu0 0.0
  %172 = vmatprep.subr.mxu0 0.0
  %173 = vmatpush1.msra.mxu0 0.0
  %174 = vmatprep.subr.mxu0 0.0
  %175 = vmatpush1.msra.mxu0 0.0
  %176 = vmatprep.subr.mxu0 0.0
  %177 = vmatpush1.msra.mxu0 0.0
  %178 = vmatprep.subr.mxu0 0.0
  %179 = vmatpush1.msra.mxu0 0.0
  %180 = vmatprep.subr.mxu0 0.0
  %181 = vmatpush1.msra.mxu0 0.0
  %182 = vmatprep.subr.mxu0 0.0
  %183 = vmatpush1.msra.mxu0 0.0
  %184 = vmatprep.mubr.f32.mxu0 0.0
  %185 = vmatmul.mubr.f32.gmra.mrb[0].mxu0 %v97
  %v186 = vpop.f32.mrb[0].mxu0
  %v187 = vadd.f32 %v58, %v186
  %v188 = vpop.f32.mrb[0].mxu0
  %189 = vmatprep.mubr.f32.mxu0 0.0
  %190 = vmatmul.mubr.f32.gmra.mrb[0].mxu0 %v100
  %v191 = vpop.f32.mrb[0].mxu0
  %v192 = vadd.f32 %v63, %v191
  %v193 = vpop.f32.mrb[0].mxu0
  %194 = vmatprep.mubr.f32.mxu0 0.0
  %195 = vmatmul.mubr.f32.gmra.mrb[0].mxu0 %v103
  %v196 = vpop.f32.mrb[0].mxu0
  %v197 = vadd.f32 %v68, %v196
  %v198 = vpop.f32.mrb[0].mxu0
  %199 = vmatprep.mubr.f32.mxu0 0.0
  %200 = vmatmul.mubr.f32.gmra.mrb[0].mxu0 %v106
  %v201 = vpop.f32.mrb[0].mxu0
  %v202 = vadd.f32 %v73, %v201
  %v203 = vpop.f32.mrb[0].mxu0
  %204 = vmatprep.mubr.f32.mxu0 0.0
  %205 = vmatmul.mubr.f32.gmra.mrb[0].mxu0 %v109
  %v206 = vpop.f32.mrb[0].mxu0
  %v207 = vadd.f32 %v78, %v206
  %v208 = vpop.f32.mrb[0].mxu0
  %209 = vmatprep.mubr.f32.mxu0 0.0
  %210 = vmatmul.mubr.f32.gmra.mrb[0].mxu0 %v112
  %v211 = vpop.f32.mrb[0].mxu0
  %v212 = vadd.f32 %v83, %v211
  %v213 = vpop.f32.mrb[0].mxu0
  %214 = vmatprep.mubr.f32.mxu0 0.0
  %215 = vmatmul.mubr.f32.gmra.mrb[0].mxu0 %v115
  %v216 = vpop.f32.mrb[0].mxu0
  %v217 = vadd.f32 %v88, %v216
  %v218 = vpop.f32.mrb[0].mxu0
  %219 = vmatprep.mubr.f32.mxu0 0.0
  %220 = vmatmul.mubr.f32.gmra.mrb[0].mxu0 %v118
  %v221 = vpop.f32.mrb[0].mxu0
  %v222 = vadd.f32 %v93, %v221
  %v223 = vpop.f32.mrb[0].mxu0
  %224 = vdwg.mxu0
  %225 = vxpose.xlu0.b32.start [1/16] %v187, 128
  %226 = vxpose.xlu0.b32.cont [2/16] 0.0, 128
  %227 = vxpose.xlu0.b32.cont [3/16] 0.0, 128
  %228 = vxpose.xlu0.b32.cont [4/16] 0.0, 128
  %229 = vxpose.xlu0.b32.cont [5/16] 0.0, 128
  %230 = vxpose.xlu0.b32.cont [6/16] 0.0, 128
  %231 = vxpose.xlu0.b32.cont [7/16] 0.0, 128
  %232 = vxpose.xlu0.b32.cont [8/16] 0.0, 128
  %233 = vxpose.xlu0.b32.cont [9/16] 0.0, 128
  %234 = vxpose.xlu0.b32.cont [10/16] 0.0, 128
  %235 = vxpose.xlu0.b32.cont [11/16] 0.0, 128
  %236 = vxpose.xlu0.b32.cont [12/16] 0.0, 128
  %237 = vxpose.xlu0.b32.cont [13/16] 0.0, 128
  %238 = vxpose.xlu0.b32.cont [14/16] 0.0, 128
  %239 = vxpose.xlu0.b32.cont [15/16] 0.0, 128
  %240 = vxpose.xlu0.b32.end [16/16] 0.0, 128
  %v241 = vpop.trf.xlu0
  %v242 = vpop.trf.xlu0
  %v243 = vpop.trf.xlu0
  %v244 = vpop.trf.xlu0
  %v245 = vpop.trf.xlu0
  %v246 = vpop.trf.xlu0
  %v247 = vpop.trf.xlu0
  %v248 = vpop.trf.xlu0
  %v249 = vpop.trf.xlu0
  %v250 = vpop.trf.xlu0
  %v251 = vpop.trf.xlu0
  %v252 = vpop.trf.xlu0
  %v253 = vpop.trf.xlu0
  %v254 = vpop.trf.xlu0
  %v255 = vpop.trf.xlu0
  %v256 = vpop.trf.xlu0
  %257 = vxpose.xlu0.b32.start [1/16] %v192, 128
  %258 = vxpose.xlu0.b32.cont [2/16] 0.0, 128
  %259 = vxpose.xlu0.b32.cont [3/16] 0.0, 128
  %260 = vxpose.xlu0.b32.cont [4/16] 0.0, 128
  %261 = vxpose.xlu0.b32.cont [5/16] 0.0, 128
  %262 = vxpose.xlu0.b32.cont [6/16] 0.0, 128
  %263 = vxpose.xlu0.b32.cont [7/16] 0.0, 128
  %264 = vxpose.xlu0.b32.cont [8/16] 0.0, 128
  %265 = vxpose.xlu0.b32.cont [9/16] 0.0, 128
  %266 = vxpose.xlu0.b32.cont [10/16] 0.0, 128
  %267 = vxpose.xlu0.b32.cont [11/16] 0.0, 128
  %268 = vxpose.xlu0.b32.cont [12/16] 0.0, 128
  %269 = vxpose.xlu0.b32.cont [13/16] 0.0, 128
  %270 = vxpose.xlu0.b32.cont [14/16] 0.0, 128
  %271 = vxpose.xlu0.b32.cont [15/16] 0.0, 128
  %272 = vxpose.xlu0.b32.end [16/16] 0.0, 128
  %v273 = vpop.trf.xlu0
  %v274 = vpop.trf.xlu0
  %v275 = vpop.trf.xlu0
  %v276 = vpop.trf.xlu0
  %v277 = vpop.trf.xlu0
  %v278 = vpop.trf.xlu0
  %v279 = vpop.trf.xlu0
  %v280 = vpop.trf.xlu0
  %v281 = vpop.trf.xlu0
  %v282 = vpop.trf.xlu0
  %v283 = vpop.trf.xlu0
  %v284 = vpop.trf.xlu0
  %v285 = vpop.trf.xlu0
  %v286 = vpop.trf.xlu0
  %v287 = vpop.trf.xlu0
  %v288 = vpop.trf.xlu0
  %289 = vxpose.xlu0.b32.start [1/16] %v197, 128
  %290 = vxpose.xlu0.b32.cont [2/16] 0.0, 128
  %291 = vxpose.xlu0.b32.cont [3/16] 0.0, 128
  %292 = vxpose.xlu0.b32.cont [4/16] 0.0, 128
  %293 = vxpose.xlu0.b32.cont [5/16] 0.0, 128
  %294 = vxpose.xlu0.b32.cont [6/16] 0.0, 128
  %295 = vxpose.xlu0.b32.cont [7/16] 0.0, 128
  %296 = vxpose.xlu0.b32.cont [8/16] 0.0, 128
  %297 = vxpose.xlu0.b32.cont [9/16] 0.0, 128
  %298 = vxpose.xlu0.b32.cont [10/16] 0.0, 128
  %299 = vxpose.xlu0.b32.cont [11/16] 0.0, 128
  %300 = vxpose.xlu0.b32.cont [12/16] 0.0, 128
  %301 = vxpose.xlu0.b32.cont [13/16] 0.0, 128
  %302 = vxpose.xlu0.b32.cont [14/16] 0.0, 128
  %303 = vxpose.xlu0.b32.cont [15/16] 0.0, 128
  %304 = vxpose.xlu0.b32.end [16/16] 0.0, 128
  %v305 = vpop.trf.xlu0
  %v306 = vpop.trf.xlu0
  %v307 = vpop.trf.xlu0
  %v308 = vpop.trf.xlu0
  %v309 = vpop.trf.xlu0
  %v310 = vpop.trf.xlu0
  %v311 = vpop.trf.xlu0
  %v312 = vpop.trf.xlu0
  %v313 = vpop.trf.xlu0
  %v314 = vpop.trf.xlu0
  %v315 = vpop.trf.xlu0
  %v316 = vpop.trf.xlu0
  %v317 = vpop.trf.xlu0
  %v318 = vpop.trf.xlu0
  %v319 = vpop.trf.xlu0
  %v320 = vpop.trf.xlu0
  %321 = vxpose.xlu0.b32.start [1/16] %v202, 128
  %322 = vxpose.xlu0.b32.cont [2/16] 0.0, 128
  %323 = vxpose.xlu0.b32.cont [3/16] 0.0, 128
  %324 = vxpose.xlu0.b32.cont [4/16] 0.0, 128
  %325 = vxpose.xlu0.b32.cont [5/16] 0.0, 128
  %326 = vxpose.xlu0.b32.cont [6/16] 0.0, 128
  %327 = vxpose.xlu0.b32.cont [7/16] 0.0, 128
  %328 = vxpose.xlu0.b32.cont [8/16] 0.0, 128
  %329 = vxpose.xlu0.b32.cont [9/16] 0.0, 128
  %330 = vxpose.xlu0.b32.cont [10/16] 0.0, 128
  %331 = vxpose.xlu0.b32.cont [11/16] 0.0, 128
  %332 = vxpose.xlu0.b32.cont [12/16] 0.0, 128
  %333 = vxpose.xlu0.b32.cont [13/16] 0.0, 128
  %334 = vxpose.xlu0.b32.cont [14/16] 0.0, 128
  %335 = vxpose.xlu0.b32.cont [15/16] 0.0, 128
  %336 = vxpose.xlu0.b32.end [16/16] 0.0, 128
  %v337 = vpop.trf.xlu0
  %v338 = vpop.trf.xlu0
  %v339 = vpop.trf.xlu0
  %v340 = vpop.trf.xlu0
  %v341 = vpop.trf.xlu0
  %v342 = vpop.trf.xlu0
  %v343 = vpop.trf.xlu0
  %v344 = vpop.trf.xlu0
  %v345 = vpop.trf.xlu0
  %v346 = vpop.trf.xlu0
  %v347 = vpop.trf.xlu0
  %v348 = vpop.trf.xlu0
  %v349 = vpop.trf.xlu0
  %v350 = vpop.trf.xlu0
  %v351 = vpop.trf.xlu0
  %v352 = vpop.trf.xlu0
  %353 = vxpose.xlu0.b32.start [1/16] %v207, 128
  %354 = vxpose.xlu0.b32.cont [2/16] 0.0, 128
  %355 = vxpose.xlu0.b32.cont [3/16] 0.0, 128
  %356 = vxpose.xlu0.b32.cont [4/16] 0.0, 128
  %357 = vxpose.xlu0.b32.cont [5/16] 0.0, 128
  %358 = vxpose.xlu0.b32.cont [6/16] 0.0, 128
  %359 = vxpose.xlu0.b32.cont [7/16] 0.0, 128
  %360 = vxpose.xlu0.b32.cont [8/16] 0.0, 128
  %361 = vxpose.xlu0.b32.cont [9/16] 0.0, 128
  %362 = vxpose.xlu0.b32.cont [10/16] 0.0, 128
  %363 = vxpose.xlu0.b32.cont [11/16] 0.0, 128
  %364 = vxpose.xlu0.b32.cont [12/16] 0.0, 128
  %365 = vxpose.xlu0.b32.cont [13/16] 0.0, 128
  %366 = vxpose.xlu0.b32.cont [14/16] 0.0, 128
  %367 = vxpose.xlu0.b32.cont [15/16] 0.0, 128
  %368 = vxpose.xlu0.b32.end [16/16] 0.0, 128
  %v369 = vpop.trf.xlu0
  %v370 = vpop.trf.xlu0
  %v371 = vpop.trf.xlu0
  %v372 = vpop.trf.xlu0
  %v373 = vpop.trf.xlu0
  %v374 = vpop.trf.xlu0
  %v375 = vpop.trf.xlu0
  %v376 = vpop.trf.xlu0
  %v377 = vpop.trf.xlu0
  %v378 = vpop.trf.xlu0
  %v379 = vpop.trf.xlu0
  %v380 = vpop.trf.xlu0
  %v381 = vpop.trf.xlu0
  %v382 = vpop.trf.xlu0
  %v383 = vpop.trf.xlu0
  %v384 = vpop.trf.xlu0
  %385 = vxpose.xlu0.b32.start [1/16] %v212, 128
  %386 = vxpose.xlu0.b32.cont [2/16] 0.0, 128
  %387 = vxpose.xlu0.b32.cont [3/16] 0.0, 128
  %388 = vxpose.xlu0.b32.cont [4/16] 0.0, 128
  %389 = vxpose.xlu0.b32.cont [5/16] 0.0, 128
  %390 = vxpose.xlu0.b32.cont [6/16] 0.0, 128
  %391 = vxpose.xlu0.b32.cont [7/16] 0.0, 128
  %392 = vxpose.xlu0.b32.cont [8/16] 0.0, 128
  %393 = vxpose.xlu0.b32.cont [9/16] 0.0, 128
  %394 = vxpose.xlu0.b32.cont [10/16] 0.0, 128
  %395 = vxpose.xlu0.b32.cont [11/16] 0.0, 128
  %396 = vxpose.xlu0.b32.cont [12/16] 0.0, 128
  %397 = vxpose.xlu0.b32.cont [13/16] 0.0, 128
  %398 = vxpose.xlu0.b32.cont [14/16] 0.0, 128
  %399 = vxpose.xlu0.b32.cont [15/16] 0.0, 128
  %400 = vxpose.xlu0.b32.end [16/16] 0.0, 128
  %v401 = vpop.trf.xlu0
  %v402 = vpop.trf.xlu0
  %v403 = vpop.trf.xlu0
  %v404 = vpop.trf.xlu0
  %v405 = vpop.trf.xlu0
  %v406 = vpop.trf.xlu0
  %v407 = vpop.trf.xlu0
  %v408 = vpop.trf.xlu0
  %v409 = vpop.trf.xlu0
  %v410 = vpop.trf.xlu0
  %v411 = vpop.trf.xlu0
  %v412 = vpop.trf.xlu0
  %v413 = vpop.trf.xlu0
  %v414 = vpop.trf.xlu0
  %v415 = vpop.trf.xlu0
  %v416 = vpop.trf.xlu0
  %417 = vxpose.xlu0.b32.start [1/16] %v217, 128
  %418 = vxpose.xlu0.b32.cont [2/16] 0.0, 128
  %419 = vxpose.xlu0.b32.cont [3/16] 0.0, 128
  %420 = vxpose.xlu0.b32.cont [4/16] 0.0, 128
  %421 = vxpose.xlu0.b32.cont [5/16] 0.0, 128
  %422 = vxpose.xlu0.b32.cont [6/16] 0.0, 128
  %423 = vxpose.xlu0.b32.cont [7/16] 0.0, 128
  %424 = vxpose.xlu0.b32.cont [8/16] 0.0, 128
  %425 = vxpose.xlu0.b32.cont [9/16] 0.0, 128
  %426 = vxpose.xlu0.b32.cont [10/16] 0.0, 128
  %427 = vxpose.xlu0.b32.cont [11/16] 0.0, 128
  %428 = vxpose.xlu0.b32.cont [12/16] 0.0, 128
  %429 = vxpose.xlu0.b32.cont [13/16] 0.0, 128
  %430 = vxpose.xlu0.b32.cont [14/16] 0.0, 128
  %431 = vxpose.xlu0.b32.cont [15/16] 0.0, 128
  %432 = vxpose.xlu0.b32.end [16/16] 0.0, 128
  %v433 = vpop.trf.xlu0
  %v434 = vpop.trf.xlu0
  %v435 = vpop.trf.xlu0
  %v436 = vpop.trf.xlu0
  %v437 = vpop.trf.xlu0
  %v438 = vpop.trf.xlu0
  %v439 = vpop.trf.xlu0
  %v440 = vpop.trf.xlu0
  %v441 = vpop.trf.xlu0
  %v442 = vpop.trf.xlu0
  %v443 = vpop.trf.xlu0
  %v444 = vpop.trf.xlu0
  %v445 = vpop.trf.xlu0
  %v446 = vpop.trf.xlu0
  %v447 = vpop.trf.xlu0
  %v448 = vpop.trf.xlu0
  %449 = vxpose.xlu0.b32.start [1/16] %v222, 128
  %450 = vxpose.xlu0.b32.cont [2/16] 0.0, 128
  %451 = vxpose.xlu0.b32.cont [3/16] 0.0, 128
  %452 = vxpose.xlu0.b32.cont [4/16] 0.0, 128
  %453 = vxpose.xlu0.b32.cont [5/16] 0.0, 128
  %454 = vxpose.xlu0.b32.cont [6/16] 0.0, 128
  %455 = vxpose.xlu0.b32.cont [7/16] 0.0, 128
  %456 = vxpose.xlu0.b32.cont [8/16] 0.0, 128
  %457 = vxpose.xlu0.b32.cont [9/16] 0.0, 128
  %458 = vxpose.xlu0.b32.cont [10/16] 0.0, 128
  %459 = vxpose.xlu0.b32.cont [11/16] 0.0, 128
  %460 = vxpose.xlu0.b32.cont [12/16] 0.0, 128
  %461 = vxpose.xlu0.b32.cont [13/16] 0.0, 128
  %462 = vxpose.xlu0.b32.cont [14/16] 0.0, 128
  %463 = vxpose.xlu0.b32.cont [15/16] 0.0, 128
  %464 = vxpose.xlu0.b32.end [16/16] 0.0, 128
  %v465 = vpop.trf.xlu0
  %v466 = vpop.trf.xlu0
  %v467 = vpop.trf.xlu0
  %v468 = vpop.trf.xlu0
  %v469 = vpop.trf.xlu0
  %v470 = vpop.trf.xlu0
  %v471 = vpop.trf.xlu0
  %v472 = vpop.trf.xlu0
  %v473 = vpop.trf.xlu0
  %v474 = vpop.trf.xlu0
  %v475 = vpop.trf.xlu0
  %v476 = vpop.trf.xlu0
  %v477 = vpop.trf.xlu0
  %v478 = vpop.trf.xlu0
  %v479 = vpop.trf.xlu0
  %v480 = vpop.trf.xlu0
  %v513 = vcombine.high %v241, %v241
  %v515 = vunpack.c.l.s4 1983009808
  %v516 = vunpack.c.0.s8 %v515
  %v517 = vlaneseq
  %v518 = vshrl.u32 %v517, 7
  %v519 = vsub.s32 %v516, %v518
  %v520 = vrot.slane %v241, %v519
  %v522 = vunpack.c.l.s4 1983009808
  %v523 = vunpack.c.0.s8 %v522
  %v524 = vlaneseq
  %v525 = vshrl.u32 %v524, 7
  %v526 = vsub.s32 %v523, %v525
  %v527 = vrot.slane %v513, %v526
  %v528 = vcombine.high %v520, %v520
  %v529 = vcombine.high %v527, %v527
  %v530 = vcombine.high %v242, %v242
  %v532 = vunpack.c.l.s4 1983009808
  %v533 = vunpack.c.0.s8 %v532
  %v534 = vlaneseq
  %v535 = vshrl.u32 %v534, 7
  %v536 = vsub.s32 %v533, %v535
  %v537 = vrot.slane %v242, %v536
  %v539 = vunpack.c.l.s4 1983009808
  %v540 = vunpack.c.0.s8 %v539
  %v541 = vlaneseq
  %v542 = vshrl.u32 %v541, 7
  %v543 = vsub.s32 %v540, %v542
  %v544 = vrot.slane %v530, %v543
  %v545 = vcombine.high %v537, %v537
  %v546 = vcombine.high %v544, %v544
  %v547 = vcombine.high %v243, %v243
  %v549 = vunpack.c.l.s4 1983009808
  %v550 = vunpack.c.0.s8 %v549
  %v551 = vlaneseq
  %v552 = vshrl.u32 %v551, 7
  %v553 = vsub.s32 %v550, %v552
  %v554 = vrot.slane %v243, %v553
  %v556 = vunpack.c.l.s4 1983009808
  %v557 = vunpack.c.0.s8 %v556
  %v558 = vlaneseq
  %v559 = vshrl.u32 %v558, 7
  %v560 = vsub.s32 %v557, %v559
  %v561 = vrot.slane %v547, %v560
  %v562 = vcombine.high %v554, %v554
  %v563 = vcombine.high %v561, %v561
  %v564 = vcombine.high %v244, %v244
  %v566 = vunpack.c.l.s4 1983009808
  %v567 = vunpack.c.0.s8 %v566
  %v568 = vlaneseq
  %v569 = vshrl.u32 %v568, 7
  %v570 = vsub.s32 %v567, %v569
  %v571 = vrot.slane %v244, %v570
  %v573 = vunpack.c.l.s4 1983009808
  %v574 = vunpack.c.0.s8 %v573
  %v575 = vlaneseq
  %v576 = vshrl.u32 %v575, 7
  %v577 = vsub.s32 %v574, %v576
  %v578 = vrot.slane %v564, %v577
  %v579 = vcombine.high %v571, %v571
  %v580 = vcombine.high %v578, %v578
  %v581 = vcombine.high %v273, %v273
  %v583 = vunpack.c.l.s4 1983009808
  %v584 = vunpack.c.0.s8 %v583
  %v585 = vlaneseq
  %v586 = vshrl.u32 %v585, 7
  %v587 = vsub.s32 %v584, %v586
  %v588 = vrot.slane %v273, %v587
  %v590 = vunpack.c.l.s4 1983009808
  %v591 = vunpack.c.0.s8 %v590
  %v592 = vlaneseq
  %v593 = vshrl.u32 %v592, 7
  %v594 = vsub.s32 %v591, %v593
  %v595 = vrot.slane %v581, %v594
  %v596 = vcombine.high %v588, %v588
  %v597 = vcombine.high %v595, %v595
  %v598 = vcombine.high %v274, %v274
  %v600 = vunpack.c.l.s4 1983009808
  %v601 = vunpack.c.0.s8 %v600
  %v602 = vlaneseq
  %v603 = vshrl.u32 %v602, 7
  %v604 = vsub.s32 %v601, %v603
  %v605 = vrot.slane %v274, %v604
  %v607 = vunpack.c.l.s4 1983009808
  %v608 = vunpack.c.0.s8 %v607
  %v609 = vlaneseq
  %v610 = vshrl.u32 %v609, 7
  %v611 = vsub.s32 %v608, %v610
  %v612 = vrot.slane %v598, %v611
  %v613 = vcombine.high %v605, %v605
  %v614 = vcombine.high %v612, %v612
  %v615 = vcombine.high %v275, %v275
  %v617 = vunpack.c.l.s4 1983009808
  %v618 = vunpack.c.0.s8 %v617
  %v619 = vlaneseq
  %v620 = vshrl.u32 %v619, 7
  %v621 = vsub.s32 %v618, %v620
  %v622 = vrot.slane %v275, %v621
  %v624 = vunpack.c.l.s4 1983009808
  %v625 = vunpack.c.0.s8 %v624
  %v626 = vlaneseq
  %v627 = vshrl.u32 %v626, 7
  %v628 = vsub.s32 %v625, %v627
  %v629 = vrot.slane %v615, %v628
  %v630 = vcombine.high %v622, %v622
  %v631 = vcombine.high %v629, %v629
  %v632 = vcombine.high %v276, %v276
  %v634 = vunpack.c.l.s4 1983009808
  %v635 = vunpack.c.0.s8 %v634
  %v636 = vlaneseq
  %v637 = vshrl.u32 %v636, 7
  %v638 = vsub.s32 %v635, %v637
  %v639 = vrot.slane %v276, %v638
  %v641 = vunpack.c.l.s4 1983009808
  %v642 = vunpack.c.0.s8 %v641
  %v643 = vlaneseq
  %v644 = vshrl.u32 %v643, 7
  %v645 = vsub.s32 %v642, %v644
  %v646 = vrot.slane %v632, %v645
  %v647 = vcombine.high %v639, %v639
  %v648 = vcombine.high %v646, %v646
  %v649 = vcombine.high %v305, %v305
  %v651 = vunpack.c.l.s4 1983009808
  %v652 = vunpack.c.0.s8 %v651
  %v653 = vlaneseq
  %v654 = vshrl.u32 %v653, 7
  %v655 = vsub.s32 %v652, %v654
  %v656 = vrot.slane %v305, %v655
  %v658 = vunpack.c.l.s4 1983009808
  %v659 = vunpack.c.0.s8 %v658
  %v660 = vlaneseq
  %v661 = vshrl.u32 %v660, 7
  %v662 = vsub.s32 %v659, %v661
  %v663 = vrot.slane %v649, %v662
  %v664 = vcombine.high %v656, %v656
  %v665 = vcombine.high %v663, %v663
  %v666 = vcombine.high %v306, %v306
  %v668 = vunpack.c.l.s4 1983009808
  %v669 = vunpack.c.0.s8 %v668
  %v670 = vlaneseq
  %v671 = vshrl.u32 %v670, 7
  %v672 = vsub.s32 %v669, %v671
  %v673 = vrot.slane %v306, %v672
  %v675 = vunpack.c.l.s4 1983009808
  %v676 = vunpack.c.0.s8 %v675
  %v677 = vlaneseq
  %v678 = vshrl.u32 %v677, 7
  %v679 = vsub.s32 %v676, %v678
  %v680 = vrot.slane %v666, %v679
  %v681 = vcombine.high %v673, %v673
  %v682 = vcombine.high %v680, %v680
  %v683 = vcombine.high %v307, %v307
  %v685 = vunpack.c.l.s4 1983009808
  %v686 = vunpack.c.0.s8 %v685
  %v687 = vlaneseq
  %v688 = vshrl.u32 %v687, 7
  %v689 = vsub.s32 %v686, %v688
  %v690 = vrot.slane %v307, %v689
  %v692 = vunpack.c.l.s4 1983009808
  %v693 = vunpack.c.0.s8 %v692
  %v694 = vlaneseq
  %v695 = vshrl.u32 %v694, 7
  %v696 = vsub.s32 %v693, %v695
  %v697 = vrot.slane %v683, %v696
  %v698 = vcombine.high %v690, %v690
  %v699 = vcombine.high %v697, %v697
  %v700 = vcombine.high %v308, %v308
  %v702 = vunpack.c.l.s4 1983009808
  %v703 = vunpack.c.0.s8 %v702
  %v704 = vlaneseq
  %v705 = vshrl.u32 %v704, 7
  %v706 = vsub.s32 %v703, %v705
  %v707 = vrot.slane %v308, %v706
  %v709 = vunpack.c.l.s4 1983009808
  %v710 = vunpack.c.0.s8 %v709
  %v711 = vlaneseq
  %v712 = vshrl.u32 %v711, 7
  %v713 = vsub.s32 %v710, %v712
  %v714 = vrot.slane %v700, %v713
  %v715 = vcombine.high %v707, %v707
  %v716 = vcombine.high %v714, %v714
  %v717 = vcombine.high %v337, %v337
  %v719 = vunpack.c.l.s4 1983009808
  %v720 = vunpack.c.0.s8 %v719
  %v721 = vlaneseq
  %v722 = vshrl.u32 %v721, 7
  %v723 = vsub.s32 %v720, %v722
  %v724 = vrot.slane %v337, %v723
  %v726 = vunpack.c.l.s4 1983009808
  %v727 = vunpack.c.0.s8 %v726
  %v728 = vlaneseq
  %v729 = vshrl.u32 %v728, 7
  %v730 = vsub.s32 %v727, %v729
  %v731 = vrot.slane %v717, %v730
  %v732 = vcombine.high %v724, %v724
  %v733 = vcombine.high %v731, %v731
  %v734 = vcombine.high %v338, %v338
  %v736 = vunpack.c.l.s4 1983009808
  %v737 = vunpack.c.0.s8 %v736
  %v738 = vlaneseq
  %v739 = vshrl.u32 %v738, 7
  %v740 = vsub.s32 %v737, %v739
  %v741 = vrot.slane %v338, %v740
  %v743 = vunpack.c.l.s4 1983009808
  %v744 = vunpack.c.0.s8 %v743
  %v745 = vlaneseq
  %v746 = vshrl.u32 %v745, 7
  %v747 = vsub.s32 %v744, %v746
  %v748 = vrot.slane %v734, %v747
  %v749 = vcombine.high %v741, %v741
  %v750 = vcombine.high %v748, %v748
  %v751 = vcombine.high %v339, %v339
  %v753 = vunpack.c.l.s4 1983009808
  %v754 = vunpack.c.0.s8 %v753
  %v755 = vlaneseq
  %v756 = vshrl.u32 %v755, 7
  %v757 = vsub.s32 %v754, %v756
  %v758 = vrot.slane %v339, %v757
  %v760 = vunpack.c.l.s4 1983009808
  %v761 = vunpack.c.0.s8 %v760
  %v762 = vlaneseq
  %v763 = vshrl.u32 %v762, 7
  %v764 = vsub.s32 %v761, %v763
  %v765 = vrot.slane %v751, %v764
  %v766 = vcombine.high %v758, %v758
  %v767 = vcombine.high %v765, %v765
  %v768 = vcombine.high %v340, %v340
  %v770 = vunpack.c.l.s4 1983009808
  %v771 = vunpack.c.0.s8 %v770
  %v772 = vlaneseq
  %v773 = vshrl.u32 %v772, 7
  %v774 = vsub.s32 %v771, %v773
  %v775 = vrot.slane %v340, %v774
  %v777 = vunpack.c.l.s4 1983009808
  %v778 = vunpack.c.0.s8 %v777
  %v779 = vlaneseq
  %v780 = vshrl.u32 %v779, 7
  %v781 = vsub.s32 %v778, %v780
  %v782 = vrot.slane %v768, %v781
  %v783 = vcombine.high %v775, %v775
  %v784 = vcombine.high %v782, %v782
  %v785 = vcombine.high %v369, %v369
  %v787 = vunpack.c.l.s4 1983009808
  %v788 = vunpack.c.0.s8 %v787
  %v789 = vlaneseq
  %v790 = vshrl.u32 %v789, 7
  %v791 = vsub.s32 %v788, %v790
  %v792 = vrot.slane %v369, %v791
  %v794 = vunpack.c.l.s4 1983009808
  %v795 = vunpack.c.0.s8 %v794
  %v796 = vlaneseq
  %v797 = vshrl.u32 %v796, 7
  %v798 = vsub.s32 %v795, %v797
  %v799 = vrot.slane %v785, %v798
  %v800 = vcombine.high %v792, %v792
  %v801 = vcombine.high %v799, %v799
  %v802 = vcombine.high %v370, %v370
  %v804 = vunpack.c.l.s4 1983009808
  %v805 = vunpack.c.0.s8 %v804
  %v806 = vlaneseq
  %v807 = vshrl.u32 %v806, 7
  %v808 = vsub.s32 %v805, %v807
  %v809 = vrot.slane %v370, %v808
  %v811 = vunpack.c.l.s4 1983009808
  %v812 = vunpack.c.0.s8 %v811
  %v813 = vlaneseq
  %v814 = vshrl.u32 %v813, 7
  %v815 = vsub.s32 %v812, %v814
  %v816 = vrot.slane %v802, %v815
  %v817 = vcombine.high %v809, %v809
  %v818 = vcombine.high %v816, %v816
  %v819 = vcombine.high %v371, %v371
  %v821 = vunpack.c.l.s4 1983009808
  %v822 = vunpack.c.0.s8 %v821
  %v823 = vlaneseq
  %v824 = vshrl.u32 %v823, 7
  %v825 = vsub.s32 %v822, %v824
  %v826 = vrot.slane %v371, %v825
  %v828 = vunpack.c.l.s4 1983009808
  %v829 = vunpack.c.0.s8 %v828
  %v830 = vlaneseq
  %v831 = vshrl.u32 %v830, 7
  %v832 = vsub.s32 %v829, %v831
  %v833 = vrot.slane %v819, %v832
  %v834 = vcombine.high %v826, %v826
  %v835 = vcombine.high %v833, %v833
  %v836 = vcombine.high %v372, %v372
  %v838 = vunpack.c.l.s4 1983009808
  %v839 = vunpack.c.0.s8 %v838
  %v840 = vlaneseq
  %v841 = vshrl.u32 %v840, 7
  %v842 = vsub.s32 %v839, %v841
  %v843 = vrot.slane %v372, %v842
  %v845 = vunpack.c.l.s4 1983009808
  %v846 = vunpack.c.0.s8 %v845
  %v847 = vlaneseq
  %v848 = vshrl.u32 %v847, 7
  %v849 = vsub.s32 %v846, %v848
  %v850 = vrot.slane %v836, %v849
  %v851 = vcombine.high %v843, %v843
  %v852 = vcombine.high %v850, %v850
  %v853 = vcombine.high %v401, %v401
  %v855 = vunpack.c.l.s4 1983009808
  %v856 = vunpack.c.0.s8 %v855
  %v857 = vlaneseq
  %v858 = vshrl.u32 %v857, 7
  %v859 = vsub.s32 %v856, %v858
  %v860 = vrot.slane %v401, %v859
  %v862 = vunpack.c.l.s4 1983009808
  %v863 = vunpack.c.0.s8 %v862
  %v864 = vlaneseq
  %v865 = vshrl.u32 %v864, 7
  %v866 = vsub.s32 %v863, %v865
  %v867 = vrot.slane %v853, %v866
  %v868 = vcombine.high %v860, %v860
  %v869 = vcombine.high %v867, %v867
  %v870 = vcombine.high %v402, %v402
  %v872 = vunpack.c.l.s4 1983009808
  %v873 = vunpack.c.0.s8 %v872
  %v874 = vlaneseq
  %v875 = vshrl.u32 %v874, 7
  %v876 = vsub.s32 %v873, %v875
  %v877 = vrot.slane %v402, %v876
  %v879 = vunpack.c.l.s4 1983009808
  %v880 = vunpack.c.0.s8 %v879
  %v881 = vlaneseq
  %v882 = vshrl.u32 %v881, 7
  %v883 = vsub.s32 %v880, %v882
  %v884 = vrot.slane %v870, %v883
  %v885 = vcombine.high %v877, %v877
  %v886 = vcombine.high %v884, %v884
  %v887 = vcombine.high %v403, %v403
  %v889 = vunpack.c.l.s4 1983009808
  %v890 = vunpack.c.0.s8 %v889
  %v891 = vlaneseq
  %v892 = vshrl.u32 %v891, 7
  %v893 = vsub.s32 %v890, %v892
  %v894 = vrot.slane %v403, %v893
  %v896 = vunpack.c.l.s4 1983009808
  %v897 = vunpack.c.0.s8 %v896
  %v898 = vlaneseq
  %v899 = vshrl.u32 %v898, 7
  %v900 = vsub.s32 %v897, %v899
  %v901 = vrot.slane %v887, %v900
  %v902 = vcombine.high %v894, %v894
  %v903 = vcombine.high %v901, %v901
  %v904 = vcombine.high %v404, %v404
  %v906 = vunpack.c.l.s4 1983009808
  %v907 = vunpack.c.0.s8 %v906
  %v908 = vlaneseq
  %v909 = vshrl.u32 %v908, 7
  %v910 = vsub.s32 %v907, %v909
  %v911 = vrot.slane %v404, %v910
  %v913 = vunpack.c.l.s4 1983009808
  %v914 = vunpack.c.0.s8 %v913
  %v915 = vlaneseq
  %v916 = vshrl.u32 %v915, 7
  %v917 = vsub.s32 %v914, %v916
  %v918 = vrot.slane %v904, %v917
  %v919 = vcombine.high %v911, %v911
  %v920 = vcombine.high %v918, %v918
  %v921 = vcombine.high %v433, %v433
  %v923 = vunpack.c.l.s4 1983009808
  %v924 = vunpack.c.0.s8 %v923
  %v925 = vlaneseq
  %v926 = vshrl.u32 %v925, 7
  %v927 = vsub.s32 %v924, %v926
  %v928 = vrot.slane %v433, %v927
  %v930 = vunpack.c.l.s4 1983009808
  %v931 = vunpack.c.0.s8 %v930
  %v932 = vlaneseq
  %v933 = vshrl.u32 %v932, 7
  %v934 = vsub.s32 %v931, %v933
  %v935 = vrot.slane %v921, %v934
  %v936 = vcombine.high %v928, %v928
  %v937 = vcombine.high %v935, %v935
  %v938 = vcombine.high %v434, %v434
  %v940 = vunpack.c.l.s4 1983009808
  %v941 = vunpack.c.0.s8 %v940
  %v942 = vlaneseq
  %v943 = vshrl.u32 %v942, 7
  %v944 = vsub.s32 %v941, %v943
  %v945 = vrot.slane %v434, %v944
  %v947 = vunpack.c.l.s4 1983009808
  %v948 = vunpack.c.0.s8 %v947
  %v949 = vlaneseq
  %v950 = vshrl.u32 %v949, 7
  %v951 = vsub.s32 %v948, %v950
  %v952 = vrot.slane %v938, %v951
  %v953 = vcombine.high %v945, %v945
  %v954 = vcombine.high %v952, %v952
  %v955 = vcombine.high %v435, %v435
  %v957 = vunpack.c.l.s4 1983009808
  %v958 = vunpack.c.0.s8 %v957
  %v959 = vlaneseq
  %v960 = vshrl.u32 %v959, 7
  %v961 = vsub.s32 %v958, %v960
  %v962 = vrot.slane %v435, %v961
  %v964 = vunpack.c.l.s4 1983009808
  %v965 = vunpack.c.0.s8 %v964
  %v966 = vlaneseq
  %v967 = vshrl.u32 %v966, 7
  %v968 = vsub.s32 %v965, %v967
  %v969 = vrot.slane %v955, %v968
  %v970 = vcombine.high %v962, %v962
  %v971 = vcombine.high %v969, %v969
  %v972 = vcombine.high %v436, %v436
  %v974 = vunpack.c.l.s4 1983009808
  %v975 = vunpack.c.0.s8 %v974
  %v976 = vlaneseq
  %v977 = vshrl.u32 %v976, 7
  %v978 = vsub.s32 %v975, %v977
  %v979 = vrot.slane %v436, %v978
  %v981 = vunpack.c.l.s4 1983009808
  %v982 = vunpack.c.0.s8 %v981
  %v983 = vlaneseq
  %v984 = vshrl.u32 %v983, 7
  %v985 = vsub.s32 %v982, %v984
  %v986 = vrot.slane %v972, %v985
  %v987 = vcombine.high %v979, %v979
  %v988 = vcombine.high %v986, %v986
  %v989 = vcombine.high %v465, %v465
  %v991 = vunpack.c.l.s4 1983009808
  %v992 = vunpack.c.0.s8 %v991
  %v993 = vlaneseq
  %v994 = vshrl.u32 %v993, 7
  %v995 = vsub.s32 %v992, %v994
  %v996 = vrot.slane %v465, %v995
  %v998 = vunpack.c.l.s4 1983009808
  %v999 = vunpack.c.0.s8 %v998
  %v1000 = vlaneseq
  %v1001 = vshrl.u32 %v1000, 7
  %v1002 = vsub.s32 %v999, %v1001
  %v1003 = vrot.slane %v989, %v1002
  %v1004 = vcombine.high %v996, %v996
  %v1005 = vcombine.high %v1003, %v1003
  %v1006 = vcombine.high %v466, %v466
  %v1008 = vunpack.c.l.s4 1983009808
  %v1009 = vunpack.c.0.s8 %v1008
  %v1010 = vlaneseq
  %v1011 = vshrl.u32 %v1010, 7
  %v1012 = vsub.s32 %v1009, %v1011
  %v1013 = vrot.slane %v466, %v1012
  %v1015 = vunpack.c.l.s4 1983009808
  %v1016 = vunpack.c.0.s8 %v1015
  %v1017 = vlaneseq
  %v1018 = vshrl.u32 %v1017, 7
  %v1019 = vsub.s32 %v1016, %v1018
  %v1020 = vrot.slane %v1006, %v1019
  %v1021 = vcombine.high %v1013, %v1013
  %v1022 = vcombine.high %v1020, %v1020
  %v1023 = vcombine.high %v467, %v467
  %v1025 = vunpack.c.l.s4 1983009808
  %v1026 = vunpack.c.0.s8 %v1025
  %v1027 = vlaneseq
  %v1028 = vshrl.u32 %v1027, 7
  %v1029 = vsub.s32 %v1026, %v1028
  %v1030 = vrot.slane %v467, %v1029
  %v1032 = vunpack.c.l.s4 1983009808
  %v1033 = vunpack.c.0.s8 %v1032
  %v1034 = vlaneseq
  %v1035 = vshrl.u32 %v1034, 7
  %v1036 = vsub.s32 %v1033, %v1035
  %v1037 = vrot.slane %v1023, %v1036
  %v1038 = vcombine.high %v1030, %v1030
  %v1039 = vcombine.high %v1037, %v1037
  %v1040 = vcombine.high %v468, %v468
  %v1042 = vunpack.c.l.s4 1983009808
  %v1043 = vunpack.c.0.s8 %v1042
  %v1044 = vlaneseq
  %v1045 = vshrl.u32 %v1044, 7
  %v1046 = vsub.s32 %v1043, %v1045
  %v1047 = vrot.slane %v468, %v1046
  %v1049 = vunpack.c.l.s4 1983009808
  %v1050 = vunpack.c.0.s8 %v1049
  %v1051 = vlaneseq
  %v1052 = vshrl.u32 %v1051, 7
  %v1053 = vsub.s32 %v1050, %v1052
  %v1054 = vrot.slane %v1040, %v1053
  %v1055 = vcombine.high %v1047, %v1047
  %v1056 = vcombine.high %v1054, %v1054
  %vm1185 = vcmask 58368
  %v1186 = vsel %vm1185, %v520, -inf
  %v1187 = vrot.slane %v1186, 4
  %v1188 = vmax.f32 %v1186, %v1187
  %v1189 = vrot.slane %v1188, 2
  %v1190 = vmax.f32 %v1188, %v1189
  %v1191 = vrot.slane %v1190, 1
  %v1192 = vmax.f32 %v1190, %v1191
  %v1193 = vsel %vm1185, %v528, -inf
  %v1194 = vrot.slane %v1193, 4
  %v1195 = vmax.f32 %v1193, %v1194
  %v1196 = vrot.slane %v1195, 2
  %v1197 = vmax.f32 %v1195, %v1196
  %v1198 = vrot.slane %v1197, 1
  %v1199 = vmax.f32 %v1197, %v1198
  %v1200 = vsel %vm1185, %v527, -inf
  %v1201 = vrot.slane %v1200, 4
  %v1202 = vmax.f32 %v1200, %v1201
  %v1203 = vrot.slane %v1202, 2
  %v1204 = vmax.f32 %v1202, %v1203
  %v1205 = vrot.slane %v1204, 1
  %v1206 = vmax.f32 %v1204, %v1205
  %v1207 = vsel %vm1185, %v529, -inf
  %v1208 = vrot.slane %v1207, 4
  %v1209 = vmax.f32 %v1207, %v1208
  %v1210 = vrot.slane %v1209, 2
  %v1211 = vmax.f32 %v1209, %v1210
  %v1212 = vrot.slane %v1211, 1
  %v1213 = vmax.f32 %v1211, %v1212
  %v1214 = vsel %vm1185, %v537, -inf
  %v1215 = vrot.slane %v1214, 4
  %v1216 = vmax.f32 %v1214, %v1215
  %v1217 = vrot.slane %v1216, 2
  %v1218 = vmax.f32 %v1216, %v1217
  %v1219 = vrot.slane %v1218, 1
  %v1220 = vmax.f32 %v1218, %v1219
  %v1221 = vsel %vm1185, %v545, -inf
  %v1222 = vrot.slane %v1221, 4
  %v1223 = vmax.f32 %v1221, %v1222
  %v1224 = vrot.slane %v1223, 2
  %v1225 = vmax.f32 %v1223, %v1224
  %v1226 = vrot.slane %v1225, 1
  %v1227 = vmax.f32 %v1225, %v1226
  %v1228 = vsel %vm1185, %v544, -inf
  %v1229 = vrot.slane %v1228, 4
  %v1230 = vmax.f32 %v1228, %v1229
  %v1231 = vrot.slane %v1230, 2
  %v1232 = vmax.f32 %v1230, %v1231
  %v1233 = vrot.slane %v1232, 1
  %v1234 = vmax.f32 %v1232, %v1233
  %v1235 = vsel %vm1185, %v546, -inf
  %v1236 = vrot.slane %v1235, 4
  %v1237 = vmax.f32 %v1235, %v1236
  %v1238 = vrot.slane %v1237, 2
  %v1239 = vmax.f32 %v1237, %v1238
  %v1240 = vrot.slane %v1239, 1
  %v1241 = vmax.f32 %v1239, %v1240
  %v1242 = vsel %vm1185, %v554, -inf
  %v1243 = vrot.slane %v1242, 4
  %v1244 = vmax.f32 %v1242, %v1243
  %v1245 = vrot.slane %v1244, 2
  %v1246 = vmax.f32 %v1244, %v1245
  %v1247 = vrot.slane %v1246, 1
  %v1248 = vmax.f32 %v1246, %v1247
  %v1249 = vsel %vm1185, %v562, -inf
  %v1250 = vrot.slane %v1249, 4
  %v1251 = vmax.f32 %v1249, %v1250
  %v1252 = vrot.slane %v1251, 2
  %v1253 = vmax.f32 %v1251, %v1252
  %v1254 = vrot.slane %v1253, 1
  %v1255 = vmax.f32 %v1253, %v1254
  %v1256 = vsel %vm1185, %v561, -inf
  %v1257 = vrot.slane %v1256, 4
  %v1258 = vmax.f32 %v1256, %v1257
  %v1259 = vrot.slane %v1258, 2
  %v1260 = vmax.f32 %v1258, %v1259
  %v1261 = vrot.slane %v1260, 1
  %v1262 = vmax.f32 %v1260, %v1261
  %v1263 = vsel %vm1185, %v563, -inf
  %v1264 = vrot.slane %v1263, 4
  %v1265 = vmax.f32 %v1263, %v1264
  %v1266 = vrot.slane %v1265, 2
  %v1267 = vmax.f32 %v1265, %v1266
  %v1268 = vrot.slane %v1267, 1
  %v1269 = vmax.f32 %v1267, %v1268
  %v1270 = vsel %vm1185, %v571, -inf
  %v1271 = vrot.slane %v1270, 4
  %v1272 = vmax.f32 %v1270, %v1271
  %v1273 = vrot.slane %v1272, 2
  %v1274 = vmax.f32 %v1272, %v1273
  %v1275 = vrot.slane %v1274, 1
  %v1276 = vmax.f32 %v1274, %v1275
  %v1277 = vsel %vm1185, %v579, -inf
  %v1278 = vrot.slane %v1277, 4
  %v1279 = vmax.f32 %v1277, %v1278
  %v1280 = vrot.slane %v1279, 2
  %v1281 = vmax.f32 %v1279, %v1280
  %v1282 = vrot.slane %v1281, 1
  %v1283 = vmax.f32 %v1281, %v1282
  %v1284 = vsel %vm1185, %v578, -inf
  %v1285 = vrot.slane %v1284, 4
  %v1286 = vmax.f32 %v1284, %v1285
  %v1287 = vrot.slane %v1286, 2
  %v1288 = vmax.f32 %v1286, %v1287
  %v1289 = vrot.slane %v1288, 1
  %v1290 = vmax.f32 %v1288, %v1289
  %v1291 = vsel %vm1185, %v580, -inf
  %v1292 = vrot.slane %v1291, 4
  %v1293 = vmax.f32 %v1291, %v1292
  %v1294 = vrot.slane %v1293, 2
  %v1295 = vmax.f32 %v1293, %v1294
  %v1296 = vrot.slane %v1295, 1
  %v1297 = vmax.f32 %v1295, %v1296
  %v1298 = vsel %vm1185, %v588, -inf
  %v1299 = vrot.slane %v1298, 4
  %v1300 = vmax.f32 %v1298, %v1299
  %v1301 = vrot.slane %v1300, 2
  %v1302 = vmax.f32 %v1300, %v1301
  %v1303 = vrot.slane %v1302, 1
  %v1304 = vmax.f32 %v1302, %v1303
  %v1305 = vsel %vm1185, %v596, -inf
  %v1306 = vrot.slane %v1305, 4
  %v1307 = vmax.f32 %v1305, %v1306
  %v1308 = vrot.slane %v1307, 2
  %v1309 = vmax.f32 %v1307, %v1308
  %v1310 = vrot.slane %v1309, 1
  %v1311 = vmax.f32 %v1309, %v1310
  %v1312 = vsel %vm1185, %v595, -inf
  %v1313 = vrot.slane %v1312, 4
  %v1314 = vmax.f32 %v1312, %v1313
  %v1315 = vrot.slane %v1314, 2
  %v1316 = vmax.f32 %v1314, %v1315
  %v1317 = vrot.slane %v1316, 1
  %v1318 = vmax.f32 %v1316, %v1317
  %v1319 = vsel %vm1185, %v597, -inf
  %v1320 = vrot.slane %v1319, 4
  %v1321 = vmax.f32 %v1319, %v1320
  %v1322 = vrot.slane %v1321, 2
  %v1323 = vmax.f32 %v1321, %v1322
  %v1324 = vrot.slane %v1323, 1
  %v1325 = vmax.f32 %v1323, %v1324
  %v1326 = vsel %vm1185, %v605, -inf
  %v1327 = vrot.slane %v1326, 4
  %v1328 = vmax.f32 %v1326, %v1327
  %v1329 = vrot.slane %v1328, 2
  %v1330 = vmax.f32 %v1328, %v1329
  %v1331 = vrot.slane %v1330, 1
  %v1332 = vmax.f32 %v1330, %v1331
  %v1333 = vsel %vm1185, %v613, -inf
  %v1334 = vrot.slane %v1333, 4
  %v1335 = vmax.f32 %v1333, %v1334
  %v1336 = vrot.slane %v1335, 2
  %v1337 = vmax.f32 %v1335, %v1336
  %v1338 = vrot.slane %v1337, 1
  %v1339 = vmax.f32 %v1337, %v1338
  %v1340 = vsel %vm1185, %v612, -inf
  %v1341 = vrot.slane %v1340, 4
  %v1342 = vmax.f32 %v1340, %v1341
  %v1343 = vrot.slane %v1342, 2
  %v1344 = vmax.f32 %v1342, %v1343
  %v1345 = vrot.slane %v1344, 1
  %v1346 = vmax.f32 %v1344, %v1345
  %v1347 = vsel %vm1185, %v614, -inf
  %v1348 = vrot.slane %v1347, 4
  %v1349 = vmax.f32 %v1347, %v1348
  %v1350 = vrot.slane %v1349, 2
  %v1351 = vmax.f32 %v1349, %v1350
  %v1352 = vrot.slane %v1351, 1
  %v1353 = vmax.f32 %v1351, %v1352
  %v1354 = vsel %vm1185, %v622, -inf
  %v1355 = vrot.slane %v1354, 4
  %v1356 = vmax.f32 %v1354, %v1355
  %v1357 = vrot.slane %v1356, 2
  %v1358 = vmax.f32 %v1356, %v1357
  %v1359 = vrot.slane %v1358, 1
  %v1360 = vmax.f32 %v1358, %v1359
  %v1361 = vsel %vm1185, %v630, -inf
  %v1362 = vrot.slane %v1361, 4
  %v1363 = vmax.f32 %v1361, %v1362
  %v1364 = vrot.slane %v1363, 2
  %v1365 = vmax.f32 %v1363, %v1364
  %v1366 = vrot.slane %v1365, 1
  %v1367 = vmax.f32 %v1365, %v1366
  %v1368 = vsel %vm1185, %v629, -inf
  %v1369 = vrot.slane %v1368, 4
  %v1370 = vmax.f32 %v1368, %v1369
  %v1371 = vrot.slane %v1370, 2
  %v1372 = vmax.f32 %v1370, %v1371
  %v1373 = vrot.slane %v1372, 1
  %v1374 = vmax.f32 %v1372, %v1373
  %v1375 = vsel %vm1185, %v631, -inf
  %v1376 = vrot.slane %v1375, 4
  %v1377 = vmax.f32 %v1375, %v1376
  %v1378 = vrot.slane %v1377, 2
  %v1379 = vmax.f32 %v1377, %v1378
  %v1380 = vrot.slane %v1379, 1
  %v1381 = vmax.f32 %v1379, %v1380
  %v1382 = vsel %vm1185, %v639, -inf
  %v1383 = vrot.slane %v1382, 4
  %v1384 = vmax.f32 %v1382, %v1383
  %v1385 = vrot.slane %v1384, 2
  %v1386 = vmax.f32 %v1384, %v1385
  %v1387 = vrot.slane %v1386, 1
  %v1388 = vmax.f32 %v1386, %v1387
  %v1389 = vsel %vm1185, %v647, -inf
  %v1390 = vrot.slane %v1389, 4
  %v1391 = vmax.f32 %v1389, %v1390
  %v1392 = vrot.slane %v1391, 2
  %v1393 = vmax.f32 %v1391, %v1392
  %v1394 = vrot.slane %v1393, 1
  %v1395 = vmax.f32 %v1393, %v1394
  %v1396 = vsel %vm1185, %v646, -inf
  %v1397 = vrot.slane %v1396, 4
  %v1398 = vmax.f32 %v1396, %v1397
  %v1399 = vrot.slane %v1398, 2
  %v1400 = vmax.f32 %v1398, %v1399
  %v1401 = vrot.slane %v1400, 1
  %v1402 = vmax.f32 %v1400, %v1401
  %v1403 = vsel %vm1185, %v648, -inf
  %v1404 = vrot.slane %v1403, 4
  %v1405 = vmax.f32 %v1403, %v1404
  %v1406 = vrot.slane %v1405, 2
  %v1407 = vmax.f32 %v1405, %v1406
  %v1408 = vrot.slane %v1407, 1
  %v1409 = vmax.f32 %v1407, %v1408
  %v1410 = vsel %vm1185, %v656, -inf
  %v1411 = vrot.slane %v1410, 4
  %v1412 = vmax.f32 %v1410, %v1411
  %v1413 = vrot.slane %v1412, 2
  %v1414 = vmax.f32 %v1412, %v1413
  %v1415 = vrot.slane %v1414, 1
  %v1416 = vmax.f32 %v1414, %v1415
  %v1417 = vsel %vm1185, %v664, -inf
  %v1418 = vrot.slane %v1417, 4
  %v1419 = vmax.f32 %v1417, %v1418
  %v1420 = vrot.slane %v1419, 2
  %v1421 = vmax.f32 %v1419, %v1420
  %v1422 = vrot.slane %v1421, 1
  %v1423 = vmax.f32 %v1421, %v1422
  %v1424 = vsel %vm1185, %v663, -inf
  %v1425 = vrot.slane %v1424, 4
  %v1426 = vmax.f32 %v1424, %v1425
  %v1427 = vrot.slane %v1426, 2
  %v1428 = vmax.f32 %v1426, %v1427
  %v1429 = vrot.slane %v1428, 1
  %v1430 = vmax.f32 %v1428, %v1429
  %v1431 = vsel %vm1185, %v665, -inf
  %v1432 = vrot.slane %v1431, 4
  %v1433 = vmax.f32 %v1431, %v1432
  %v1434 = vrot.slane %v1433, 2
  %v1435 = vmax.f32 %v1433, %v1434
  %v1436 = vrot.slane %v1435, 1
  %v1437 = vmax.f32 %v1435, %v1436
  %v1438 = vsel %vm1185, %v673, -inf
  %v1439 = vrot.slane %v1438, 4
  %v1440 = vmax.f32 %v1438, %v1439
  %v1441 = vrot.slane %v1440, 2
  %v1442 = vmax.f32 %v1440, %v1441
  %v1443 = vrot.slane %v1442, 1
  %v1444 = vmax.f32 %v1442, %v1443
  %v1445 = vsel %vm1185, %v681, -inf
  %v1446 = vrot.slane %v1445, 4
  %v1447 = vmax.f32 %v1445, %v1446
  %v1448 = vrot.slane %v1447, 2
  %v1449 = vmax.f32 %v1447, %v1448
  %v1450 = vrot.slane %v1449, 1
  %v1451 = vmax.f32 %v1449, %v1450
  %v1452 = vsel %vm1185, %v680, -inf
  %v1453 = vrot.slane %v1452, 4
  %v1454 = vmax.f32 %v1452, %v1453
  %v1455 = vrot.slane %v1454, 2
  %v1456 = vmax.f32 %v1454, %v1455
  %v1457 = vrot.slane %v1456, 1
  %v1458 = vmax.f32 %v1456, %v1457
  %v1459 = vsel %vm1185, %v682, -inf
  %v1460 = vrot.slane %v1459, 4
  %v1461 = vmax.f32 %v1459, %v1460
  %v1462 = vrot.slane %v1461, 2
  %v1463 = vmax.f32 %v1461, %v1462
  %v1464 = vrot.slane %v1463, 1
  %v1465 = vmax.f32 %v1463, %v1464
  %v1466 = vsel %vm1185, %v690, -inf
  %v1467 = vrot.slane %v1466, 4
  %v1468 = vmax.f32 %v1466, %v1467
  %v1469 = vrot.slane %v1468, 2
  %v1470 = vmax.f32 %v1468, %v1469
  %v1471 = vrot.slane %v1470, 1
  %v1472 = vmax.f32 %v1470, %v1471
  %v1473 = vsel %vm1185, %v698, -inf
  %v1474 = vrot.slane %v1473, 4
  %v1475 = vmax.f32 %v1473, %v1474
  %v1476 = vrot.slane %v1475, 2
  %v1477 = vmax.f32 %v1475, %v1476
  %v1478 = vrot.slane %v1477, 1
  %v1479 = vmax.f32 %v1477, %v1478
  %v1480 = vsel %vm1185, %v697, -inf
  %v1481 = vrot.slane %v1480, 4
  %v1482 = vmax.f32 %v1480, %v1481
  %v1483 = vrot.slane %v1482, 2
  %v1484 = vmax.f32 %v1482, %v1483
  %v1485 = vrot.slane %v1484, 1
  %v1486 = vmax.f32 %v1484, %v1485
  %v1487 = vsel %vm1185, %v699, -inf
  %v1488 = vrot.slane %v1487, 4
  %v1489 = vmax.f32 %v1487, %v1488
  %v1490 = vrot.slane %v1489, 2
  %v1491 = vmax.f32 %v1489, %v1490
  %v1492 = vrot.slane %v1491, 1
  %v1493 = vmax.f32 %v1491, %v1492
  %v1494 = vsel %vm1185, %v707, -inf
  %v1495 = vrot.slane %v1494, 4
  %v1496 = vmax.f32 %v1494, %v1495
  %v1497 = vrot.slane %v1496, 2
  %v1498 = vmax.f32 %v1496, %v1497
  %v1499 = vrot.slane %v1498, 1
  %v1500 = vmax.f32 %v1498, %v1499
  %v1501 = vsel %vm1185, %v715, -inf
  %v1502 = vrot.slane %v1501, 4
  %v1503 = vmax.f32 %v1501, %v1502
  %v1504 = vrot.slane %v1503, 2
  %v1505 = vmax.f32 %v1503, %v1504
  %v1506 = vrot.slane %v1505, 1
  %v1507 = vmax.f32 %v1505, %v1506
  %v1508 = vsel %vm1185, %v714, -inf
  %v1509 = vrot.slane %v1508, 4
  %v1510 = vmax.f32 %v1508, %v1509
  %v1511 = vrot.slane %v1510, 2
  %v1512 = vmax.f32 %v1510, %v1511
  %v1513 = vrot.slane %v1512, 1
  %v1514 = vmax.f32 %v1512, %v1513
  %v1515 = vsel %vm1185, %v716, -inf
  %v1516 = vrot.slane %v1515, 4
  %v1517 = vmax.f32 %v1515, %v1516
  %v1518 = vrot.slane %v1517, 2
  %v1519 = vmax.f32 %v1517, %v1518
  %v1520 = vrot.slane %v1519, 1
  %v1521 = vmax.f32 %v1519, %v1520
  %v1522 = vsel %vm1185, %v724, -inf
  %v1523 = vrot.slane %v1522, 4
  %v1524 = vmax.f32 %v1522, %v1523
  %v1525 = vrot.slane %v1524, 2
  %v1526 = vmax.f32 %v1524, %v1525
  %v1527 = vrot.slane %v1526, 1
  %v1528 = vmax.f32 %v1526, %v1527
  %v1529 = vsel %vm1185, %v732, -inf
  %v1530 = vrot.slane %v1529, 4
  %v1531 = vmax.f32 %v1529, %v1530
  %v1532 = vrot.slane %v1531, 2
  %v1533 = vmax.f32 %v1531, %v1532
  %v1534 = vrot.slane %v1533, 1
  %v1535 = vmax.f32 %v1533, %v1534
  %v1536 = vsel %vm1185, %v731, -inf
  %v1537 = vrot.slane %v1536, 4
  %v1538 = vmax.f32 %v1536, %v1537
  %v1539 = vrot.slane %v1538, 2
  %v1540 = vmax.f32 %v1538, %v1539
  %v1541 = vrot.slane %v1540, 1
  %v1542 = vmax.f32 %v1540, %v1541
  %v1543 = vsel %vm1185, %v733, -inf
  %v1544 = vrot.slane %v1543, 4
  %v1545 = vmax.f32 %v1543, %v1544
  %v1546 = vrot.slane %v1545, 2
  %v1547 = vmax.f32 %v1545, %v1546
  %v1548 = vrot.slane %v1547, 1
  %v1549 = vmax.f32 %v1547, %v1548
  %v1550 = vsel %vm1185, %v741, -inf
  %v1551 = vrot.slane %v1550, 4
  %v1552 = vmax.f32 %v1550, %v1551
  %v1553 = vrot.slane %v1552, 2
  %v1554 = vmax.f32 %v1552, %v1553
  %v1555 = vrot.slane %v1554, 1
  %v1556 = vmax.f32 %v1554, %v1555
  %v1557 = vsel %vm1185, %v749, -inf
  %v1558 = vrot.slane %v1557, 4
  %v1559 = vmax.f32 %v1557, %v1558
  %v1560 = vrot.slane %v1559, 2
  %v1561 = vmax.f32 %v1559, %v1560
  %v1562 = vrot.slane %v1561, 1
  %v1563 = vmax.f32 %v1561, %v1562
  %v1564 = vsel %vm1185, %v748, -inf
  %v1565 = vrot.slane %v1564, 4
  %v1566 = vmax.f32 %v1564, %v1565
  %v1567 = vrot.slane %v1566, 2
  %v1568 = vmax.f32 %v1566, %v1567
  %v1569 = vrot.slane %v1568, 1
  %v1570 = vmax.f32 %v1568, %v1569
  %v1571 = vsel %vm1185, %v750, -inf
  %v1572 = vrot.slane %v1571, 4
  %v1573 = vmax.f32 %v1571, %v1572
  %v1574 = vrot.slane %v1573, 2
  %v1575 = vmax.f32 %v1573, %v1574
  %v1576 = vrot.slane %v1575, 1
  %v1577 = vmax.f32 %v1575, %v1576
  %v1578 = vsel %vm1185, %v758, -inf
  %v1579 = vrot.slane %v1578, 4
  %v1580 = vmax.f32 %v1578, %v1579
  %v1581 = vrot.slane %v1580, 2
  %v1582 = vmax.f32 %v1580, %v1581
  %v1583 = vrot.slane %v1582, 1
  %v1584 = vmax.f32 %v1582, %v1583
  %v1585 = vsel %vm1185, %v766, -inf
  %v1586 = vrot.slane %v1585, 4
  %v1587 = vmax.f32 %v1585, %v1586
  %v1588 = vrot.slane %v1587, 2
  %v1589 = vmax.f32 %v1587, %v1588
  %v1590 = vrot.slane %v1589, 1
  %v1591 = vmax.f32 %v1589, %v1590
  %v1592 = vsel %vm1185, %v765, -inf
  %v1593 = vrot.slane %v1592, 4
  %v1594 = vmax.f32 %v1592, %v1593
  %v1595 = vrot.slane %v1594, 2
  %v1596 = vmax.f32 %v1594, %v1595
  %v1597 = vrot.slane %v1596, 1
  %v1598 = vmax.f32 %v1596, %v1597
  %v1599 = vsel %vm1185, %v767, -inf
  %v1600 = vrot.slane %v1599, 4
  %v1601 = vmax.f32 %v1599, %v1600
  %v1602 = vrot.slane %v1601, 2
  %v1603 = vmax.f32 %v1601, %v1602
  %v1604 = vrot.slane %v1603, 1
  %v1605 = vmax.f32 %v1603, %v1604
  %v1606 = vsel %vm1185, %v775, -inf
  %v1607 = vrot.slane %v1606, 4
  %v1608 = vmax.f32 %v1606, %v1607
  %v1609 = vrot.slane %v1608, 2
  %v1610 = vmax.f32 %v1608, %v1609
  %v1611 = vrot.slane %v1610, 1
  %v1612 = vmax.f32 %v1610, %v1611
  %v1613 = vsel %vm1185, %v783, -inf
  %v1614 = vrot.slane %v1613, 4
  %v1615 = vmax.f32 %v1613, %v1614
  %v1616 = vrot.slane %v1615, 2
  %v1617 = vmax.f32 %v1615, %v1616
  %v1618 = vrot.slane %v1617, 1
  %v1619 = vmax.f32 %v1617, %v1618
  %v1620 = vsel %vm1185, %v782, -inf
  %v1621 = vrot.slane %v1620, 4
  %v1622 = vmax.f32 %v1620, %v1621
  %v1623 = vrot.slane %v1622, 2
  %v1624 = vmax.f32 %v1622, %v1623
  %v1625 = vrot.slane %v1624, 1
  %v1626 = vmax.f32 %v1624, %v1625
  %v1627 = vsel %vm1185, %v784, -inf
  %v1628 = vrot.slane %v1627, 4
  %v1629 = vmax.f32 %v1627, %v1628
  %v1630 = vrot.slane %v1629, 2
  %v1631 = vmax.f32 %v1629, %v1630
  %v1632 = vrot.slane %v1631, 1
  %v1633 = vmax.f32 %v1631, %v1632
  %v1634 = vsel %vm1185, %v792, -inf
  %v1635 = vrot.slane %v1634, 4
  %v1636 = vmax.f32 %v1634, %v1635
  %v1637 = vrot.slane %v1636, 2
  %v1638 = vmax.f32 %v1636, %v1637
  %v1639 = vrot.slane %v1638, 1
  %v1640 = vmax.f32 %v1638, %v1639
  %v1641 = vsel %vm1185, %v800, -inf
  %v1642 = vrot.slane %v1641, 4
  %v1643 = vmax.f32 %v1641, %v1642
  %v1644 = vrot.slane %v1643, 2
  %v1645 = vmax.f32 %v1643, %v1644
  %v1646 = vrot.slane %v1645, 1
  %v1647 = vmax.f32 %v1645, %v1646
  %v1648 = vsel %vm1185, %v799, -inf
  %v1649 = vrot.slane %v1648, 4
  %v1650 = vmax.f32 %v1648, %v1649
  %v1651 = vrot.slane %v1650, 2
  %v1652 = vmax.f32 %v1650, %v1651
  %v1653 = vrot.slane %v1652, 1
  %v1654 = vmax.f32 %v1652, %v1653
  %v1655 = vsel %vm1185, %v801, -inf
  %v1656 = vrot.slane %v1655, 4
  %v1657 = vmax.f32 %v1655, %v1656
  %v1658 = vrot.slane %v1657, 2
  %v1659 = vmax.f32 %v1657, %v1658
  %v1660 = vrot.slane %v1659, 1
  %v1661 = vmax.f32 %v1659, %v1660
  %v1662 = vsel %vm1185, %v809, -inf
  %v1663 = vrot.slane %v1662, 4
  %v1664 = vmax.f32 %v1662, %v1663
  %v1665 = vrot.slane %v1664, 2
  %v1666 = vmax.f32 %v1664, %v1665
  %v1667 = vrot.slane %v1666, 1
  %v1668 = vmax.f32 %v1666, %v1667
  %v1669 = vsel %vm1185, %v817, -inf
  %v1670 = vrot.slane %v1669, 4
  %v1671 = vmax.f32 %v1669, %v1670
  %v1672 = vrot.slane %v1671, 2
  %v1673 = vmax.f32 %v1671, %v1672
  %v1674 = vrot.slane %v1673, 1
  %v1675 = vmax.f32 %v1673, %v1674
  %v1676 = vsel %vm1185, %v816, -inf
  %v1677 = vrot.slane %v1676, 4
  %v1678 = vmax.f32 %v1676, %v1677
  %v1679 = vrot.slane %v1678, 2
  %v1680 = vmax.f32 %v1678, %v1679
  %v1681 = vrot.slane %v1680, 1
  %v1682 = vmax.f32 %v1680, %v1681
  %v1683 = vsel %vm1185, %v818, -inf
  %v1684 = vrot.slane %v1683, 4
  %v1685 = vmax.f32 %v1683, %v1684
  %v1686 = vrot.slane %v1685, 2
  %v1687 = vmax.f32 %v1685, %v1686
  %v1688 = vrot.slane %v1687, 1
  %v1689 = vmax.f32 %v1687, %v1688
  %v1690 = vsel %vm1185, %v826, -inf
  %v1691 = vrot.slane %v1690, 4
  %v1692 = vmax.f32 %v1690, %v1691
  %v1693 = vrot.slane %v1692, 2
  %v1694 = vmax.f32 %v1692, %v1693
  %v1695 = vrot.slane %v1694, 1
  %v1696 = vmax.f32 %v1694, %v1695
  %v1697 = vsel %vm1185, %v834, -inf
  %v1698 = vrot.slane %v1697, 4
  %v1699 = vmax.f32 %v1697, %v1698
  %v1700 = vrot.slane %v1699, 2
  %v1701 = vmax.f32 %v1699, %v1700
  %v1702 = vrot.slane %v1701, 1
  %v1703 = vmax.f32 %v1701, %v1702
  %v1704 = vsel %vm1185, %v833, -inf
  %v1705 = vrot.slane %v1704, 4
  %v1706 = vmax.f32 %v1704, %v1705
  %v1707 = vrot.slane %v1706, 2
  %v1708 = vmax.f32 %v1706, %v1707
  %v1709 = vrot.slane %v1708, 1
  %v1710 = vmax.f32 %v1708, %v1709
  %v1711 = vsel %vm1185, %v835, -inf
  %v1712 = vrot.slane %v1711, 4
  %v1713 = vmax.f32 %v1711, %v1712
  %v1714 = vrot.slane %v1713, 2
  %v1715 = vmax.f32 %v1713, %v1714
  %v1716 = vrot.slane %v1715, 1
  %v1717 = vmax.f32 %v1715, %v1716
  %v1718 = vsel %vm1185, %v843, -inf
  %v1719 = vrot.slane %v1718, 4
  %v1720 = vmax.f32 %v1718, %v1719
  %v1721 = vrot.slane %v1720, 2
  %v1722 = vmax.f32 %v1720, %v1721
  %v1723 = vrot.slane %v1722, 1
  %v1724 = vmax.f32 %v1722, %v1723
  %v1725 = vsel %vm1185, %v851, -inf
  %v1726 = vrot.slane %v1725, 4
  %v1727 = vmax.f32 %v1725, %v1726
  %v1728 = vrot.slane %v1727, 2
  %v1729 = vmax.f32 %v1727, %v1728
  %v1730 = vrot.slane %v1729, 1
  %v1731 = vmax.f32 %v1729, %v1730
  %v1732 = vsel %vm1185, %v850, -inf
  %v1733 = vrot.slane %v1732, 4
  %v1734 = vmax.f32 %v1732, %v1733
  %v1735 = vrot.slane %v1734, 2
  %v1736 = vmax.f32 %v1734, %v1735
  %v1737 = vrot.slane %v1736, 1
  %v1738 = vmax.f32 %v1736, %v1737
  %v1739 = vsel %vm1185, %v852, -inf
  %v1740 = vrot.slane %v1739, 4
  %v1741 = vmax.f32 %v1739, %v1740
  %v1742 = vrot.slane %v1741, 2
  %v1743 = vmax.f32 %v1741, %v1742
  %v1744 = vrot.slane %v1743, 1
  %v1745 = vmax.f32 %v1743, %v1744
  %v1746 = vsel %vm1185, %v860, -inf
  %v1747 = vrot.slane %v1746, 4
  %v1748 = vmax.f32 %v1746, %v1747
  %v1749 = vrot.slane %v1748, 2
  %v1750 = vmax.f32 %v1748, %v1749
  %v1751 = vrot.slane %v1750, 1
  %v1752 = vmax.f32 %v1750, %v1751
  %v1753 = vsel %vm1185, %v868, -inf
  %v1754 = vrot.slane %v1753, 4
  %v1755 = vmax.f32 %v1753, %v1754
  %v1756 = vrot.slane %v1755, 2
  %v1757 = vmax.f32 %v1755, %v1756
  %v1758 = vrot.slane %v1757, 1
  %v1759 = vmax.f32 %v1757, %v1758
  %v1760 = vsel %vm1185, %v867, -inf
  %v1761 = vrot.slane %v1760, 4
  %v1762 = vmax.f32 %v1760, %v1761
  %v1763 = vrot.slane %v1762, 2
  %v1764 = vmax.f32 %v1762, %v1763
  %v1765 = vrot.slane %v1764, 1
  %v1766 = vmax.f32 %v1764, %v1765
  %v1767 = vsel %vm1185, %v869, -inf
  %v1768 = vrot.slane %v1767, 4
  %v1769 = vmax.f32 %v1767, %v1768
  %v1770 = vrot.slane %v1769, 2
  %v1771 = vmax.f32 %v1769, %v1770
  %v1772 = vrot.slane %v1771, 1
  %v1773 = vmax.f32 %v1771, %v1772
  %v1774 = vsel %vm1185, %v877, -inf
  %v1775 = vrot.slane %v1774, 4
  %v1776 = vmax.f32 %v1774, %v1775
  %v1777 = vrot.slane %v1776, 2
  %v1778 = vmax.f32 %v1776, %v1777
  %v1779 = vrot.slane %v1778, 1
  %v1780 = vmax.f32 %v1778, %v1779
  %v1781 = vsel %vm1185, %v885, -inf
  %v1782 = vrot.slane %v1781, 4
  %v1783 = vmax.f32 %v1781, %v1782
  %v1784 = vrot.slane %v1783, 2
  %v1785 = vmax.f32 %v1783, %v1784
  %v1786 = vrot.slane %v1785, 1
  %v1787 = vmax.f32 %v1785, %v1786
  %v1788 = vsel %vm1185, %v884, -inf
  %v1789 = vrot.slane %v1788, 4
  %v1790 = vmax.f32 %v1788, %v1789
  %v1791 = vrot.slane %v1790, 2
  %v1792 = vmax.f32 %v1790, %v1791
  %v1793 = vrot.slane %v1792, 1
  %v1794 = vmax.f32 %v1792, %v1793
  %v1795 = vsel %vm1185, %v886, -inf
  %v1796 = vrot.slane %v1795, 4
  %v1797 = vmax.f32 %v1795, %v1796
  %v1798 = vrot.slane %v1797, 2
  %v1799 = vmax.f32 %v1797, %v1798
  %v1800 = vrot.slane %v1799, 1
  %v1801 = vmax.f32 %v1799, %v1800
  %v1802 = vsel %vm1185, %v894, -inf
  %v1803 = vrot.slane %v1802, 4
  %v1804 = vmax.f32 %v1802, %v1803
  %v1805 = vrot.slane %v1804, 2
  %v1806 = vmax.f32 %v1804, %v1805
  %v1807 = vrot.slane %v1806, 1
  %v1808 = vmax.f32 %v1806, %v1807
  %v1809 = vsel %vm1185, %v902, -inf
  %v1810 = vrot.slane %v1809, 4
  %v1811 = vmax.f32 %v1809, %v1810
  %v1812 = vrot.slane %v1811, 2
  %v1813 = vmax.f32 %v1811, %v1812
  %v1814 = vrot.slane %v1813, 1
  %v1815 = vmax.f32 %v1813, %v1814
  %v1816 = vsel %vm1185, %v901, -inf
  %v1817 = vrot.slane %v1816, 4
  %v1818 = vmax.f32 %v1816, %v1817
  %v1819 = vrot.slane %v1818, 2
  %v1820 = vmax.f32 %v1818, %v1819
  %v1821 = vrot.slane %v1820, 1
  %v1822 = vmax.f32 %v1820, %v1821
  %v1823 = vsel %vm1185, %v903, -inf
  %v1824 = vrot.slane %v1823, 4
  %v1825 = vmax.f32 %v1823, %v1824
  %v1826 = vrot.slane %v1825, 2
  %v1827 = vmax.f32 %v1825, %v1826
  %v1828 = vrot.slane %v1827, 1
  %v1829 = vmax.f32 %v1827, %v1828
  %v1830 = vsel %vm1185, %v911, -inf
  %v1831 = vrot.slane %v1830, 4
  %v1832 = vmax.f32 %v1830, %v1831
  %v1833 = vrot.slane %v1832, 2
  %v1834 = vmax.f32 %v1832, %v1833
  %v1835 = vrot.slane %v1834, 1
  %v1836 = vmax.f32 %v1834, %v1835
  %v1837 = vsel %vm1185, %v919, -inf
  %v1838 = vrot.slane %v1837, 4
  %v1839 = vmax.f32 %v1837, %v1838
  %v1840 = vrot.slane %v1839, 2
  %v1841 = vmax.f32 %v1839, %v1840
  %v1842 = vrot.slane %v1841, 1
  %v1843 = vmax.f32 %v1841, %v1842
  %v1844 = vsel %vm1185, %v918, -inf
  %v1845 = vrot.slane %v1844, 4
  %v1846 = vmax.f32 %v1844, %v1845
  %v1847 = vrot.slane %v1846, 2
  %v1848 = vmax.f32 %v1846, %v1847
  %v1849 = vrot.slane %v1848, 1
  %v1850 = vmax.f32 %v1848, %v1849
  %v1851 = vsel %vm1185, %v920, -inf
  %v1852 = vrot.slane %v1851, 4
  %v1853 = vmax.f32 %v1851, %v1852
  %v1854 = vrot.slane %v1853, 2
  %v1855 = vmax.f32 %v1853, %v1854
  %v1856 = vrot.slane %v1855, 1
  %v1857 = vmax.f32 %v1855, %v1856
  %v1858 = vsel %vm1185, %v928, -inf
  %v1859 = vrot.slane %v1858, 4
  %v1860 = vmax.f32 %v1858, %v1859
  %v1861 = vrot.slane %v1860, 2
  %v1862 = vmax.f32 %v1860, %v1861
  %v1863 = vrot.slane %v1862, 1
  %v1864 = vmax.f32 %v1862, %v1863
  %v1865 = vsel %vm1185, %v936, -inf
  %v1866 = vrot.slane %v1865, 4
  %v1867 = vmax.f32 %v1865, %v1866
  %v1868 = vrot.slane %v1867, 2
  %v1869 = vmax.f32 %v1867, %v1868
  %v1870 = vrot.slane %v1869, 1
  %v1871 = vmax.f32 %v1869, %v1870
  %v1872 = vsel %vm1185, %v935, -inf
  %v1873 = vrot.slane %v1872, 4
  %v1874 = vmax.f32 %v1872, %v1873
  %v1875 = vrot.slane %v1874, 2
  %v1876 = vmax.f32 %v1874, %v1875
  %v1877 = vrot.slane %v1876, 1
  %v1878 = vmax.f32 %v1876, %v1877
  %v1879 = vsel %vm1185, %v937, -inf
  %v1880 = vrot.slane %v1879, 4
  %v1881 = vmax.f32 %v1879, %v1880
  %v1882 = vrot.slane %v1881, 2
  %v1883 = vmax.f32 %v1881, %v1882
  %v1884 = vrot.slane %v1883, 1
  %v1885 = vmax.f32 %v1883, %v1884
  %v1886 = vsel %vm1185, %v945, -inf
  %v1887 = vrot.slane %v1886, 4
  %v1888 = vmax.f32 %v1886, %v1887
  %v1889 = vrot.slane %v1888, 2
  %v1890 = vmax.f32 %v1888, %v1889
  %v1891 = vrot.slane %v1890, 1
  %v1892 = vmax.f32 %v1890, %v1891
  %v1893 = vsel %vm1185, %v953, -inf
  %v1894 = vrot.slane %v1893, 4
  %v1895 = vmax.f32 %v1893, %v1894
  %v1896 = vrot.slane %v1895, 2
  %v1897 = vmax.f32 %v1895, %v1896
  %v1898 = vrot.slane %v1897, 1
  %v1899 = vmax.f32 %v1897, %v1898
  %v1900 = vsel %vm1185, %v952, -inf
  %v1901 = vrot.slane %v1900, 4
  %v1902 = vmax.f32 %v1900, %v1901
  %v1903 = vrot.slane %v1902, 2
  %v1904 = vmax.f32 %v1902, %v1903
  %v1905 = vrot.slane %v1904, 1
  %v1906 = vmax.f32 %v1904, %v1905
  %v1907 = vsel %vm1185, %v954, -inf
  %v1908 = vrot.slane %v1907, 4
  %v1909 = vmax.f32 %v1907, %v1908
  %v1910 = vrot.slane %v1909, 2
  %v1911 = vmax.f32 %v1909, %v1910
  %v1912 = vrot.slane %v1911, 1
  %v1913 = vmax.f32 %v1911, %v1912
  %v1914 = vsel %vm1185, %v962, -inf
  %v1915 = vrot.slane %v1914, 4
  %v1916 = vmax.f32 %v1914, %v1915
  %v1917 = vrot.slane %v1916, 2
  %v1918 = vmax.f32 %v1916, %v1917
  %v1919 = vrot.slane %v1918, 1
  %v1920 = vmax.f32 %v1918, %v1919
  %v1921 = vsel %vm1185, %v970, -inf
  %v1922 = vrot.slane %v1921, 4
  %v1923 = vmax.f32 %v1921, %v1922
  %v1924 = vrot.slane %v1923, 2
  %v1925 = vmax.f32 %v1923, %v1924
  %v1926 = vrot.slane %v1925, 1
  %v1927 = vmax.f32 %v1925, %v1926
  %v1928 = vsel %vm1185, %v969, -inf
  %v1929 = vrot.slane %v1928, 4
  %v1930 = vmax.f32 %v1928, %v1929
  %v1931 = vrot.slane %v1930, 2
  %v1932 = vmax.f32 %v1930, %v1931
  %v1933 = vrot.slane %v1932, 1
  %v1934 = vmax.f32 %v1932, %v1933
  %v1935 = vsel %vm1185, %v971, -inf
  %v1936 = vrot.slane %v1935, 4
  %v1937 = vmax.f32 %v1935, %v1936
  %v1938 = vrot.slane %v1937, 2
  %v1939 = vmax.f32 %v1937, %v1938
  %v1940 = vrot.slane %v1939, 1
  %v1941 = vmax.f32 %v1939, %v1940
  %v1942 = vsel %vm1185, %v979, -inf
  %v1943 = vrot.slane %v1942, 4
  %v1944 = vmax.f32 %v1942, %v1943
  %v1945 = vrot.slane %v1944, 2
  %v1946 = vmax.f32 %v1944, %v1945
  %v1947 = vrot.slane %v1946, 1
  %v1948 = vmax.f32 %v1946, %v1947
  %v1949 = vsel %vm1185, %v987, -inf
  %v1950 = vrot.slane %v1949, 4
  %v1951 = vmax.f32 %v1949, %v1950
  %v1952 = vrot.slane %v1951, 2
  %v1953 = vmax.f32 %v1951, %v1952
  %v1954 = vrot.slane %v1953, 1
  %v1955 = vmax.f32 %v1953, %v1954
  %v1956 = vsel %vm1185, %v986, -inf
  %v1957 = vrot.slane %v1956, 4
  %v1958 = vmax.f32 %v1956, %v1957
  %v1959 = vrot.slane %v1958, 2
  %v1960 = vmax.f32 %v1958, %v1959
  %v1961 = vrot.slane %v1960, 1
  %v1962 = vmax.f32 %v1960, %v1961
  %v1963 = vsel %vm1185, %v988, -inf
  %v1964 = vrot.slane %v1963, 4
  %v1965 = vmax.f32 %v1963, %v1964
  %v1966 = vrot.slane %v1965, 2
  %v1967 = vmax.f32 %v1965, %v1966
  %v1968 = vrot.slane %v1967, 1
  %v1969 = vmax.f32 %v1967, %v1968
  %v1970 = vsel %vm1185, %v996, -inf
  %v1971 = vrot.slane %v1970, 4
  %v1972 = vmax.f32 %v1970, %v1971
  %v1973 = vrot.slane %v1972, 2
  %v1974 = vmax.f32 %v1972, %v1973
  %v1975 = vrot.slane %v1974, 1
  %v1976 = vmax.f32 %v1974, %v1975
  %v1977 = vsel %vm1185, %v1004, -inf
  %v1978 = vrot.slane %v1977, 4
  %v1979 = vmax.f32 %v1977, %v1978
  %v1980 = vrot.slane %v1979, 2
  %v1981 = vmax.f32 %v1979, %v1980
  %v1982 = vrot.slane %v1981, 1
  %v1983 = vmax.f32 %v1981, %v1982
  %v1984 = vsel %vm1185, %v1003, -inf
  %v1985 = vrot.slane %v1984, 4
  %v1986 = vmax.f32 %v1984, %v1985
  %v1987 = vrot.slane %v1986, 2
  %v1988 = vmax.f32 %v1986, %v1987
  %v1989 = vrot.slane %v1988, 1
  %v1990 = vmax.f32 %v1988, %v1989
  %v1991 = vsel %vm1185, %v1005, -inf
  %v1992 = vrot.slane %v1991, 4
  %v1993 = vmax.f32 %v1991, %v1992
  %v1994 = vrot.slane %v1993, 2
  %v1995 = vmax.f32 %v1993, %v1994
  %v1996 = vrot.slane %v1995, 1
  %v1997 = vmax.f32 %v1995, %v1996
  %v1998 = vsel %vm1185, %v1013, -inf
  %v1999 = vrot.slane %v1998, 4
  %v2000 = vmax.f32 %v1998, %v1999
  %v2001 = vrot.slane %v2000, 2
  %v2002 = vmax.f32 %v2000, %v2001
  %v2003 = vrot.slane %v2002, 1
  %v2004 = vmax.f32 %v2002, %v2003
  %v2005 = vsel %vm1185, %v1021, -inf
  %v2006 = vrot.slane %v2005, 4
  %v2007 = vmax.f32 %v2005, %v2006
  %v2008 = vrot.slane %v2007, 2
  %v2009 = vmax.f32 %v2007, %v2008
  %v2010 = vrot.slane %v2009, 1
  %v2011 = vmax.f32 %v2009, %v2010
  %v2012 = vsel %vm1185, %v1020, -inf
  %v2013 = vrot.slane %v2012, 4
  %v2014 = vmax.f32 %v2012, %v2013
  %v2015 = vrot.slane %v2014, 2
  %v2016 = vmax.f32 %v2014, %v2015
  %v2017 = vrot.slane %v2016, 1
  %v2018 = vmax.f32 %v2016, %v2017
  %v2019 = vsel %vm1185, %v1022, -inf
  %v2020 = vrot.slane %v2019, 4
  %v2021 = vmax.f32 %v2019, %v2020
  %v2022 = vrot.slane %v2021, 2
  %v2023 = vmax.f32 %v2021, %v2022
  %v2024 = vrot.slane %v2023, 1
  %v2025 = vmax.f32 %v2023, %v2024
  %v2026 = vsel %vm1185, %v1030, -inf
  %v2027 = vrot.slane %v2026, 4
  %v2028 = vmax.f32 %v2026, %v2027
  %v2029 = vrot.slane %v2028, 2
  %v2030 = vmax.f32 %v2028, %v2029
  %v2031 = vrot.slane %v2030, 1
  %v2032 = vmax.f32 %v2030, %v2031
  %v2033 = vsel %vm1185, %v1038, -inf
  %v2034 = vrot.slane %v2033, 4
  %v2035 = vmax.f32 %v2033, %v2034
  %v2036 = vrot.slane %v2035, 2
  %v2037 = vmax.f32 %v2035, %v2036
  %v2038 = vrot.slane %v2037, 1
  %v2039 = vmax.f32 %v2037, %v2038
  %v2040 = vsel %vm1185, %v1037, -inf
  %v2041 = vrot.slane %v2040, 4
  %v2042 = vmax.f32 %v2040, %v2041
  %v2043 = vrot.slane %v2042, 2
  %v2044 = vmax.f32 %v2042, %v2043
  %v2045 = vrot.slane %v2044, 1
  %v2046 = vmax.f32 %v2044, %v2045
  %v2047 = vsel %vm1185, %v1039, -inf
  %v2048 = vrot.slane %v2047, 4
  %v2049 = vmax.f32 %v2047, %v2048
  %v2050 = vrot.slane %v2049, 2
  %v2051 = vmax.f32 %v2049, %v2050
  %v2052 = vrot.slane %v2051, 1
  %v2053 = vmax.f32 %v2051, %v2052
  %v2054 = vsel %vm1185, %v1047, -inf
  %v2055 = vrot.slane %v2054, 4
  %v2056 = vmax.f32 %v2054, %v2055
  %v2057 = vrot.slane %v2056, 2
  %v2058 = vmax.f32 %v2056, %v2057
  %v2059 = vrot.slane %v2058, 1
  %v2060 = vmax.f32 %v2058, %v2059
  %v2061 = vsel %vm1185, %v1055, -inf
  %v2062 = vrot.slane %v2061, 4
  %v2063 = vmax.f32 %v2061, %v2062
  %v2064 = vrot.slane %v2063, 2
  %v2065 = vmax.f32 %v2063, %v2064
  %v2066 = vrot.slane %v2065, 1
  %v2067 = vmax.f32 %v2065, %v2066
  %v2068 = vsel %vm1185, %v1054, -inf
  %v2069 = vrot.slane %v2068, 4
  %v2070 = vmax.f32 %v2068, %v2069
  %v2071 = vrot.slane %v2070, 2
  %v2072 = vmax.f32 %v2070, %v2071
  %v2073 = vrot.slane %v2072, 1
  %v2074 = vmax.f32 %v2072, %v2073
  %v2075 = vsel %vm1185, %v1056, -inf
  %v2076 = vrot.slane %v2075, 4
  %v2077 = vmax.f32 %v2075, %v2076
  %v2078 = vrot.slane %v2077, 2
  %v2079 = vmax.f32 %v2077, %v2078
  %v2080 = vrot.slane %v2079, 1
  %v2081 = vmax.f32 %v2079, %v2080
  %vm2210 = vcmask 1041409
  %v2211 = vsel %vm2210, %v1199, %v1192
  %vm2212 = vcmask 1042434
  %v2213 = vsel %vm2212, %v1206, %v2211
  %vm2214 = vcmask 1043459
  %v2215 = vsel %vm2214, %v1213, %v2213
  %vm2216 = vcmask 1044484
  %v2217 = vsel %vm2216, %v1220, %v2215
  %vm2218 = vcmask 1045509
  %v2219 = vsel %vm2218, %v1227, %v2217
  %vm2220 = vcmask 1046534
  %v2221 = vsel %vm2220, %v1234, %v2219
  %vm2222 = vcmask 1047559
  %v2223 = vsel %vm2222, %v1241, %v2221
  %v2224 = vsel %vm2210, %v1255, %v1248
  %v2225 = vsel %vm2212, %v1262, %v2224
  %v2226 = vsel %vm2214, %v1269, %v2225
  %v2227 = vsel %vm2216, %v1276, %v2226
  %v2228 = vsel %vm2218, %v1283, %v2227
  %v2229 = vsel %vm2220, %v1290, %v2228
  %v2230 = vsel %vm2222, %v1297, %v2229
  %v2231 = vsel %vm2210, %v1311, %v1304
  %v2232 = vsel %vm2212, %v1318, %v2231
  %v2233 = vsel %vm2214, %v1325, %v2232
  %v2234 = vsel %vm2216, %v1332, %v2233
  %v2235 = vsel %vm2218, %v1339, %v2234
  %v2236 = vsel %vm2220, %v1346, %v2235
  %v2237 = vsel %vm2222, %v1353, %v2236
  %v2238 = vsel %vm2210, %v1367, %v1360
  %v2239 = vsel %vm2212, %v1374, %v2238
  %v2240 = vsel %vm2214, %v1381, %v2239
  %v2241 = vsel %vm2216, %v1388, %v2240
  %v2242 = vsel %vm2218, %v1395, %v2241
  %v2243 = vsel %vm2220, %v1402, %v2242
  %v2244 = vsel %vm2222, %v1409, %v2243
  %v2245 = vsel %vm2210, %v1423, %v1416
  %v2246 = vsel %vm2212, %v1430, %v2245
  %v2247 = vsel %vm2214, %v1437, %v2246
  %v2248 = vsel %vm2216, %v1444, %v2247
  %v2249 = vsel %vm2218, %v1451, %v2248
  %v2250 = vsel %vm2220, %v1458, %v2249
  %v2251 = vsel %vm2222, %v1465, %v2250
  %v2252 = vsel %vm2210, %v1479, %v1472
  %v2253 = vsel %vm2212, %v1486, %v2252
  %v2254 = vsel %vm2214, %v1493, %v2253
  %v2255 = vsel %vm2216, %v1500, %v2254
  %v2256 = vsel %vm2218, %v1507, %v2255
  %v2257 = vsel %vm2220, %v1514, %v2256
  %v2258 = vsel %vm2222, %v1521, %v2257
  %v2259 = vsel %vm2210, %v1535, %v1528
  %v2260 = vsel %vm2212, %v1542, %v2259
  %v2261 = vsel %vm2214, %v1549, %v2260
  %v2262 = vsel %vm2216, %v1556, %v2261
  %v2263 = vsel %vm2218, %v1563, %v2262
  %v2264 = vsel %vm2220, %v1570, %v2263
  %v2265 = vsel %vm2222, %v1577, %v2264
  %v2266 = vsel %vm2210, %v1591, %v1584
  %v2267 = vsel %vm2212, %v1598, %v2266
  %v2268 = vsel %vm2214, %v1605, %v2267
  %v2269 = vsel %vm2216, %v1612, %v2268
  %v2270 = vsel %vm2218, %v1619, %v2269
  %v2271 = vsel %vm2220, %v1626, %v2270
  %v2272 = vsel %vm2222, %v1633, %v2271
  %v2273 = vsel %vm2210, %v1647, %v1640
  %v2274 = vsel %vm2212, %v1654, %v2273
  %v2275 = vsel %vm2214, %v1661, %v2274
  %v2276 = vsel %vm2216, %v1668, %v2275
  %v2277 = vsel %vm2218, %v1675, %v2276
  %v2278 = vsel %vm2220, %v1682, %v2277
  %v2279 = vsel %vm2222, %v1689, %v2278
  %v2280 = vsel %vm2210, %v1703, %v1696
  %v2281 = vsel %vm2212, %v1710, %v2280
  %v2282 = vsel %vm2214, %v1717, %v2281
  %v2283 = vsel %vm2216, %v1724, %v2282
  %v2284 = vsel %vm2218, %v1731, %v2283
  %v2285 = vsel %vm2220, %v1738, %v2284
  %v2286 = vsel %vm2222, %v1745, %v2285
  %v2287 = vsel %vm2210, %v1759, %v1752
  %v2288 = vsel %vm2212, %v1766, %v2287
  %v2289 = vsel %vm2214, %v1773, %v2288
  %v2290 = vsel %vm2216, %v1780, %v2289
  %v2291 = vsel %vm2218, %v1787, %v2290
  %v2292 = vsel %vm2220, %v1794, %v2291
  %v2293 = vsel %vm2222, %v1801, %v2292
  %v2294 = vsel %vm2210, %v1815, %v1808
  %v2295 = vsel %vm2212, %v1822, %v2294
  %v2296 = vsel %vm2214, %v1829, %v2295
  %v2297 = vsel %vm2216, %v1836, %v2296
  %v2298 = vsel %vm2218, %v1843, %v2297
  %v2299 = vsel %vm2220, %v1850, %v2298
  %v2300 = vsel %vm2222, %v1857, %v2299
  %v2301 = vsel %vm2210, %v1871, %v1864
  %v2302 = vsel %vm2212, %v1878, %v2301
  %v2303 = vsel %vm2214, %v1885, %v2302
  %v2304 = vsel %vm2216, %v1892, %v2303
  %v2305 = vsel %vm2218, %v1899, %v2304
  %v2306 = vsel %vm2220, %v1906, %v2305
  %v2307 = vsel %vm2222, %v1913, %v2306
  %v2308 = vsel %vm2210, %v1927, %v1920
  %v2309 = vsel %vm2212, %v1934, %v2308
  %v2310 = vsel %vm2214, %v1941, %v2309
  %v2311 = vsel %vm2216, %v1948, %v2310
  %v2312 = vsel %vm2218, %v1955, %v2311
  %v2313 = vsel %vm2220, %v1962, %v2312
  %v2314 = vsel %vm2222, %v1969, %v2313
  %v2315 = vsel %vm2210, %v1983, %v1976
  %v2316 = vsel %vm2212, %v1990, %v2315
  %v2317 = vsel %vm2214, %v1997, %v2316
  %v2318 = vsel %vm2216, %v2004, %v2317
  %v2319 = vsel %vm2218, %v2011, %v2318
  %v2320 = vsel %vm2220, %v2018, %v2319
  %v2321 = vsel %vm2222, %v2025, %v2320
  %v2322 = vsel %vm2210, %v2039, %v2032
  %v2323 = vsel %vm2212, %v2046, %v2322
  %v2324 = vsel %vm2214, %v2053, %v2323
  %v2325 = vsel %vm2216, %v2060, %v2324
  %v2326 = vsel %vm2218, %v2067, %v2325
  %v2327 = vsel %vm2220, %v2074, %v2326
  %v2328 = vsel %vm2222, %v2081, %v2327
  %v2345 = vcombine.low %v2223, %v2251
  %v2346 = vcombine.high %v2223, %v2251
  %v2348 = vunpack.c.l.s4 1983009808
  %v2349 = vunpack.c.0.s8 %v2348
  %v2350 = vlaneseq
  %v2351 = vshrl.u32 %v2350, 7
  %v2352 = vsub.s32 %v2349, %v2351
  %v2353 = vrot.slane %v2345, %v2352
  %v2355 = vunpack.c.l.s4 1983009808
  %v2356 = vunpack.c.0.s8 %v2355
  %v2357 = vlaneseq
  %v2358 = vshrl.u32 %v2357, 7
  %v2359 = vsub.s32 %v2356, %v2358
  %v2360 = vrot.slane %v2346, %v2359
  %v2361 = vcombine.low %v2237, %v2265
  %v2362 = vcombine.high %v2237, %v2265
  %v2364 = vunpack.c.l.s4 1983009808
  %v2365 = vunpack.c.0.s8 %v2364
  %v2366 = vlaneseq
  %v2367 = vshrl.u32 %v2366, 7
  %v2368 = vsub.s32 %v2365, %v2367
  %v2369 = vrot.slane %v2361, %v2368
  %v2371 = vunpack.c.l.s4 1983009808
  %v2372 = vunpack.c.0.s8 %v2371
  %v2373 = vlaneseq
  %v2374 = vshrl.u32 %v2373, 7
  %v2375 = vsub.s32 %v2372, %v2374
  %v2376 = vrot.slane %v2362, %v2375
  %v2377 = vcombine.low %v2279, %v2307
  %v2378 = vcombine.high %v2279, %v2307
  %v2380 = vunpack.c.l.s4 1983009808
  %v2381 = vunpack.c.0.s8 %v2380
  %v2382 = vlaneseq
  %v2383 = vshrl.u32 %v2382, 7
  %v2384 = vsub.s32 %v2381, %v2383
  %v2385 = vrot.slane %v2377, %v2384
  %v2387 = vunpack.c.l.s4 1983009808
  %v2388 = vunpack.c.0.s8 %v2387
  %v2389 = vlaneseq
  %v2390 = vshrl.u32 %v2389, 7
  %v2391 = vsub.s32 %v2388, %v2390
  %v2392 = vrot.slane %v2378, %v2391
  %v2393 = vcombine.low %v2293, %v2321
  %v2394 = vcombine.high %v2293, %v2321
  %v2396 = vunpack.c.l.s4 1983009808
  %v2397 = vunpack.c.0.s8 %v2396
  %v2398 = vlaneseq
  %v2399 = vshrl.u32 %v2398, 7
  %v2400 = vsub.s32 %v2397, %v2399
  %v2401 = vrot.slane %v2393, %v2400
  %v2403 = vunpack.c.l.s4 1983009808
  %v2404 = vunpack.c.0.s8 %v2403
  %v2405 = vlaneseq
  %v2406 = vshrl.u32 %v2405, 7
  %v2407 = vsub.s32 %v2404, %v2406
  %v2408 = vrot.slane %v2394, %v2407
  %v2409 = vcombine.low %v2353, %v2369
  %v2410 = vcombine.high %v2353, %v2369
  %v2412 = vunpack.c.l.s4 1934713408
  %v2413 = vunpack.c.0.s8 %v2412
  %v2414 = vlaneseq
  %v2415 = vshrl.u32 %v2414, 7
  %v2416 = vsub.s32 %v2413, %v2415
  %v2417 = vrot.slane %v2409, %v2416
  %v2419 = vunpack.c.l.s4 1934713408
  %v2420 = vunpack.c.0.s8 %v2419
  %v2421 = vlaneseq
  %v2422 = vshrl.u32 %v2421, 7
  %v2423 = vsub.s32 %v2420, %v2422
  %v2424 = vrot.slane %v2410, %v2423
  %v2425 = vcombine.low %v2360, %v2376
  %v2426 = vcombine.high %v2360, %v2376
  %v2428 = vunpack.c.l.s4 1934713408
  %v2429 = vunpack.c.0.s8 %v2428
  %v2430 = vlaneseq
  %v2431 = vshrl.u32 %v2430, 7
  %v2432 = vsub.s32 %v2429, %v2431
  %v2433 = vrot.slane %v2425, %v2432
  %v2435 = vunpack.c.l.s4 1934713408
  %v2436 = vunpack.c.0.s8 %v2435
  %v2437 = vlaneseq
  %v2438 = vshrl.u32 %v2437, 7
  %v2439 = vsub.s32 %v2436, %v2438
  %v2440 = vrot.slane %v2426, %v2439
  %v2441 = vcombine.low %v2385, %v2401
  %v2442 = vcombine.high %v2385, %v2401
  %v2444 = vunpack.c.l.s4 1934713408
  %v2445 = vunpack.c.0.s8 %v2444
  %v2446 = vlaneseq
  %v2447 = vshrl.u32 %v2446, 7
  %v2448 = vsub.s32 %v2445, %v2447
  %v2449 = vrot.slane %v2441, %v2448
  %v2451 = vunpack.c.l.s4 1934713408
  %v2452 = vunpack.c.0.s8 %v2451
  %v2453 = vlaneseq
  %v2454 = vshrl.u32 %v2453, 7
  %v2455 = vsub.s32 %v2452, %v2454
  %v2456 = vrot.slane %v2442, %v2455
  %v2457 = vcombine.low %v2392, %v2408
  %v2458 = vcombine.high %v2392, %v2408
  %v2460 = vunpack.c.l.s4 1934713408
  %v2461 = vunpack.c.0.s8 %v2460
  %v2462 = vlaneseq
  %v2463 = vshrl.u32 %v2462, 7
  %v2464 = vsub.s32 %v2461, %v2463
  %v2465 = vrot.slane %v2457, %v2464
  %v2467 = vunpack.c.l.s4 1934713408
  %v2468 = vunpack.c.0.s8 %v2467
  %v2469 = vlaneseq
  %v2470 = vshrl.u32 %v2469, 7
  %v2471 = vsub.s32 %v2468, %v2470
  %v2472 = vrot.slane %v2458, %v2471
  %v2473 = vcombine.low %v2417, %v2449
  %v2474 = vcombine.high %v2417, %v2449
  %v2475 = vcombine.low %v2424, %v2456
  %v2476 = vcombine.high %v2424, %v2456
  %v2477 = vcombine.low %v2433, %v2465
  %v2478 = vcombine.high %v2433, %v2465
  %v2479 = vcombine.low %v2440, %v2472
  %v2480 = vcombine.high %v2440, %v2472
  %v2481 = vcombine.low %v2230, %v2258
  %v2482 = vcombine.high %v2230, %v2258
  %v2484 = vunpack.c.l.s4 1983009808
  %v2485 = vunpack.c.0.s8 %v2484
  %v2486 = vlaneseq
  %v2487 = vshrl.u32 %v2486, 7
  %v2488 = vsub.s32 %v2485, %v2487
  %v2489 = vrot.slane %v2481, %v2488
  %v2491 = vunpack.c.l.s4 1983009808
  %v2492 = vunpack.c.0.s8 %v2491
  %v2493 = vlaneseq
  %v2494 = vshrl.u32 %v2493, 7
  %v2495 = vsub.s32 %v2492, %v2494
  %v2496 = vrot.slane %v2482, %v2495
  %v2497 = vcombine.low %v2244, %v2272
  %v2498 = vcombine.high %v2244, %v2272
  %v2500 = vunpack.c.l.s4 1983009808
  %v2501 = vunpack.c.0.s8 %v2500
  %v2502 = vlaneseq
  %v2503 = vshrl.u32 %v2502, 7
  %v2504 = vsub.s32 %v2501, %v2503
  %v2505 = vrot.slane %v2497, %v2504
  %v2507 = vunpack.c.l.s4 1983009808
  %v2508 = vunpack.c.0.s8 %v2507
  %v2509 = vlaneseq
  %v2510 = vshrl.u32 %v2509, 7
  %v2511 = vsub.s32 %v2508, %v2510
  %v2512 = vrot.slane %v2498, %v2511
  %v2513 = vcombine.low %v2286, %v2314
  %v2514 = vcombine.high %v2286, %v2314
  %v2516 = vunpack.c.l.s4 1983009808
  %v2517 = vunpack.c.0.s8 %v2516
  %v2518 = vlaneseq
  %v2519 = vshrl.u32 %v2518, 7
  %v2520 = vsub.s32 %v2517, %v2519
  %v2521 = vrot.slane %v2513, %v2520
  %v2523 = vunpack.c.l.s4 1983009808
  %v2524 = vunpack.c.0.s8 %v2523
  %v2525 = vlaneseq
  %v2526 = vshrl.u32 %v2525, 7
  %v2527 = vsub.s32 %v2524, %v2526
  %v2528 = vrot.slane %v2514, %v2527
  %v2529 = vcombine.low %v2300, %v2328
  %v2530 = vcombine.high %v2300, %v2328
  %v2532 = vunpack.c.l.s4 1983009808
  %v2533 = vunpack.c.0.s8 %v2532
  %v2534 = vlaneseq
  %v2535 = vshrl.u32 %v2534, 7
  %v2536 = vsub.s32 %v2533, %v2535
  %v2537 = vrot.slane %v2529, %v2536
  %v2539 = vunpack.c.l.s4 1983009808
  %v2540 = vunpack.c.0.s8 %v2539
  %v2541 = vlaneseq
  %v2542 = vshrl.u32 %v2541, 7
  %v2543 = vsub.s32 %v2540, %v2542
  %v2544 = vrot.slane %v2530, %v2543
  %v2545 = vcombine.low %v2489, %v2505
  %v2546 = vcombine.high %v2489, %v2505
  %v2548 = vunpack.c.l.s4 1934713408
  %v2549 = vunpack.c.0.s8 %v2548
  %v2550 = vlaneseq
  %v2551 = vshrl.u32 %v2550, 7
  %v2552 = vsub.s32 %v2549, %v2551
  %v2553 = vrot.slane %v2545, %v2552
  %v2555 = vunpack.c.l.s4 1934713408
  %v2556 = vunpack.c.0.s8 %v2555
  %v2557 = vlaneseq
  %v2558 = vshrl.u32 %v2557, 7
  %v2559 = vsub.s32 %v2556, %v2558
  %v2560 = vrot.slane %v2546, %v2559
  %v2561 = vcombine.low %v2496, %v2512
  %v2562 = vcombine.high %v2496, %v2512
  %v2564 = vunpack.c.l.s4 1934713408
  %v2565 = vunpack.c.0.s8 %v2564
  %v2566 = vlaneseq
  %v2567 = vshrl.u32 %v2566, 7
  %v2568 = vsub.s32 %v2565, %v2567
  %v2569 = vrot.slane %v2561, %v2568
  %v2571 = vunpack.c.l.s4 1934713408
  %v2572 = vunpack.c.0.s8 %v2571
  %v2573 = vlaneseq
  %v2574 = vshrl.u32 %v2573, 7
  %v2575 = vsub.s32 %v2572, %v2574
  %v2576 = vrot.slane %v2562, %v2575
  %v2577 = vcombine.low %v2521, %v2537
  %v2578 = vcombine.high %v2521, %v2537
  %v2580 = vunpack.c.l.s4 1934713408
  %v2581 = vunpack.c.0.s8 %v2580
  %v2582 = vlaneseq
  %v2583 = vshrl.u32 %v2582, 7
  %v2584 = vsub.s32 %v2581, %v2583
  %v2585 = vrot.slane %v2577, %v2584
  %v2587 = vunpack.c.l.s4 1934713408
  %v2588 = vunpack.c.0.s8 %v2587
  %v2589 = vlaneseq
  %v2590 = vshrl.u32 %v2589, 7
  %v2591 = vsub.s32 %v2588, %v2590
  %v2592 = vrot.slane %v2578, %v2591
  %v2593 = vcombine.low %v2528, %v2544
  %v2594 = vcombine.high %v2528, %v2544
  %v2596 = vunpack.c.l.s4 1934713408
  %v2597 = vunpack.c.0.s8 %v2596
  %v2598 = vlaneseq
  %v2599 = vshrl.u32 %v2598, 7
  %v2600 = vsub.s32 %v2597, %v2599
  %v2601 = vrot.slane %v2593, %v2600
  %v2603 = vunpack.c.l.s4 1934713408
  %v2604 = vunpack.c.0.s8 %v2603
  %v2605 = vlaneseq
  %v2606 = vshrl.u32 %v2605, 7
  %v2607 = vsub.s32 %v2604, %v2606
  %v2608 = vrot.slane %v2594, %v2607
  %v2609 = vcombine.low %v2553, %v2585
  %v2610 = vcombine.high %v2553, %v2585
  %v2611 = vcombine.low %v2560, %v2592
  %v2612 = vcombine.high %v2560, %v2592
  %v2613 = vcombine.low %v2569, %v2601
  %v2614 = vcombine.high %v2569, %v2601
  %v2615 = vcombine.low %v2576, %v2608
  %v2616 = vcombine.high %v2576, %v2608
  %2618 = vrot.lane.b32.xlu0 %v2474, 8
  %v2619 = vpop.permute.xlu0 %2618
  %2622 = vrot.lane.b32.xlu0 %v2475, 16
  %v2623 = vpop.permute.xlu0 %2622
  %2626 = vrot.lane.b32.xlu0 %v2476, 24
  %v2627 = vpop.permute.xlu0 %2626
  %2630 = vrot.lane.b32.xlu0 %v2477, 32
  %v2631 = vpop.permute.xlu0 %2630
  %2634 = vrot.lane.b32.xlu0 %v2478, 40
  %v2635 = vpop.permute.xlu0 %2634
  %2638 = vrot.lane.b32.xlu0 %v2479, 48
  %v2639 = vpop.permute.xlu0 %2638
  %2642 = vrot.lane.b32.xlu0 %v2480, 56
  %v2643 = vpop.permute.xlu0 %2642
  %2646 = vrot.lane.b32.xlu0 %v2609, 64
  %v2647 = vpop.permute.xlu0 %2646
  %2650 = vrot.lane.b32.xlu0 %v2610, 72
  %v2651 = vpop.permute.xlu0 %2650
  %2654 = vrot.lane.b32.xlu0 %v2611, 80
  %v2655 = vpop.permute.xlu0 %2654
  %2658 = vrot.lane.b32.xlu0 %v2612, 88
  %v2659 = vpop.permute.xlu0 %2658
  %2662 = vrot.lane.b32.xlu0 %v2613, 96
  %v2663 = vpop.permute.xlu0 %2662
  %2666 = vrot.lane.b32.xlu0 %v2614, 104
  %v2667 = vpop.permute.xlu0 %2666
  %2670 = vrot.lane.b32.xlu0 %v2615, 112
  %v2671 = vpop.permute.xlu0 %2670
  %2674 = vrot.lane.b32.xlu0 %v2616, 120
  %v2675 = vpop.permute.xlu0 %2674
  %vm2677 = vcmask 64512
  %v2678 = vsel %vm2677, %v2473, %v2619
  %vm2679 = vcmask 130048
  %v2680 = vsel %vm2679, %v2678, %v2623
  %vm2681 = vcmask 195584
  %v2682 = vsel %vm2681, %v2680, %v2627
  %v2683 = vsel %vm95, %v2682, %v2631
  %vm2684 = vcmask 326656
  %v2685 = vsel %vm2684, %v2683, %v2635
  %vm2686 = vcmask 392192
  %v2687 = vsel %vm2686, %v2685, %v2639
  %vm2688 = vcmask 457728
  %v2689 = vsel %vm2688, %v2687, %v2643
  %vm2690 = vcmask 523264
  %v2691 = vsel %vm2690, %v2689, %v2647
  %vm2692 = vcmask 588800
  %v2693 = vsel %vm2692, %v2691, %v2651
  %vm2694 = vcmask 654336
  %v2695 = vsel %vm2694, %v2693, %v2655
  %vm2696 = vcmask 719872
  %v2697 = vsel %vm2696, %v2695, %v2659
  %vm2698 = vcmask 785408
  %v2699 = vsel %vm2698, %v2697, %v2663
  %vm2700 = vcmask 850944
  %v2701 = vsel %vm2700, %v2699, %v2667
  %vm2702 = vcmask 916480
  %v2703 = vsel %vm2702, %v2701, %v2671
  %vm2704 = vcmask 982016
  %v2705 = vsel %vm2704, %v2703, %v2675
  %2707 = vrot.lane.b32.xlu0 %v2705, 18
  %v2708 = vpop.permute.xlu0 %2707
  %v2710 = vld [vmem:[%s3] sm:$0x1]
  %v2711 = vlaneseq
  %v2712 = vshrl.u32 %v2711, 7
  %v2713 = vsub.s32 0, %v2712
  %v2714 = vrot.slane %v2710, %v2713
  %v2715 = vmul.f32 %v2708, %v2714
  %2716 = vst [vmem:[#allocation2] sm:$0xff] %v2715
  %2717 = vrot.lane.b32.xlu0 %v2705, 17
  %v2718 = vpop.permute.xlu0 %2717
  %v2720 = vld [vmem:[%s3 + $0x1] sm:$0x1]
  %v2721 = vlaneseq
  %v2722 = vshrl.u32 %v2721, 7
  %v2723 = vsub.s32 0, %v2722
  %v2724 = vrot.slane %v2720, %v2723
  %v2725 = vmul.f32 %v2718, %v2724
  %2726 = vst [vmem:[#allocation2 + $0x8] sm:$0xff] %v2725
  %2727 = vrot.lane.b32.xlu0 %v2705, 16
  %v2728 = vpop.permute.xlu0 %2727
  %v2730 = vld [vmem:[%s3 + $0x2] sm:$0x1]
  %v2731 = vlaneseq
  %v2732 = vshrl.u32 %v2731, 7
  %v2733 = vsub.s32 0, %v2732
  %v2734 = vrot.slane %v2730, %v2733
  %v2735 = vmul.f32 %v2728, %v2734
  %2736 = vst [vmem:[#allocation2 + $0x10] sm:$0xff] %v2735
  %2737 = vrot.lane.b32.xlu0 %v2705, 15
  %v2738 = vpop.permute.xlu0 %2737
  %v2740 = vld [vmem:[%s3 + $0x3] sm:$0x1]
  %v2741 = vlaneseq
  %v2742 = vshrl.u32 %v2741, 7
  %v2743 = vsub.s32 0, %v2742
  %v2744 = vrot.slane %v2740, %v2743
  %v2745 = vmul.f32 %v2738, %v2744
  %2746 = vst [vmem:[#allocation2 + $0x18] sm:$0xff] %v2745
  %2747 = vrot.lane.b32.xlu0 %v2705, 14
  %v2748 = vpop.permute.xlu0 %2747
  %v2750 = vld [vmem:[%s3 + $0x4] sm:$0x1]
  %v2751 = vlaneseq
  %v2752 = vshrl.u32 %v2751, 7
  %v2753 = vsub.s32 0, %v2752
  %v2754 = vrot.slane %v2750, %v2753
  %v2755 = vmul.f32 %v2748, %v2754
  %2756 = vst [vmem:[#allocation2 + $0x20] sm:$0xff] %v2755
  %2757 = vrot.lane.b32.xlu0 %v2705, 10
  %v2758 = vpop.permute.xlu0 %2757
  %v2760 = vld [vmem:[%s3 + $0x5] sm:$0x1]
  %v2761 = vlaneseq
  %v2762 = vshrl.u32 %v2761, 7
  %v2763 = vsub.s32 0, %v2762
  %v2764 = vrot.slane %v2760, %v2763
  %v2765 = vmul.f32 %v2758, %v2764
  %2766 = vst [vmem:[#allocation2 + $0x28] sm:$0xff] %v2765
  %2767 = vrot.lane.b32.xlu0 %v2705, 9
  %v2768 = vpop.permute.xlu0 %2767
  %v2770 = vld [vmem:[%s3 + $0x6] sm:$0x1]
  %v2771 = vlaneseq
  %v2772 = vshrl.u32 %v2771, 7
  %v2773 = vsub.s32 0, %v2772
  %v2774 = vrot.slane %v2770, %v2773
  %v2775 = vmul.f32 %v2768, %v2774
  %2776 = vst [vmem:[#allocation2 + $0x30] sm:$0xff] %v2775
  %2777 = vrot.lane.b32.xlu0 %v2705, 8
  %v2778 = vpop.permute.xlu0 %2777
  %v2780 = vld [vmem:[%s3 + $0x7] sm:$0x1]
  %v2781 = vlaneseq
  %v2782 = vshrl.u32 %v2781, 7
  %v2783 = vsub.s32 0, %v2782
  %v2784 = vrot.slane %v2780, %v2783
  %v2785 = vmul.f32 %v2778, %v2784
  %2786 = vst [vmem:[#allocation2 + $0x38] sm:$0xff] %v2785
  %2787 = vrot.lane.b32.xlu0 %v2705, 7
  %v2788 = vpop.permute.xlu0 %2787
  %v2790 = vld [vmem:[%s3 + $0x8] sm:$0x1]
  %v2791 = vlaneseq
  %v2792 = vshrl.u32 %v2791, 7
  %v2793 = vsub.s32 0, %v2792
  %v2794 = vrot.slane %v2790, %v2793
  %v2795 = vmul.f32 %v2788, %v2794
  %2796 = vst [vmem:[#allocation2 + $0x40] sm:$0xff] %v2795
  %2797 = vrot.lane.b32.xlu0 %v2705, 6
  %v2798 = vpop.permute.xlu0 %2797
  %v2800 = vld [vmem:[%s3 + $0x9] sm:$0x1]
  %v2801 = vlaneseq
  %v2802 = vshrl.u32 %v2801, 7
  %v2803 = vsub.s32 0, %v2802
  %v2804 = vrot.slane %v2800, %v2803
  %v2805 = vmul.f32 %v2798, %v2804
  %2806 = vst [vmem:[#allocation2 + $0x48] sm:$0xff] %v2805
  %2807 = vrot.lane.b32.xlu0 %v2705, 2
  %v2808 = vpop.permute.xlu0 %2807
  %v2810 = vld [vmem:[%s3 + $0xa] sm:$0x1]
  %v2811 = vlaneseq
  %v2812 = vshrl.u32 %v2811, 7
  %v2813 = vsub.s32 0, %v2812
  %v2814 = vrot.slane %v2810, %v2813
  %v2815 = vmul.f32 %v2808, %v2814
  %2816 = vst [vmem:[#allocation2 + $0x50] sm:$0xff] %v2815
  %2817 = vrot.lane.b32.xlu0 %v2705, 1
  %v2818 = vpop.permute.xlu0 %2817
  %v2820 = vld [vmem:[%s3 + $0xb] sm:$0x1]
  %v2821 = vlaneseq
  %v2822 = vshrl.u32 %v2821, 7
  %v2823 = vsub.s32 0, %v2822
  %v2824 = vrot.slane %v2820, %v2823
  %v2825 = vmul.f32 %v2818, %v2824
  %2826 = vst [vmem:[#allocation2 + $0x58] sm:$0xff] %v2825
  %v2827 = vld [vmem:[%s3 + $0xc] sm:$0x1]
  %v2828 = vlaneseq
  %v2829 = vshrl.u32 %v2828, 7
  %v2830 = vsub.s32 0, %v2829
  %v2831 = vrot.slane %v2827, %v2830
  %v2832 = vmul.f32 %v2705, %v2831
  %2833 = vst [vmem:[#allocation2 + $0x60] sm:$0xff] %v2832
  %2834 = vrot.lane.b32.xlu0 %v2705, 127
  %v2835 = vpop.permute.xlu0 %2834
  %v2837 = vld [vmem:[%s3 + $0xd] sm:$0x1]
  %v2838 = vlaneseq
  %v2839 = vshrl.u32 %v2838, 7
  %v2840 = vsub.s32 0, %v2839
  %v2841 = vrot.slane %v2837, %v2840
  %v2842 = vmul.f32 %v2835, %v2841
  %2843 = vst [vmem:[#allocation2 + $0x68] sm:$0xff] %v2842
  %2844 = vrot.lane.b32.xlu0 %v2705, 126
  %v2845 = vpop.permute.xlu0 %2844
  %v2847 = vld [vmem:[%s3 + $0xe] sm:$0x1]
  %v2848 = vlaneseq
  %v2849 = vshrl.u32 %v2848, 7
  %v2850 = vsub.s32 0, %v2849
  %v2851 = vrot.slane %v2847, %v2850
  %v2852 = vmul.f32 %v2845, %v2851
  %2853 = vst [vmem:[#allocation2 + $0x70] sm:$0xff] %v2852
  %2854 = vrot.lane.b32.xlu0 %v2705, 122
  %v2855 = vpop.permute.xlu0 %2854
  %v2857 = vld [vmem:[%s3 + $0xf] sm:$0x1]
  %v2858 = vlaneseq
  %v2859 = vshrl.u32 %v2858, 7
  %v2860 = vsub.s32 0, %v2859
  %v2861 = vrot.slane %v2857, %v2860
  %v2862 = vmul.f32 %v2855, %v2861
  %2863 = vst [vmem:[#allocation2 + $0x78] sm:$0xff] %v2862
  %2864 = vrot.lane.b32.xlu0 %v2705, 121
  %v2865 = vpop.permute.xlu0 %2864
  %v2867 = vld [vmem:[%s3 + $0x10] sm:$0x1]
  %v2868 = vlaneseq
  %v2869 = vshrl.u32 %v2868, 7
  %v2870 = vsub.s32 0, %v2869
  %v2871 = vrot.slane %v2867, %v2870
  %v2872 = vmul.f32 %v2865, %v2871
  %2873 = vst [vmem:[#allocation2 + $0x80] sm:$0xff] %v2872
  %2874 = vrot.lane.b32.xlu0 %v2705, 120
  %v2875 = vpop.permute.xlu0 %2874
  %v2877 = vld [vmem:[%s3 + $0x11] sm:$0x1]
  %v2878 = vlaneseq
  %v2879 = vshrl.u32 %v2878, 7
  %v2880 = vsub.s32 0, %v2879
  %v2881 = vrot.slane %v2877, %v2880
  %v2882 = vmul.f32 %v2875, %v2881
  %2883 = vst [vmem:[#allocation2 + $0x88] sm:$0xff] %v2882
  %2884 = vrot.lane.b32.xlu0 %v2705, 119
  %v2885 = vpop.permute.xlu0 %2884
  %v2887 = vld [vmem:[%s3 + $0x12] sm:$0x1]
  %v2888 = vlaneseq
  %v2889 = vshrl.u32 %v2888, 7
  %v2890 = vsub.s32 0, %v2889
  %v2891 = vrot.slane %v2887, %v2890
  %v2892 = vmul.f32 %v2885, %v2891
  %2893 = vst [vmem:[#allocation2 + $0x90] sm:$0xff] %v2892
  %2894 = vrot.lane.b32.xlu0 %v2705, 118
  %v2895 = vpop.permute.xlu0 %2894
  %v2897 = vld [vmem:[%s3 + $0x13] sm:$0x1]
  %v2898 = vlaneseq
  %v2899 = vshrl.u32 %v2898, 7
  %v2900 = vsub.s32 0, %v2899
  %v2901 = vrot.slane %v2897, %v2900
  %v2902 = vmul.f32 %v2895, %v2901
  %2903 = vst [vmem:[#allocation2 + $0x98] sm:$0xff] %v2902
  %2904 = vrot.lane.b32.xlu0 %v2705, 114
  %v2905 = vpop.permute.xlu0 %2904
  %v2907 = vld [vmem:[%s3 + $0x14] sm:$0x1]
  %v2908 = vlaneseq
  %v2909 = vshrl.u32 %v2908, 7
  %v2910 = vsub.s32 0, %v2909
  %v2911 = vrot.slane %v2907, %v2910
  %v2912 = vmul.f32 %v2905, %v2911
  %2913 = vst [vmem:[#allocation2 + $0xa0] sm:$0xff] %v2912
  %2914 = vrot.lane.b32.xlu0 %v2705, 113
  %v2915 = vpop.permute.xlu0 %2914
  %v2917 = vld [vmem:[%s3 + $0x15] sm:$0x1]
  %v2918 = vlaneseq
  %v2919 = vshrl.u32 %v2918, 7
  %v2920 = vsub.s32 0, %v2919
  %v2921 = vrot.slane %v2917, %v2920
  %v2922 = vmul.f32 %v2915, %v2921
  %2923 = vst [vmem:[#allocation2 + $0xa8] sm:$0xff] %v2922
  %2924 = vrot.lane.b32.xlu0 %v2705, 112
  %v2925 = vpop.permute.xlu0 %2924
  %v2927 = vld [vmem:[%s3 + $0x16] sm:$0x1]
  %v2928 = vlaneseq
  %v2929 = vshrl.u32 %v2928, 7
  %v2930 = vsub.s32 0, %v2929
  %v2931 = vrot.slane %v2927, %v2930
  %v2932 = vmul.f32 %v2925, %v2931
  %2933 = vst [vmem:[#allocation2 + $0xb0] sm:$0xff] %v2932
  %2934 = vrot.lane.b32.xlu0 %v2705, 111
  %v2935 = vpop.permute.xlu0 %2934
  %v2937 = vld [vmem:[%s3 + $0x17] sm:$0x1]
  %v2938 = vlaneseq
  %v2939 = vshrl.u32 %v2938, 7
  %v2940 = vsub.s32 0, %v2939
  %v2941 = vrot.slane %v2937, %v2940
  %v2942 = vmul.f32 %v2935, %v2941
  %2943 = vst [vmem:[#allocation2 + $0xb8] sm:$0xff] %v2942
  %2944 = vrot.lane.b32.xlu0 %v2705, 110
  %v2945 = vpop.permute.xlu0 %2944
  %v2947 = vld [vmem:[%s3 + $0x18] sm:$0x1]
  %v2948 = vlaneseq
  %v2949 = vshrl.u32 %v2948, 7
  %v2950 = vsub.s32 0, %v2949
  %v2951 = vrot.slane %v2947, %v2950
  %v2952 = vmul.f32 %v2945, %v2951
  %2953 = vst [vmem:[#allocation2 + $0xc0] sm:$0xff] %v2952
  %v2954 = vld [vmem:[%s4] sm:$0xff]
  %v2955 = vld [vmem:[%s4 + $0x8] sm:$0xff]
  %v2956 = vld [vmem:[#allocation2] sm:$0xff]
  %v2957 = vld [vmem:[#allocation2 + $0x8] sm:$0xff]
  %v2958 = vld [vmem:[#allocation2 + $0x10] sm:$0xff]
  %v2959 = vld [vmem:[#allocation2 + $0x18] sm:$0xff]
  %v2960 = vld [vmem:[#allocation2 + $0x20] sm:$0xff]
  %v2961 = vld [vmem:[#allocation2 + $0x28] sm:$0xff]
  %v2962 = vld [vmem:[#allocation2 + $0x30] sm:$0xff]
  %v2963 = vld [vmem:[#allocation2 + $0x38] sm:$0xff]
  %v2964 = vld [vmem:[#allocation2 + $0x40] sm:$0xff]
  %v2965 = vld [vmem:[#allocation2 + $0x48] sm:$0xff]
  %v2966 = vld [vmem:[#allocation2 + $0x50] sm:$0xff]
  %v2967 = vld [vmem:[#allocation2 + $0x58] sm:$0xff]
  %v2968 = vld [vmem:[#allocation2 + $0x60] sm:$0xff]
  %v2969 = vld [vmem:[#allocation2 + $0x68] sm:$0xff]
  %v2970 = vld [vmem:[#allocation2 + $0x70] sm:$0xff]
  %v2971 = vld [vmem:[#allocation2 + $0x78] sm:$0xff]
  %v2972 = vld [vmem:[#allocation2 + $0x80] sm:$0xff]
  %v2973 = vld [vmem:[#allocation2 + $0x88] sm:$0xff]
  %v2974 = vld [vmem:[#allocation2 + $0x90] sm:$0xff]
  %v2975 = vld [vmem:[#allocation2 + $0x98] sm:$0xff]
  %v2976 = vld [vmem:[#allocation2 + $0xa0] sm:$0xff]
  %v2977 = vld [vmem:[#allocation2 + $0xa8] sm:$0xff]
  %v2978 = vld [vmem:[#allocation2 + $0xb0] sm:$0xff]
  %v2979 = vld [vmem:[#allocation2 + $0xb8] sm:$0xff]
  %v2980 = vld [vmem:[#allocation2 + $0xc0] sm:$0xff]
  %v2982 = vsel %vm2692, %v2955, 0
  %2984 = vmatprep.subr.mxu0 0.0
  %2985 = vmatpush1.msra.mxu0 %v2956
  %2986 = vmatprep.subr.mxu0 0.0
  %2987 = vmatpush1.msra.mxu0 %v2957
  %2988 = vmatprep.subr.mxu0 0.0
  %2989 = vmatpush1.msra.mxu0 %v2958
  %2990 = vmatprep.subr.mxu0 0.0
  %2991 = vmatpush1.msra.mxu0 %v2959
  %2992 = vmatprep.subr.mxu0 0.0
  %2993 = vmatpush1.msra.mxu0 %v2960
  %2994 = vmatprep.subr.mxu0 0.0
  %2995 = vmatpush1.msra.mxu0 %v2961
  %2996 = vmatprep.subr.mxu0 0.0
  %2997 = vmatpush1.msra.mxu0 %v2962
  %2998 = vmatprep.subr.mxu0 0.0
  %2999 = vmatpush1.msra.mxu0 %v2963
  %3000 = vmatprep.subr.mxu0 0.0
  %3001 = vmatpush1.msra.mxu0 %v2964
  %3002 = vmatprep.subr.mxu0 0.0
  %3003 = vmatpush1.msra.mxu0 %v2965
  %3004 = vmatprep.subr.mxu0 0.0
  %3005 = vmatpush1.msra.mxu0 %v2966
  %3006 = vmatprep.subr.mxu0 0.0
  %3007 = vmatpush1.msra.mxu0 %v2967
  %3008 = vmatprep.subr.mxu0 0.0
  %3009 = vmatpush1.msra.mxu0 %v2968
  %3010 = vmatprep.subr.mxu0 0.0
  %3011 = vmatpush1.msra.mxu0 %v2969
  %3012 = vmatprep.subr.mxu0 0.0
  %3013 = vmatpush1.msra.mxu0 %v2970
  %3014 = vmatprep.subr.mxu0 0.0
  %3015 = vmatpush1.msra.mxu0 %v2971
  %3016 = vmatprep.subr.mxu0 0.0
  %3017 = vmatpush1.msra.mxu0 %v2972
  %3018 = vmatprep.subr.mxu0 0.0
  %3019 = vmatpush1.msra.mxu0 %v2973
  %3020 = vmatprep.subr.mxu0 0.0
  %3021 = vmatpush1.msra.mxu0 %v2974
  %3022 = vmatprep.subr.mxu0 0.0
  %3023 = vmatpush1.msra.mxu0 %v2975
  %3024 = vmatprep.subr.mxu0 0.0
  %3025 = vmatpush1.msra.mxu0 %v2976
  %3026 = vmatprep.subr.mxu0 0.0
  %3027 = vmatpush1.msra.mxu0 %v2977
  %3028 = vmatprep.subr.mxu0 0.0
  %3029 = vmatpush1.msra.mxu0 %v2978
  %3030 = vmatprep.subr.mxu0 0.0
  %3031 = vmatpush1.msra.mxu0 %v2979
  %3032 = vmatprep.subr.mxu0 0.0
  %3033 = vmatpush1.msra.mxu0 %v2980
  %3034 = vmatprep.subr.mxu0 0.0
  %3035 = vmatpush1.msra.mxu0 0.0
  %3036 = vmatprep.subr.mxu0 0.0
  %3037 = vmatpush1.msra.mxu0 0.0
  %3038 = vmatprep.subr.mxu0 0.0
  %3039 = vmatpush1.msra.mxu0 0.0
  %3040 = vmatprep.subr.mxu0 0.0
  %3041 = vmatpush1.msra.mxu0 0.0
  %3042 = vmatprep.subr.mxu0 0.0
  %3043 = vmatpush1.msra.mxu0 0.0
  %3044 = vmatprep.subr.mxu0 0.0
  %3045 = vmatpush1.msra.mxu0 0.0
  %3046 = vmatprep.subr.mxu0 0.0
  %3047 = vmatpush1.msra.mxu0 0.0
  %3048 = vmatprep.mubr.f32.mxu0 %v2982
  %3049 = vmatmul.mubr.f32.gmra.mrb[0].mxu0 %v2954
  %v3050 = vpop.f32.mrb[0].mxu0
  %v3051 = vadd.f32 0.0, %v3050
  %v3052 = vpop.f32.mrb[0].mxu0
  %3053 = vdwg.mxu0
  %v3054 = vld [vmem:[%s5] sm:$0xff]
  %3056 = vset.pattern.permute.xlu0 0
  %3057 = vperm.xlu0 %3056, %v3054
  %v3058 = vpop.permute.xlu0 %3057
  %v3060 = vmul.f32 %v3051, %v3058
  %v3061 = vld [vmem:[%s6] sm:$0xff]
  %3063 = vset.pattern.permute.xlu0 0
  %3064 = vperm.xlu0 %3063, %v3061
  %v3065 = vpop.permute.xlu0 %3064
  %v3067 = vadd.f32 %v3060, %v3065
  %v3068 = vmax.f32 %v3067, 0.0
  %3070 = vrot.lane.b32.xlu0 %v3068, 18
  %v3071 = vpop.permute.xlu0 %3070
  %v3073 = vld [vmem:[%s3] sm:$0x1]
  %v3074 = vlaneseq
  %v3075 = vshrl.u32 %v3074, 7
  %v3076 = vsub.s32 0, %v3075
  %v3077 = vrot.slane %v3073, %v3076
  %v3078 = vmul.f32 %v3071, %v3077
  %3079 = vst [vmem:[#allocation2] sm:$0xff] %v3078
  %3080 = vrot.lane.b32.xlu0 %v3068, 17
  %v3081 = vpop.permute.xlu0 %3080
  %v3083 = vld [vmem:[%s3 + $0x1] sm:$0x1]
  %v3084 = vlaneseq
  %v3085 = vshrl.u32 %v3084, 7
  %v3086 = vsub.s32 0, %v3085
  %v3087 = vrot.slane %v3083, %v3086
  %v3088 = vmul.f32 %v3081, %v3087
  %3089 = vst [vmem:[#allocation2 + $0x8] sm:$0xff] %v3088
  %3090 = vrot.lane.b32.xlu0 %v3068, 16
  %v3091 = vpop.permute.xlu0 %3090
  %v3093 = vld [vmem:[%s3 + $0x2] sm:$0x1]
  %v3094 = vlaneseq
  %v3095 = vshrl.u32 %v3094, 7
  %v3096 = vsub.s32 0, %v3095
  %v3097 = vrot.slane %v3093, %v3096
  %v3098 = vmul.f32 %v3091, %v3097
  %3099 = vst [vmem:[#allocation2 + $0x10] sm:$0xff] %v3098
  %3100 = vrot.lane.b32.xlu0 %v3068, 15
  %v3101 = vpop.permute.xlu0 %3100
  %v3103 = vld [vmem:[%s3 + $0x3] sm:$0x1]
  %v3104 = vlaneseq
  %v3105 = vshrl.u32 %v3104, 7
  %v3106 = vsub.s32 0, %v3105
  %v3107 = vrot.slane %v3103, %v3106
  %v3108 = vmul.f32 %v3101, %v3107
  %3109 = vst [vmem:[#allocation2 + $0x18] sm:$0xff] %v3108
  %3110 = vrot.lane.b32.xlu0 %v3068, 14
  %v3111 = vpop.permute.xlu0 %3110
  %v3113 = vld [vmem:[%s3 + $0x4] sm:$0x1]
  %v3114 = vlaneseq
  %v3115 = vshrl.u32 %v3114, 7
  %v3116 = vsub.s32 0, %v3115
  %v3117 = vrot.slane %v3113, %v3116
  %v3118 = vmul.f32 %v3111, %v3117
  %3119 = vst [vmem:[#allocation2 + $0x20] sm:$0xff] %v3118
  %3120 = vrot.lane.b32.xlu0 %v3068, 10
  %v3121 = vpop.permute.xlu0 %3120
  %v3123 = vld [vmem:[%s3 + $0x5] sm:$0x1]
  %v3124 = vlaneseq
  %v3125 = vshrl.u32 %v3124, 7
  %v3126 = vsub.s32 0, %v3125
  %v3127 = vrot.slane %v3123, %v3126
  %v3128 = vmul.f32 %v3121, %v3127
  %3129 = vst [vmem:[#allocation2 + $0x28] sm:$0xff] %v3128
  %3130 = vrot.lane.b32.xlu0 %v3068, 9
  %v3131 = vpop.permute.xlu0 %3130
  %v3133 = vld [vmem:[%s3 + $0x6] sm:$0x1]
  %v3134 = vlaneseq
  %v3135 = vshrl.u32 %v3134, 7
  %v3136 = vsub.s32 0, %v3135
  %v3137 = vrot.slane %v3133, %v3136
  %v3138 = vmul.f32 %v3131, %v3137
  %3139 = vst [vmem:[#allocation2 + $0x30] sm:$0xff] %v3138
  %3140 = vrot.lane.b32.xlu0 %v3068, 8
  %v3141 = vpop.permute.xlu0 %3140
  %v3143 = vld [vmem:[%s3 + $0x7] sm:$0x1]
  %v3144 = vlaneseq
  %v3145 = vshrl.u32 %v3144, 7
  %v3146 = vsub.s32 0, %v3145
  %v3147 = vrot.slane %v3143, %v3146
  %v3148 = vmul.f32 %v3141, %v3147
  %3149 = vst [vmem:[#allocation2 + $0x38] sm:$0xff] %v3148
  %3150 = vrot.lane.b32.xlu0 %v3068, 7
  %v3151 = vpop.permute.xlu0 %3150
  %v3153 = vld [vmem:[%s3 + $0x8] sm:$0x1]
  %v3154 = vlaneseq
  %v3155 = vshrl.u32 %v3154, 7
  %v3156 = vsub.s32 0, %v3155
  %v3157 = vrot.slane %v3153, %v3156
  %v3158 = vmul.f32 %v3151, %v3157
  %3159 = vst [vmem:[#allocation2 + $0x40] sm:$0xff] %v3158
  %3160 = vrot.lane.b32.xlu0 %v3068, 6
  %v3161 = vpop.permute.xlu0 %3160
  %v3163 = vld [vmem:[%s3 + $0x9] sm:$0x1]
  %v3164 = vlaneseq
  %v3165 = vshrl.u32 %v3164, 7
  %v3166 = vsub.s32 0, %v3165
  %v3167 = vrot.slane %v3163, %v3166
  %v3168 = vmul.f32 %v3161, %v3167
  %3169 = vst [vmem:[#allocation2 + $0x48] sm:$0xff] %v3168
  %3170 = vrot.lane.b32.xlu0 %v3068, 2
  %v3171 = vpop.permute.xlu0 %3170
  %v3173 = vld [vmem:[%s3 + $0xa] sm:$0x1]
  %v3174 = vlaneseq
  %v3175 = vshrl.u32 %v3174, 7
  %v3176 = vsub.s32 0, %v3175
  %v3177 = vrot.slane %v3173, %v3176
  %v3178 = vmul.f32 %v3171, %v3177
  %3179 = vst [vmem:[#allocation2 + $0x50] sm:$0xff] %v3178
  %3180 = vrot.lane.b32.xlu0 %v3068, 1
  %v3181 = vpop.permute.xlu0 %3180
  %v3183 = vld [vmem:[%s3 + $0xb] sm:$0x1]
  %v3184 = vlaneseq
  %v3185 = vshrl.u32 %v3184, 7
  %v3186 = vsub.s32 0, %v3185
  %v3187 = vrot.slane %v3183, %v3186
  %v3188 = vmul.f32 %v3181, %v3187
  %3189 = vst [vmem:[#allocation2 + $0x58] sm:$0xff] %v3188
  %v3190 = vld [vmem:[%s3 + $0xc] sm:$0x1]
  %v3191 = vlaneseq
  %v3192 = vshrl.u32 %v3191, 7
  %v3193 = vsub.s32 0, %v3192
  %v3194 = vrot.slane %v3190, %v3193
  %v3195 = vmul.f32 %v3068, %v3194
  %3196 = vst [vmem:[#allocation2 + $0x60] sm:$0xff] %v3195
  %3197 = vrot.lane.b32.xlu0 %v3068, 127
  %v3198 = vpop.permute.xlu0 %3197
  %v3200 = vld [vmem:[%s3 + $0xd] sm:$0x1]
  %v3201 = vlaneseq
  %v3202 = vshrl.u32 %v3201, 7
  %v3203 = vsub.s32 0, %v3202
  %v3204 = vrot.slane %v3200, %v3203
  %v3205 = vmul.f32 %v3198, %v3204
  %3206 = vst [vmem:[#allocation2 + $0x68] sm:$0xff] %v3205
  %3207 = vrot.lane.b32.xlu0 %v3068, 126
  %v3208 = vpop.permute.xlu0 %3207
  %v3210 = vld [vmem:[%s3 + $0xe] sm:$0x1]
  %v3211 = vlaneseq
  %v3212 = vshrl.u32 %v3211, 7
  %v3213 = vsub.s32 0, %v3212
  %v3214 = vrot.slane %v3210, %v3213
  %v3215 = vmul.f32 %v3208, %v3214
  %3216 = vst [vmem:[#allocation2 + $0x70] sm:$0xff] %v3215
  %3217 = vrot.lane.b32.xlu0 %v3068, 122
  %v3218 = vpop.permute.xlu0 %3217
  %v3220 = vld [vmem:[%s3 + $0xf] sm:$0x1]
  %v3221 = vlaneseq
  %v3222 = vshrl.u32 %v3221, 7
  %v3223 = vsub.s32 0, %v3222
  %v3224 = vrot.slane %v3220, %v3223
  %v3225 = vmul.f32 %v3218, %v3224
  %3226 = vst [vmem:[#allocation2 + $0x78] sm:$0xff] %v3225
  %3227 = vrot.lane.b32.xlu0 %v3068, 121
  %v3228 = vpop.permute.xlu0 %3227
  %v3230 = vld [vmem:[%s3 + $0x10] sm:$0x1]
  %v3231 = vlaneseq
  %v3232 = vshrl.u32 %v3231, 7
  %v3233 = vsub.s32 0, %v3232
  %v3234 = vrot.slane %v3230, %v3233
  %v3235 = vmul.f32 %v3228, %v3234
  %3236 = vst [vmem:[#allocation2 + $0x80] sm:$0xff] %v3235
  %3237 = vrot.lane.b32.xlu0 %v3068, 120
  %v3238 = vpop.permute.xlu0 %3237
  %v3240 = vld [vmem:[%s3 + $0x11] sm:$0x1]
  %v3241 = vlaneseq
  %v3242 = vshrl.u32 %v3241, 7
  %v3243 = vsub.s32 0, %v3242
  %v3244 = vrot.slane %v3240, %v3243
  %v3245 = vmul.f32 %v3238, %v3244
  %3246 = vst [vmem:[#allocation2 + $0x88] sm:$0xff] %v3245
  %3247 = vrot.lane.b32.xlu0 %v3068, 119
  %v3248 = vpop.permute.xlu0 %3247
  %v3250 = vld [vmem:[%s3 + $0x12] sm:$0x1]
  %v3251 = vlaneseq
  %v3252 = vshrl.u32 %v3251, 7
  %v3253 = vsub.s32 0, %v3252
  %v3254 = vrot.slane %v3250, %v3253
  %v3255 = vmul.f32 %v3248, %v3254
  %3256 = vst [vmem:[#allocation2 + $0x90] sm:$0xff] %v3255
  %3257 = vrot.lane.b32.xlu0 %v3068, 118
  %v3258 = vpop.permute.xlu0 %3257
  %v3260 = vld [vmem:[%s3 + $0x13] sm:$0x1]
  %v3261 = vlaneseq
  %v3262 = vshrl.u32 %v3261, 7
  %v3263 = vsub.s32 0, %v3262
  %v3264 = vrot.slane %v3260, %v3263
  %v3265 = vmul.f32 %v3258, %v3264
  %3266 = vst [vmem:[#allocation2 + $0x98] sm:$0xff] %v3265
  %3267 = vrot.lane.b32.xlu0 %v3068, 114
  %v3268 = vpop.permute.xlu0 %3267
  %v3270 = vld [vmem:[%s3 + $0x14] sm:$0x1]
  %v3271 = vlaneseq
  %v3272 = vshrl.u32 %v3271, 7
  %v3273 = vsub.s32 0, %v3272
  %v3274 = vrot.slane %v3270, %v3273
  %v3275 = vmul.f32 %v3268, %v3274
  %3276 = vst [vmem:[#allocation2 + $0xa0] sm:$0xff] %v3275
  %3277 = vrot.lane.b32.xlu0 %v3068, 113
  %v3278 = vpop.permute.xlu0 %3277
  %v3280 = vld [vmem:[%s3 + $0x15] sm:$0x1]
  %v3281 = vlaneseq
  %v3282 = vshrl.u32 %v3281, 7
  %v3283 = vsub.s32 0, %v3282
  %v3284 = vrot.slane %v3280, %v3283
  %v3285 = vmul.f32 %v3278, %v3284
  %3286 = vst [vmem:[#allocation2 + $0xa8] sm:$0xff] %v3285
  %3287 = vrot.lane.b32.xlu0 %v3068, 112
  %v3288 = vpop.permute.xlu0 %3287
  %v3290 = vld [vmem:[%s3 + $0x16] sm:$0x1]
  %v3291 = vlaneseq
  %v3292 = vshrl.u32 %v3291, 7
  %v3293 = vsub.s32 0, %v3292
  %v3294 = vrot.slane %v3290, %v3293
  %v3295 = vmul.f32 %v3288, %v3294
  %3296 = vst [vmem:[#allocation2 + $0xb0] sm:$0xff] %v3295
  %3297 = vrot.lane.b32.xlu0 %v3068, 111
  %v3298 = vpop.permute.xlu0 %3297
  %v3300 = vld [vmem:[%s3 + $0x17] sm:$0x1]
  %v3301 = vlaneseq
  %v3302 = vshrl.u32 %v3301, 7
  %v3303 = vsub.s32 0, %v3302
  %v3304 = vrot.slane %v3300, %v3303
  %v3305 = vmul.f32 %v3298, %v3304
  %3306 = vst [vmem:[#allocation2 + $0xb8] sm:$0xff] %v3305
  %3307 = vrot.lane.b32.xlu0 %v3068, 110
  %v3308 = vpop.permute.xlu0 %3307
  %v3310 = vld [vmem:[%s3 + $0x18] sm:$0x1]
  %v3311 = vlaneseq
  %v3312 = vshrl.u32 %v3311, 7
  %v3313 = vsub.s32 0, %v3312
  %v3314 = vrot.slane %v3310, %v3313
  %v3315 = vmul.f32 %v3308, %v3314
  %3316 = vst [vmem:[#allocation2 + $0xc0] sm:$0xff] %v3315
  %v3317 = vld [vmem:[%s7] sm:$0xff]
  %v3318 = vld [vmem:[%s7 + $0x8] sm:$0xff]
  %v3319 = vld [vmem:[#allocation2] sm:$0xff]
  %v3320 = vld [vmem:[#allocation2 + $0x8] sm:$0xff]
  %v3321 = vld [vmem:[#allocation2 + $0x10] sm:$0xff]
  %v3322 = vld [vmem:[#allocation2 + $0x18] sm:$0xff]
  %v3323 = vld [vmem:[#allocation2 + $0x20] sm:$0xff]
  %v3324 = vld [vmem:[#allocation2 + $0x28] sm:$0xff]
  %v3325 = vld [vmem:[#allocation2 + $0x30] sm:$0xff]
  %v3326 = vld [vmem:[#allocation2 + $0x38] sm:$0xff]
  %v3327 = vld [vmem:[#allocation2 + $0x40] sm:$0xff]
  %v3328 = vld [vmem:[#allocation2 + $0x48] sm:$0xff]
  %v3329 = vld [vmem:[#allocation2 + $0x50] sm:$0xff]
  %v3330 = vld [vmem:[#allocation2 + $0x58] sm:$0xff]
  %v3331 = vld [vmem:[#allocation2 + $0x60] sm:$0xff]
  %v3332 = vld [vmem:[#allocation2 + $0x68] sm:$0xff]
  %v3333 = vld [vmem:[#allocation2 + $0x70] sm:$0xff]
  %v3334 = vld [vmem:[#allocation2 + $0x78] sm:$0xff]
  %v3335 = vld [vmem:[#allocation2 + $0x80] sm:$0xff]
  %v3336 = vld [vmem:[#allocation2 + $0x88] sm:$0xff]
  %v3337 = vld [vmem:[#allocation2 + $0x90] sm:$0xff]
  %v3338 = vld [vmem:[#allocation2 + $0x98] sm:$0xff]
  %v3339 = vld [vmem:[#allocation2 + $0xa0] sm:$0xff]
  %v3340 = vld [vmem:[#allocation2 + $0xa8] sm:$0xff]
  %v3341 = vld [vmem:[#allocation2 + $0xb0] sm:$0xff]
  %v3342 = vld [vmem:[#allocation2 + $0xb8] sm:$0xff]
  %v3343 = vld [vmem:[#allocation2 + $0xc0] sm:$0xff]
  %v3345 = vsel %vm2692, %v3318, 0
  %3347 = vmatprep.subr.mxu0 0.0
  %3348 = vmatpush1.msra.mxu0 %v3319
  %3349 = vmatprep.subr.mxu0 0.0
  %3350 = vmatpush1.msra.mxu0 %v3320
  %3351 = vmatprep.subr.mxu0 0.0
  %3352 = vmatpush1.msra.mxu0 %v3321
  %3353 = vmatprep.subr.mxu0 0.0
  %3354 = vmatpush1.msra.mxu0 %v3322
  %3355 = vmatprep.subr.mxu0 0.0
  %3356 = vmatpush1.msra.mxu0 %v3323
  %3357 = vmatprep.subr.mxu0 0.0
  %3358 = vmatpush1.msra.mxu0 %v3324
  %3359 = vmatprep.subr.mxu0 0.0
  %3360 = vmatpush1.msra.mxu0 %v3325
  %3361 = vmatprep.subr.mxu0 0.0
  %3362 = vmatpush1.msra.mxu0 %v3326
  %3363 = vmatprep.subr.mxu0 0.0
  %3364 = vmatpush1.msra.mxu0 %v3327
  %3365 = vmatprep.subr.mxu0 0.0
  %3366 = vmatpush1.msra.mxu0 %v3328
  %3367 = vmatprep.subr.mxu0 0.0
  %3368 = vmatpush1.msra.mxu0 %v3329
  %3369 = vmatprep.subr.mxu0 0.0
  %3370 = vmatpush1.msra.mxu0 %v3330
  %3371 = vmatprep.subr.mxu0 0.0
  %3372 = vmatpush1.msra.mxu0 %v3331
  %3373 = vmatprep.subr.mxu0 0.0
  %3374 = vmatpush1.msra.mxu0 %v3332
  %3375 = vmatprep.subr.mxu0 0.0
  %3376 = vmatpush1.msra.mxu0 %v3333
  %3377 = vmatprep.subr.mxu0 0.0
  %3378 = vmatpush1.msra.mxu0 %v3334
  %3379 = vmatprep.subr.mxu0 0.0
  %3380 = vmatpush1.msra.mxu0 %v3335
  %3381 = vmatprep.subr.mxu0 0.0
  %3382 = vmatpush1.msra.mxu0 %v3336
  %3383 = vmatprep.subr.mxu0 0.0
  %3384 = vmatpush1.msra.mxu0 %v3337
  %3385 = vmatprep.subr.mxu0 0.0
  %3386 = vmatpush1.msra.mxu0 %v3338
  %3387 = vmatprep.subr.mxu0 0.0
  %3388 = vmatpush1.msra.mxu0 %v3339
  %3389 = vmatprep.subr.mxu0 0.0
  %3390 = vmatpush1.msra.mxu0 %v3340
  %3391 = vmatprep.subr.mxu0 0.0
  %3392 = vmatpush1.msra.mxu0 %v3341
  %3393 = vmatprep.subr.mxu0 0.0
  %3394 = vmatpush1.msra.mxu0 %v3342
  %3395 = vmatprep.subr.mxu0 0.0
  %3396 = vmatpush1.msra.mxu0 %v3343
  %3397 = vmatprep.subr.mxu0 0.0
  %3398 = vmatpush1.msra.mxu0 0.0
  %3399 = vmatprep.subr.mxu0 0.0
  %3400 = vmatpush1.msra.mxu0 0.0
  %3401 = vmatprep.subr.mxu0 0.0
  %3402 = vmatpush1.msra.mxu0 0.0
  %3403 = vmatprep.subr.mxu0 0.0
  %3404 = vmatpush1.msra.mxu0 0.0
  %3405 = vmatprep.subr.mxu0 0.0
  %3406 = vmatpush1.msra.mxu0 0.0
  %3407 = vmatprep.subr.mxu0 0.0
  %3408 = vmatpush1.msra.mxu0 0.0
  %3409 = vmatprep.subr.mxu0 0.0
  %3410 = vmatpush1.msra.mxu0 0.0
  %3411 = vmatprep.mubr.f32.mxu0 %v3345
  %3412 = vmatmul.mubr.f32.gmra.mrb[0].mxu0 %v3317
  %v3413 = vpop.f32.mrb[0].mxu0
  %v3414 = vadd.f32 0.0, %v3413
  %v3415 = vpop.f32.mrb[0].mxu0
  %3416 = vdwg.mxu0
  %v3417 = vld [vmem:[%s8] sm:$0xff]
  %3419 = vset.pattern.permute.xlu0 0
  %3420 = vperm.xlu0 %3419, %v3417
  %v3421 = vpop.permute.xlu0 %3420
  %v3423 = vmul.f32 %v3414, %v3421
  %v3424 = vld [vmem:[%s9] sm:$0xff]
  %3426 = vset.pattern.permute.xlu0 0
  %3427 = vperm.xlu0 %3426, %v3424
  %v3428 = vpop.permute.xlu0 %3427
  %v3430 = vadd.f32 %v3423, %v3428
  %v3431 = vmax.f32 %v3430, 0.0
  %3432 = vst [vmem:[%s10] sm:$0xff] %v3431
  // Predicated region
  $region42: #{down_forward.1} parent=0 // pred_check
    _
  $region43: #{down_forward.1} parent=0 // pred_check_branch
    %3434 = sbr.rel (0) target = $region45
  $region44: #{down_forward.1} parent=0 // pred_region
    _
  $region45: #{down_forward.1} parent=0 // pred_fallthru
    _
  // Predicated region
  $region46: #{down_forward.1} parent=0 // pred_check
    _
  $region47: #{down_forward.1} parent=0 // pred_check_branch
    %3436 = sbr.rel (0) target = $region49
  $region48: #{down_forward.1} parent=0 // pred_region
    _
  $region49: #{down_forward.1} parent=0 // pred_fallthru
    _

</llo_original>
